<compile_context>
chip_gen: v6e
topology: v6e:2x2x1
jax: 0.10.0
libtpu: 0.0.40
codegen_flags: <defaults>
</compile_context>

<pallas_src>
import jax
import jax.numpy as jnp
from jax.experimental import pallas as pl
from jax.experimental.pallas import tpu as pltpu


# Phase order q -> (row phase a, col phase b) chosen so every tap group sharing a
# coarse (dh, dw) offset maps to a CONTIGUOUS channel range of the s2d slab:
#   G00 (kh,kw in {0,1}^2 ; dh=0,dw=0): channels [0, 4C)
#   G10 (kh=2, kw in {0,1}; dh=1,dw=0): channels [0, 2C)
#   G01 (kh in {0,1}, kw=2; dh=0,dw=1): channels [C, 3C)
#   G11 (kh=2, kw=2       ; dh=1,dw=1): channels [C, 2C)
_PHASE_ORDER = ((0, 1), (0, 0), (1, 0), (1, 1))     # q -> (a, b)
_PHASE_PERM = (1, 0, 2, 3)                          # natural (a,b)-major p -> q


def _pick_row_tile(Ho, Wc, C4, TN, Cin, out_itemsize=4):
    """Largest divisor of Ho keeping the accumulators small and VMEM bounded."""
    ACC_BUDGET = 256 * 1024            # two f32 accumulators combined (~vreg file)
    VMEM_TARGET = 28 * 1024 * 1024     # per-step working set incl. double buffers (v7x-safe)
    w_bytes = 2 * (3 * 9 * Cin * TN * 2)   # grouped bf16 weights, assume double-buffered
    best = 1
    for th in range(1, Ho + 1):
        if Ho % th:
            continue
        acc_bytes = 2 * th * Wc * TN * 4
        x_bytes = 3 * 2 * (th + 1) * Wc * C4 * 2
        o_bytes = 2 * th * (Wc - 1) * TN * out_itemsize
        if acc_bytes <= ACC_BUDGET and (x_bytes + w_bytes + o_bytes) <= VMEM_TARGET:
            best = th
    return best


def _make_kernel(TH_o, Wo, Wc, C, TN):
    MC = TH_o * Wc          # matmul M (coarse width: one extra column, sliced at the end)
    kT = 3

    def kernel(x0, x1, x2, w00, w01, w10, w11, b_ref, o_ref):
        # x*   : ((TH_o+1)*Wc, 4C) bf16 — causal T-tap slab, +1-row halo baked in.
        # w00  : (3, 4C, TN) bf16;  w01/w10: (3, 2C, TN);  w11: (3, C, TN)
        # b_ref: (1, TN) f32;  o_ref: (TH_o, Wo, TN) f32
        slabs = (x0, x1, x2)
        # dw=0 / dw=1 accumulators at coarse width; bias folded into A's init.
        acc_a = jnp.broadcast_to(b_ref[...], (MC, TN)).astype(jnp.float32)
        acc_b = jnp.zeros((MC, TN), dtype=jnp.float32)
        for kt in range(kT):
            v0 = slabs[kt][0:MC, :]           # dh=0 coarse rows (contiguous, aligned)
            v1 = slabs[kt][Wc:Wc + MC, :]     # dh=1 coarse rows (halo; cheap sublane offset)
            acc_a += jnp.dot(v0,              w00[kt], preferred_element_type=jnp.float32)
            acc_b += jnp.dot(v0[:, C:3 * C],  w01[kt], preferred_element_type=jnp.float32)
            acc_a += jnp.dot(v1[:, 0:2 * C],  w10[kt], preferred_element_type=jnp.float32)
            acc_b += jnp.dot(v1[:, C:2 * C],  w11[kt], preferred_element_type=jnp.float32)
        a_r = acc_a.reshape(TH_o, Wc, TN)
        b_r = acc_b.reshape(TH_o, Wc, TN)
        # out[r, wo] = A[r, wo] + B[r, wo + 1]  — single end-of-step combine pass.
        o_ref[...] = (a_r[:, :Wo, :] + b_r[:, 1:, :]).astype(o_ref.dtype)

    return kernel


def downsample_causal3d(x, weight, bias, stride=2):
    """x: (B, C, T, H, W) f32; weight: (Cout, Cin, 3, 3, 3); bias: (Cout,). Returns NCDHW."""
    B, C, T, H, W = x.shape
    Cout, Cin, kT, kH, kW = weight.shape
    assert Cin == C and (kT, kH, kW) == (3, 3, 3) and stride == 2

    To = (T - 1) // 2 + 1
    Ho = (H - 1) // 2 + 1
    Wo = (W - 1) // 2 + 1
    Hc, Wc = Ho + 1, Wo + 1           # coarse (space-to-depth) spatial extents
    C4 = 4 * C
    Tp = T + 2

    # Lane-pad Cout only when it is not already a multiple of 128.
    Cout_p = (-(-Cout // 128) * 128) if (Cout % 128) else Cout
    # Cout (N) tile: bound resident weights / output block for large widths.
    TN = 256 if (Cout_p > 256 and Cout_p % 256 == 0) else Cout_p
    n_n = Cout_p // TN

    TH_o = _pick_row_tile(Ho, Wc, C4, TN, C)
    n_h = Ho // TH_o
    TH_c = TH_o + 1                   # +1 coarse-row halo per tile

    # ---------------- glue: one layout pass, channels-last + pad + s2d ----------------
    # bf16 BEFORE the transpose/pad passes (replicate-pad and transpose commute with the
    # cast bit-exactly, and it halves glue HBM traffic).
    # TODO(synk): verify in xprof that these layout ops fuse into a single pass.
    x_cl = jnp.transpose(x.astype(jnp.bfloat16), (0, 2, 3, 4, 1))       # (B,T,H,W,C)
    # Replicate pad: T causal (2,0); H/W (1, 2*Xo+1-X).  NOTE: the back pad is one
    # element wider than the reference pad when H (or W) is odd; that extra fine
    # row/col is never addressed by any tap (max fine index is 2*Xo), so results match.
    x_p = jnp.pad(
        x_cl,
        ((0, 0), (2, 0), (1, 2 * Ho + 1 - H), (1, 2 * Wo + 1 - W), (0, 0)),
        mode="edge",
    )                                                                    # (B,Tp,2Ho+2,2Wo+2,C)
    # Space-to-depth with the phase permutation from _PHASE_ORDER.
    x_s2d = x_p.reshape(B, Tp, Hc, 2, Wc, 2, C)
    x_s2d = jnp.transpose(x_s2d, (0, 1, 2, 4, 3, 5, 6)).reshape(B, Tp, Hc, Wc, 4, C)
    x_s2d = jnp.take(x_s2d, jnp.array(_PHASE_PERM), axis=4).reshape(B, Tp, Hc, Wc, C4)
    # Overlapping coarse-row tiles (+1 halo row each), pre-flattened so every in-kernel
    # matmul operand is a contiguous slice.  Duplication factor (TH_o+1)/TH_o; a pure
    # reshape (no duplication) when n_h == 1.
    if n_h == 1:
        x_t = x_s2d.reshape(B, Tp, 1, Hc * Wc, C4)
    else:
        x_t = jnp.stack(
            [x_s2d[:, :, h * TH_o: h * TH_o + TH_c] for h in range(n_h)], axis=2
        ).reshape(B, Tp, n_h, TH_c * Wc, C4)

    # ---- weights grouped by coarse (dh,dw) offset (phase fusion: 27 -> 12 matmuls) ----
    w = jnp.transpose(weight, (2, 3, 4, 1, 0))                           # (kT,kH,kW,Cin,Cout)

    def pack(taps):
        wg = jnp.stack([w[:, a, b] for (a, b) in taps], axis=1)          # (kT,n,Cin,Cout)
        wg = wg.reshape(kT, len(taps) * C, Cout)
        wg = jnp.pad(wg, ((0, 0), (0, 0), (0, Cout_p - Cout)))
        return wg.astype(jnp.bfloat16)

    w00 = pack(list(_PHASE_ORDER))     # dh=0,dw=0 : slab channels [0, 4C)
    w01 = pack([(0, 2), (1, 2)])       # dh=0,dw=1 : slab channels [C, 3C)
    w10 = pack([(2, 1), (2, 0)])       # dh=1,dw=0 : slab channels [0, 2C)
    w11 = pack([(2, 2)])               # dh=1,dw=1 : slab channels [C, 2C)
    b_r = jnp.pad(bias, (0, Cout_p - Cout)).reshape(1, Cout_p).astype(jnp.float32)

    kernel = _make_kernel(TH_o, Wo, Wc, C, TN)

    # Three views of the same slab array, one per causal T-tap (T index 2*t + kt).
    x_specs = [
        pl.BlockSpec(
            (None, None, None, TH_c * Wc, C4),
            lambda b, t, h, n, _kt=kt: (b, 2 * t + _kt, h, 0, 0),
        )
        for kt in range(kT)
    ]
    w_specs = [
        pl.BlockSpec((kT, 4 * C, TN), lambda b, t, h, n: (0, 0, n)),
        pl.BlockSpec((kT, 2 * C, TN), lambda b, t, h, n: (0, 0, n)),
        pl.BlockSpec((kT, 2 * C, TN), lambda b, t, h, n: (0, 0, n)),
        pl.BlockSpec((kT, 1 * C, TN), lambda b, t, h, n: (0, 0, n)),
    ]
    b_spec = pl.BlockSpec((1, TN), lambda b, t, h, n: (0, n))
    out_spec = pl.BlockSpec(
        (None, None, TH_o, Wo, TN), lambda b, t, h, n: (b, t, h, 0, n)
    )

    out = pl.pallas_call(
        kernel,
        out_shape=jax.ShapeDtypeStruct((B, To, Ho, Wo, Cout_p), jnp.float32),
        grid=(B, To, n_h, n_n),            # n innermost: slab blocks reused across N tiles
        in_specs=x_specs + w_specs + [b_spec],
        out_specs=out_spec,
        compiler_params=pltpu.CompilerParams(
            dimension_semantics=("parallel", "parallel", "parallel", "parallel"),
            vmem_limit_bytes=48 * 1024 * 1024,
        ),
    )(x_t, x_t, x_t, w00, w01, w10, w11, b_r)

    if Cout_p != Cout:
        out = out[..., :Cout]
    # TODO(synk): skip the final NCDHW transpose if the consumer accepts channels-last.
    return jnp.transpose(out, (0, 4, 1, 2, 3))


def _reference(x, weight, bias, stride=2):
    """Pure-JAX reference (lax conv) with identical causal/replicate padding."""
    Cout = weight.shape[0]
    kT, kH, kW = weight.shape[2:]
    x_pad = jnp.pad(
        x, ((0, 0), (0, 0), (kT - 1, 0), (kH // 2, kH // 2), (kW // 2, kW // 2)),
        mode="edge",
    )
    out = jax.lax.conv_general_dilated(
        x_pad, weight, window_strides=(stride, stride, stride), padding="VALID",
        dimension_numbers=("NCDHW", "OIDHW", "NCDHW"),
    )
    return out + bias.reshape(1, Cout, 1, 1, 1)


if __name__ == "__main__":
    key = jax.random.PRNGKey(0)
    B, C, T, H, W = 2, 4, 8, 16, 16
    Cout = 8

    k1, k2, k3 = jax.random.split(key, 3)
    x = jax.random.normal(k1, (B, C, T, H, W), dtype=jnp.float32)
    fan_in = C * 3 * 3 * 3
    weight = jax.random.normal(k2, (Cout, C, 3, 3, 3), dtype=jnp.float32) * (1.0 / fan_in) ** 0.5
    bias = jax.random.normal(k3, (Cout,), dtype=jnp.float32) * 0.01

    fwd = jax.jit(downsample_causal3d)
    out = jax.block_until_ready(fwd(x, weight, bias))

    To, Ho, Wo = (T - 1) // 2 + 1, (H - 1) // 2 + 1, (W - 1) // 2 + 1
    assert out.shape == (B, Cout, To, Ho, Wo), out.shape

    ref = jax.block_until_ready(_reference(x, weight, bias))
    err = float(jnp.abs(out - ref).max())
    # bf16 MXU feed with f32 accumulation: relaxed tolerance vs the f32 lax.conv reference.
    assert jnp.allclose(out, ref, atol=3e-2, rtol=3e-2), err

    print("KERNEL_OK")
</pallas_src>

<mosaic_0001>
module attributes {stable_mosaic.version = 11 : i64} {
  func.func @kernel(%arg0: i32, %arg1: i32, %arg2: i32, %arg3: i32, %arg4: memref<1x1x1x81x16xbf16, #tpu.memory_space<vmem>>, %arg5: memref<1x1x1x81x16xbf16, #tpu.memory_space<vmem>>, %arg6: memref<1x1x1x81x16xbf16, #tpu.memory_space<vmem>>, %arg7: memref<3x16x128xbf16, #tpu.memory_space<vmem>>, %arg8: memref<3x8x128xbf16, #tpu.memory_space<vmem>>, %arg9: memref<3x8x128xbf16, #tpu.memory_space<vmem>>, %arg10: memref<3x4x128xbf16, #tpu.memory_space<vmem>>, %arg11: memref<1x128xf32, #tpu.memory_space<vmem>>, %arg12: memref<1x1x8x8x128xf32, #tpu.memory_space<vmem>>) attributes {dimension_semantics = [#tpu.dimension_semantics<parallel>, #tpu.dimension_semantics<parallel>, #tpu.dimension_semantics<parallel>, #tpu.dimension_semantics<parallel>], iteration_bounds = array<i64: 2, 4, 1, 1>, scalar_prefetch = 0 : i64, scratch_operands = 0 : i64, tpu.core_type = #tpu.core_type<tc>, window_params = [{transform_indices = @transform_0, window_bounds = array<i64: 1, 1, 1, 81, 16>}, {transform_indices = @transform_1, window_bounds = array<i64: 1, 1, 1, 81, 16>}, {transform_indices = @transform_2, window_bounds = array<i64: 1, 1, 1, 81, 16>}, {transform_indices = @transform_3, window_bounds = array<i64: 3, 16, 128>}, {transform_indices = @transform_4, window_bounds = array<i64: 3, 8, 128>}, {transform_indices = @transform_5, window_bounds = array<i64: 3, 8, 128>}, {transform_indices = @transform_6, window_bounds = array<i64: 3, 4, 128>}, {transform_indices = @transform_7, window_bounds = array<i64: 1, 128>}, {transform_indices = @transform_8, window_bounds = array<i64: 1, 1, 8, 8, 128>}]} {
    %c0 = arith.constant 0 : index
    %c0_0 = arith.constant 0 : index
    %0 = vector.load %arg11[%c0, %c0_0] : memref<1x128xf32, #tpu.memory_space<vmem>>, vector<1x128xf32>
    %1 = vector.shape_cast %0 : vector<1x128xf32> to vector<1x128xf32>
    %2 = vector.broadcast %1 : vector<1x128xf32> to vector<72x128xf32>
    %cst = arith.constant 0.000000e+00 : f32
    %3 = vector.broadcast %cst : f32 to vector<72x128xf32>
    %c0_1 = arith.constant 0 : index
    %c0_2 = arith.constant 0 : index
    %c0_3 = arith.constant 0 : index
    %c0_4 = arith.constant 0 : index
    %c0_5 = arith.constant 0 : index
    %4 = vector.load %arg4[%c0_1, %c0_2, %c0_3, %c0_4, %c0_5] : memref<1x1x1x81x16xbf16, #tpu.memory_space<vmem>>, vector<1x1x1x72x16xbf16>
    %5 = vector.shape_cast %4 : vector<1x1x1x72x16xbf16> to vector<72x16xbf16>
    %c0_6 = arith.constant 0 : index
    %c0_7 = arith.constant 0 : index
    %c0_8 = arith.constant 0 : index
    %c9 = arith.constant 9 : index
    %c0_9 = arith.constant 0 : index
    %6 = vector.load %arg4[%c0_6, %c0_7, %c0_8, %c9, %c0_9] : memref<1x1x1x81x16xbf16, #tpu.memory_space<vmem>>, vector<1x1x1x72x16xbf16>
    %7 = vector.shape_cast %6 : vector<1x1x1x72x16xbf16> to vector<72x16xbf16>
    %c0_10 = arith.constant 0 : index
    %c0_11 = arith.constant 0 : index
    %c0_12 = arith.constant 0 : index
    %8 = vector.load %arg7[%c0_10, %c0_11, %c0_12] : memref<3x16x128xbf16, #tpu.memory_space<vmem>>, vector<1x16x128xbf16>
    %9 = vector.shape_cast %8 : vector<1x16x128xbf16> to vector<16x128xbf16>
    %cst_13 = arith.constant dense<0.000000e+00> : vector<72x128xf32>
    %10 = tpu.matmul %5, %9, %cst_13 {dimension_numbers = #tpu.dot_dimension_numbers<[1], [0], [0], [1], [0, 0, 1, 1], [], []>} : vector<72x16xbf16>, vector<16x128xbf16>, vector<72x128xf32> -> vector<72x128xf32>
    %11 = arith.addf %2, %10 : vector<72x128xf32>
    %12 = vector.extract_strided_slice %5 {offsets = [0, 4], sizes = [72, 8], strides = [1, 1]} : vector<72x16xbf16> to vector<72x8xbf16>
    %c0_14 = arith.constant 0 : index
    %c0_15 = arith.constant 0 : index
    %c0_16 = arith.constant 0 : index
    %13 = vector.load %arg8[%c0_14, %c0_15, %c0_16] : memref<3x8x128xbf16, #tpu.memory_space<vmem>>, vector<1x8x128xbf16>
    %14 = vector.shape_cast %13 : vector<1x8x128xbf16> to vector<8x128xbf16>
    %cst_17 = arith.constant dense<0.000000e+00> : vector<72x128xf32>
    %15 = tpu.matmul %12, %14, %cst_17 {dimension_numbers = #tpu.dot_dimension_numbers<[1], [0], [0], [1], [0, 0, 1, 1], [], []>} : vector<72x8xbf16>, vector<8x128xbf16>, vector<72x128xf32> -> vector<72x128xf32>
    %16 = arith.addf %3, %15 : vector<72x128xf32>
    %17 = vector.extract_strided_slice %7 {offsets = [0, 0], sizes = [72, 8], strides = [1, 1]} : vector<72x16xbf16> to vector<72x8xbf16>
    %c0_18 = arith.constant 0 : index
    %c0_19 = arith.constant 0 : index
    %c0_20 = arith.constant 0 : index
    %18 = vector.load %arg9[%c0_18, %c0_19, %c0_20] : memref<3x8x128xbf16, #tpu.memory_space<vmem>>, vector<1x8x128xbf16>
    %19 = vector.shape_cast %18 : vector<1x8x128xbf16> to vector<8x128xbf16>
    %cst_21 = arith.constant dense<0.000000e+00> : vector<72x128xf32>
    %20 = tpu.matmul %17, %19, %cst_21 {dimension_numbers = #tpu.dot_dimension_numbers<[1], [0], [0], [1], [0, 0, 1, 1], [], []>} : vector<72x8xbf16>, vector<8x128xbf16>, vector<72x128xf32> -> vector<72x128xf32>
    %21 = arith.addf %11, %20 : vector<72x128xf32>
    %22 = vector.extract_strided_slice %7 {offsets = [0, 4], sizes = [72, 4], strides = [1, 1]} : vector<72x16xbf16> to vector<72x4xbf16>
    %c0_22 = arith.constant 0 : index
    %c0_23 = arith.constant 0 : index
    %c0_24 = arith.constant 0 : index
    %23 = vector.load %arg10[%c0_22, %c0_23, %c0_24] : memref<3x4x128xbf16, #tpu.memory_space<vmem>>, vector<1x4x128xbf16>
    %24 = vector.shape_cast %23 : vector<1x4x128xbf16> to vector<4x128xbf16>
    %cst_25 = arith.constant dense<0.000000e+00> : vector<72x128xf32>
    %25 = tpu.matmul %22, %24, %cst_25 {dimension_numbers = #tpu.dot_dimension_numbers<[1], [0], [0], [1], [0, 0, 1, 1], [], []>} : vector<72x4xbf16>, vector<4x128xbf16>, vector<72x128xf32> -> vector<72x128xf32>
    %26 = arith.addf %16, %25 : vector<72x128xf32>
    %c0_26 = arith.constant 0 : index
    %c0_27 = arith.constant 0 : index
    %c0_28 = arith.constant 0 : index
    %c0_29 = arith.constant 0 : index
    %c0_30 = arith.constant 0 : index
    %27 = vector.load %arg5[%c0_26, %c0_27, %c0_28, %c0_29, %c0_30] : memref<1x1x1x81x16xbf16, #tpu.memory_space<vmem>>, vector<1x1x1x72x16xbf16>
    %28 = vector.shape_cast %27 : vector<1x1x1x72x16xbf16> to vector<72x16xbf16>
    %c0_31 = arith.constant 0 : index
    %c0_32 = arith.constant 0 : index
    %c0_33 = arith.constant 0 : index
    %c9_34 = arith.constant 9 : index
    %c0_35 = arith.constant 0 : index
    %29 = vector.load %arg5[%c0_31, %c0_32, %c0_33, %c9_34, %c0_35] : memref<1x1x1x81x16xbf16, #tpu.memory_space<vmem>>, vector<1x1x1x72x16xbf16>
    %30 = vector.shape_cast %29 : vector<1x1x1x72x16xbf16> to vector<72x16xbf16>
    %c1 = arith.constant 1 : index
    %c0_36 = arith.constant 0 : index
    %c0_37 = arith.constant 0 : index
    %31 = vector.load %arg7[%c1, %c0_36, %c0_37] : memref<3x16x128xbf16, #tpu.memory_space<vmem>>, vector<1x16x128xbf16>
    %32 = vector.shape_cast %31 : vector<1x16x128xbf16> to vector<16x128xbf16>
    %cst_38 = arith.constant dense<0.000000e+00> : vector<72x128xf32>
    %33 = tpu.matmul %28, %32, %cst_38 {dimension_numbers = #tpu.dot_dimension_numbers<[1], [0], [0], [1], [0, 0, 1, 1], [], []>} : vector<72x16xbf16>, vector<16x128xbf16>, vector<72x128xf32> -> vector<72x128xf32>
    %34 = arith.addf %21, %33 : vector<72x128xf32>
    %35 = vector.extract_strided_slice %28 {offsets = [0, 4], sizes = [72, 8], strides = [1, 1]} : vector<72x16xbf16> to vector<72x8xbf16>
    %c1_39 = arith.constant 1 : index
    %c0_40 = arith.constant 0 : index
    %c0_41 = arith.constant 0 : index
    %36 = vector.load %arg8[%c1_39, %c0_40, %c0_41] : memref<3x8x128xbf16, #tpu.memory_space<vmem>>, vector<1x8x128xbf16>
    %37 = vector.shape_cast %36 : vector<1x8x128xbf16> to vector<8x128xbf16>
    %cst_42 = arith.constant dense<0.000000e+00> : vector<72x128xf32>
    %38 = tpu.matmul %35, %37, %cst_42 {dimension_numbers = #tpu.dot_dimension_numbers<[1], [0], [0], [1], [0, 0, 1, 1], [], []>} : vector<72x8xbf16>, vector<8x128xbf16>, vector<72x128xf32> -> vector<72x128xf32>
    %39 = arith.addf %26, %38 : vector<72x128xf32>
    %40 = vector.extract_strided_slice %30 {offsets = [0, 0], sizes = [72, 8], strides = [1, 1]} : vector<72x16xbf16> to vector<72x8xbf16>
    %c1_43 = arith.constant 1 : index
    %c0_44 = arith.constant 0 : index
    %c0_45 = arith.constant 0 : index
    %41 = vector.load %arg9[%c1_43, %c0_44, %c0_45] : memref<3x8x128xbf16, #tpu.memory_space<vmem>>, vector<1x8x128xbf16>
    %42 = vector.shape_cast %41 : vector<1x8x128xbf16> to vector<8x128xbf16>
    %cst_46 = arith.constant dense<0.000000e+00> : vector<72x128xf32>
    %43 = tpu.matmul %40, %42, %cst_46 {dimension_numbers = #tpu.dot_dimension_numbers<[1], [0], [0], [1], [0, 0, 1, 1], [], []>} : vector<72x8xbf16>, vector<8x128xbf16>, vector<72x128xf32> -> vector<72x128xf32>
    %44 = arith.addf %34, %43 : vector<72x128xf32>
    %45 = vector.extract_strided_slice %30 {offsets = [0, 4], sizes = [72, 4], strides = [1, 1]} : vector<72x16xbf16> to vector<72x4xbf16>
    %c1_47 = arith.constant 1 : index
    %c0_48 = arith.constant 0 : index
    %c0_49 = arith.constant 0 : index
    %46 = vector.load %arg10[%c1_47, %c0_48, %c0_49] : memref<3x4x128xbf16, #tpu.memory_space<vmem>>, vector<1x4x128xbf16>
    %47 = vector.shape_cast %46 : vector<1x4x128xbf16> to vector<4x128xbf16>
    %cst_50 = arith.constant dense<0.000000e+00> : vector<72x128xf32>
    %48 = tpu.matmul %45, %47, %cst_50 {dimension_numbers = #tpu.dot_dimension_numbers<[1], [0], [0], [1], [0, 0, 1, 1], [], []>} : vector<72x4xbf16>, vector<4x128xbf16>, vector<72x128xf32> -> vector<72x128xf32>
    %49 = arith.addf %39, %48 : vector<72x128xf32>
    %c0_51 = arith.constant 0 : index
    %c0_52 = arith.constant 0 : index
    %c0_53 = arith.constant 0 : index
    %c0_54 = arith.constant 0 : index
    %c0_55 = arith.constant 0 : index
    %50 = vector.load %arg6[%c0_51, %c0_52, %c0_53, %c0_54, %c0_55] : memref<1x1x1x81x16xbf16, #tpu.memory_space<vmem>>, vector<1x1x1x72x16xbf16>
    %51 = vector.shape_cast %50 : vector<1x1x1x72x16xbf16> to vector<72x16xbf16>
    %c0_56 = arith.constant 0 : index
    %c0_57 = arith.constant 0 : index
    %c0_58 = arith.constant 0 : index
    %c9_59 = arith.constant 9 : index
    %c0_60 = arith.constant 0 : index
    %52 = vector.load %arg6[%c0_56, %c0_57, %c0_58, %c9_59, %c0_60] : memref<1x1x1x81x16xbf16, #tpu.memory_space<vmem>>, vector<1x1x1x72x16xbf16>
    %53 = vector.shape_cast %52 : vector<1x1x1x72x16xbf16> to vector<72x16xbf16>
    %c2 = arith.constant 2 : index
    %c0_61 = arith.constant 0 : index
    %c0_62 = arith.constant 0 : index
    %54 = vector.load %arg7[%c2, %c0_61, %c0_62] : memref<3x16x128xbf16, #tpu.memory_space<vmem>>, vector<1x16x128xbf16>
    %55 = vector.shape_cast %54 : vector<1x16x128xbf16> to vector<16x128xbf16>
    %cst_63 = arith.constant dense<0.000000e+00> : vector<72x128xf32>
    %56 = tpu.matmul %51, %55, %cst_63 {dimension_numbers = #tpu.dot_dimension_numbers<[1], [0], [0], [1], [0, 0, 1, 1], [], []>} : vector<72x16xbf16>, vector<16x128xbf16>, vector<72x128xf32> -> vector<72x128xf32>
    %57 = arith.addf %44, %56 : vector<72x128xf32>
    %58 = vector.extract_strided_slice %51 {offsets = [0, 4], sizes = [72, 8], strides = [1, 1]} : vector<72x16xbf16> to vector<72x8xbf16>
    %c2_64 = arith.constant 2 : index
    %c0_65 = arith.constant 0 : index
    %c0_66 = arith.constant 0 : index
    %59 = vector.load %arg8[%c2_64, %c0_65, %c0_66] : memref<3x8x128xbf16, #tpu.memory_space<vmem>>, vector<1x8x128xbf16>
    %60 = vector.shape_cast %59 : vector<1x8x128xbf16> to vector<8x128xbf16>
    %cst_67 = arith.constant dense<0.000000e+00> : vector<72x128xf32>
    %61 = tpu.matmul %58, %60, %cst_67 {dimension_numbers = #tpu.dot_dimension_numbers<[1], [0], [0], [1], [0, 0, 1, 1], [], []>} : vector<72x8xbf16>, vector<8x128xbf16>, vector<72x128xf32> -> vector<72x128xf32>
    %62 = arith.addf %49, %61 : vector<72x128xf32>
    %63 = vector.extract_strided_slice %53 {offsets = [0, 0], sizes = [72, 8], strides = [1, 1]} : vector<72x16xbf16> to vector<72x8xbf16>
    %c2_68 = arith.constant 2 : index
    %c0_69 = arith.constant 0 : index
    %c0_70 = arith.constant 0 : index
    %64 = vector.load %arg9[%c2_68, %c0_69, %c0_70] : memref<3x8x128xbf16, #tpu.memory_space<vmem>>, vector<1x8x128xbf16>
    %65 = vector.shape_cast %64 : vector<1x8x128xbf16> to vector<8x128xbf16>
    %cst_71 = arith.constant dense<0.000000e+00> : vector<72x128xf32>
    %66 = tpu.matmul %63, %65, %cst_71 {dimension_numbers = #tpu.dot_dimension_numbers<[1], [0], [0], [1], [0, 0, 1, 1], [], []>} : vector<72x8xbf16>, vector<8x128xbf16>, vector<72x128xf32> -> vector<72x128xf32>
    %67 = arith.addf %57, %66 : vector<72x128xf32>
    %68 = vector.extract_strided_slice %53 {offsets = [0, 4], sizes = [72, 4], strides = [1, 1]} : vector<72x16xbf16> to vector<72x4xbf16>
    %c2_72 = arith.constant 2 : index
    %c0_73 = arith.constant 0 : index
    %c0_74 = arith.constant 0 : index
    %69 = vector.load %arg10[%c2_72, %c0_73, %c0_74] : memref<3x4x128xbf16, #tpu.memory_space<vmem>>, vector<1x4x128xbf16>
    %70 = vector.shape_cast %69 : vector<1x4x128xbf16> to vector<4x128xbf16>
    %cst_75 = arith.constant dense<0.000000e+00> : vector<72x128xf32>
    %71 = tpu.matmul %68, %70, %cst_75 {dimension_numbers = #tpu.dot_dimension_numbers<[1], [0], [0], [1], [0, 0, 1, 1], [], []>} : vector<72x4xbf16>, vector<4x128xbf16>, vector<72x128xf32> -> vector<72x128xf32>
    %72 = arith.addf %62, %71 : vector<72x128xf32>
    %73 = vector.shape_cast %67 : vector<72x128xf32> to vector<8x9x128xf32>
    %74 = vector.shape_cast %72 : vector<72x128xf32> to vector<8x9x128xf32>
    %75 = vector.extract_strided_slice %73 {offsets = [0, 0, 0], sizes = [8, 8, 128], strides = [1, 1, 1]} : vector<8x9x128xf32> to vector<8x8x128xf32>
    %76 = vector.extract_strided_slice %74 {offsets = [0, 1, 0], sizes = [8, 8, 128], strides = [1, 1, 1]} : vector<8x9x128xf32> to vector<8x8x128xf32>
    %77 = arith.addf %75, %76 : vector<8x8x128xf32>
    %c0_76 = arith.constant 0 : index
    %c0_77 = arith.constant 0 : index
    %c0_78 = arith.constant 0 : index
    %c0_79 = arith.constant 0 : index
    %c0_80 = arith.constant 0 : index
    %78 = vector.load %arg12[%c0_76, %c0_77, %c0_78, %c0_79, %c0_80] : memref<1x1x8x8x128xf32, #tpu.memory_space<vmem>>, vector<1x1x8x8x128xf32>
    %79 = vector.shape_cast %78 : vector<1x1x8x8x128xf32> to vector<8x8x128xf32>
    %80 = vector.shape_cast %77 : vector<8x8x128xf32> to vector<1x1x8x8x128xf32>
    tpu.vector_store %arg12[%c0_76, %c0_77, %c0_78, %c0_79, %c0_80], %80 {strides = array<i32>} : memref<1x1x8x8x128xf32, #tpu.memory_space<vmem>>, vector<1x1x8x8x128xf32>,
    return
  }
  func.func @transform_0(%arg0: i32, %arg1: i32, %arg2: i32, %arg3: i32) -> (i32, i32, i32, i32, i32) {
    %c2_i32 = arith.constant 2 : i32
    %0 = arith.muli %c2_i32, %arg1 : i32
    %c0_i32 = arith.constant 0 : i32
    %1 = arith.addi %0, %c0_i32 : i32
    %c0_i32_0 = arith.constant 0 : i32
    %c0_i32_1 = arith.constant 0 : i32
    %c0_i32_2 = arith.constant 0 : i32
    return %arg0, %1, %arg2, %c0_i32_0, %c0_i32_1 : i32, i32, i32, i32, i32
  }
  func.func @transform_1(%arg0: i32, %arg1: i32, %arg2: i32, %arg3: i32) -> (i32, i32, i32, i32, i32) {
    %c2_i32 = arith.constant 2 : i32
    %0 = arith.muli %c2_i32, %arg1 : i32
    %c1_i32 = arith.constant 1 : i32
    %1 = arith.addi %0, %c1_i32 : i32
    %c0_i32 = arith.constant 0 : i32
    %c0_i32_0 = arith.constant 0 : i32
    %c0_i32_1 = arith.constant 0 : i32
    return %arg0, %1, %arg2, %c0_i32, %c0_i32_0 : i32, i32, i32, i32, i32
  }
  func.func @transform_2(%arg0: i32, %arg1: i32, %arg2: i32, %arg3: i32) -> (i32, i32, i32, i32, i32) {
    %c2_i32 = arith.constant 2 : i32
    %0 = arith.muli %c2_i32, %arg1 : i32
    %c2_i32_0 = arith.constant 2 : i32
    %1 = arith.addi %0, %c2_i32_0 : i32
    %c0_i32 = arith.constant 0 : i32
    %c0_i32_1 = arith.constant 0 : i32
    %c0_i32_2 = arith.constant 0 : i32
    return %arg0, %1, %arg2, %c0_i32, %c0_i32_1 : i32, i32, i32, i32, i32
  }
  func.func @transform_3(%arg0: i32, %arg1: i32, %arg2: i32, %arg3: i32) -> (i32, i32, i32) {
    %c0_i32 = arith.constant 0 : i32
    %c0_i32_0 = arith.constant 0 : i32
    %c0_i32_1 = arith.constant 0 : i32
    return %c0_i32, %c0_i32_0, %arg3 : i32, i32, i32
  }
  func.func @transform_4(%arg0: i32, %arg1: i32, %arg2: i32, %arg3: i32) -> (i32, i32, i32) {
    %c0_i32 = arith.constant 0 : i32
    %c0_i32_0 = arith.constant 0 : i32
    %c0_i32_1 = arith.constant 0 : i32
    return %c0_i32, %c0_i32_0, %arg3 : i32, i32, i32
  }
  func.func @transform_5(%arg0: i32, %arg1: i32, %arg2: i32, %arg3: i32) -> (i32, i32, i32) {
    %c0_i32 = arith.constant 0 : i32
    %c0_i32_0 = arith.constant 0 : i32
    %c0_i32_1 = arith.constant 0 : i32
    return %c0_i32, %c0_i32_0, %arg3 : i32, i32, i32
  }
  func.func @transform_6(%arg0: i32, %arg1: i32, %arg2: i32, %arg3: i32) -> (i32, i32, i32) {
    %c0_i32 = arith.constant 0 : i32
    %c0_i32_0 = arith.constant 0 : i32
    %c0_i32_1 = arith.constant 0 : i32
    return %c0_i32, %c0_i32_0, %arg3 : i32, i32, i32
  }
  func.func @transform_7(%arg0: i32, %arg1: i32, %arg2: i32, %arg3: i32) -> (i32, i32) {
    %c0_i32 = arith.constant 0 : i32
    %c0_i32_0 = arith.constant 0 : i32
    return %c0_i32, %arg3 : i32, i32
  }
  func.func @transform_8(%arg0: i32, %arg1: i32, %arg2: i32, %arg3: i32) -> (i32, i32, i32, i32, i32) {
    %c0_i32 = arith.constant 0 : i32
    %c0_i32_0 = arith.constant 0 : i32
    return %arg0, %arg1, %arg2, %c0_i32, %arg3 : i32, i32, i32, i32, i32
  }
}

</mosaic_0001>

<llo_original>
// kernel: downsample_causal3d.1
$region0: #{downsample_causal3d.1}
  #allocation0 [shape = 'u32[]', space=smem, size = 0x4, offset = 0x4, fixed_abs, tag = 'smem constant byte address 0x4 - core index']
  #allocation1 [shape = 'u32[144,128]{1,0:T(1,128)}', space=vmem, size = 0x12000, scoped, tag = 'internal scratch']
  %s0 = inlined_call_operand.vmem [shape: bf16[2,10,1,81,16], index: 0, kind: input, shape index: {}, may-alias: {0,1,2}]
  %s1 = inlined_call_operand.vmem [shape: bf16[2,10,1,81,16], index: 1, kind: input, shape index: {}, may-alias: {0,1,2}]
  %s2 = inlined_call_operand.vmem [shape: bf16[2,10,1,81,16], index: 2, kind: input, shape index: {}, may-alias: {0,1,2}]
  %s3 = inlined_call_operand.vmem [shape: bf16[3,16,128], index: 3, kind: input, shape index: {}]
  %s4 = inlined_call_operand.vmem [shape: bf16[3,8,128], index: 4, kind: input, shape index: {}]
  %s5 = inlined_call_operand.vmem [shape: bf16[3,8,128], index: 5, kind: input, shape index: {}]
  %s6 = inlined_call_operand.vmem [shape: bf16[3,4,128], index: 6, kind: input, shape index: {}]
  %s7 = inlined_call_operand.vmem [shape: f32[1,128], index: 7, kind: input, shape index: {}]
  %s8 = inlined_call_operand.vmem [shape: f32[2,4,8,8,128], index: 8, kind: output, shape index: {}]
  %s9 = sld [smem:[#allocation0]]
  $region65: #{downsample_causal3d.1} parent=0
    _
  %s11 = ssub.s32 1, %s9
  %s12 = scalar_select 0, %s11, %s9
  loop: start=0, step=1, limit=10
  $region2: #{downsample_causal3d.1} parent=0 // loop_pre_header
    _
  $region3: #{downsample_causal3d.1} parent=0 // loop_header
    %s14 = sphi 0, %s18
    %p15 = scmp.ge.s32.totalorder %s14, 10
    %s21 = sphi 0, %s47
    %s22 = sphi 0, %s43
    %s23 = sphi 0, %s39
    %s24 = sphi 0, %s35
    %s25 = sphi 0, %s21
    %s26 = sphi 0, %s22
    %s27 = sphi 0, %s23
    %s28 = sphi 0, %s24
    %s29 = sphi 0, %s25
    %s30 = sphi 0, %s26
    %s31 = sphi 0, %s27
    %s32 = sphi 0, %s28
    %s56 = sphi 0, %s58
    %s59 = sphi 0, %s56
    %s60 = sphi 0, %s59
    %s76 = sphi 0, %s60
    %s90 = sphi 0, %s92
    %s93 = sphi 0, %s90
    %s94 = sphi 0, %s93
    %s110 = sphi 0, %s94
    %s124 = sphi 0, %s126
    %s127 = sphi 0, %s124
    %s128 = sphi 0, %s127
    %s144 = sphi 0, %s128
    %s150 = sphi 0, %s152
    %s153 = sphi 0, %s150
    %s154 = sphi 0, %s153
    %s170 = sphi 0, %s154
    %s176 = sphi 0, %s178
    %s179 = sphi 0, %s176
    %s180 = sphi 0, %s179
    %s196 = sphi 0, %s180
    %s202 = sphi 0, %s204
    %s205 = sphi 0, %s202
    %s206 = sphi 0, %s205
    %s222 = sphi 0, %s206
    %s228 = sphi 0, %s230
    %s231 = sphi 0, %s228
    %s232 = sphi 0, %s231
    %s248 = sphi 0, %s232
    %s254 = sphi 0, %s256
    %s257 = sphi 0, %s254
    %s258 = sphi 0, %s257
    %s274 = sphi 0, %s258
    %s286 = sphi 0, %s288
    %s289 = sphi 0, %s286
    %s290 = sphi 0, %s289
    %s306 = sphi 0, %s290
  $region4: #{downsample_causal3d.1} parent=0 // loop_header_branch
    %17 = sbr.rel (%p15) target = $region8
  $region5: #{downsample_causal3d.1} parent=0 // loop_body
    %s19 = ssub.s32 %s14, 1
    %s20 = ssub.s32 %s14, 2
    %s33 = sadd.s32 1, %s24
    %p34 = scmp.ge.s32.totalorder %s33, 1
    %s35 = scalar_select %p34, 0, %s33
    %s36 = sadd.s32 1, %s23
    %s37 = scalar_select %p34, %s36, %s23
    %p38 = scmp.ge.s32.totalorder %s37, 1
    %s39 = scalar_select %p38, 0, %s37
    %s40 = sadd.s32 1, %s22
    %s41 = scalar_select %p38, %s40, %s22
    %p42 = scmp.ge.s32.totalorder %s41, 4
    %s43 = scalar_select %p42, 0, %s41
    %s44 = sadd.s32 1, %s21
    %s45 = scalar_select %p42, %s44, %s21
    %p46 = scmp.ge.s32.totalorder %s45, 2
    %s47 = scalar_select %p46, 0, %s45
    %s48 = smul.u32 %s22, 2
    %s49 = smul.u32 %s43, 2
    %s50 = ssub.s32 %s21, %s47
    %s51 = ssub.s32 %s48, %s49
    %s52 = sor.u32 %s50, %s51
    %s53 = ssub.s32 %s23, %s39
    %s54 = sor.u32 %s52, %s53
    %p55 = scmp.eq.s32.totalorder %s54, 0
    %s57 = sadd.s32 %s56, 1
    %s58 = scalar_select %p55, %s56, %s57
    %p61 = pneg %p55
    %p62 = scmp.eq.s32.totalorder %s14, 7
    %p63 = por %p61, %p62
    %p64 = scmp.ne.s32.totalorder %s56, %s59
    %p65 = scmp.eq.s32.totalorder %s14, 0
    %p66 = por %p64, %p65
    %p67 = scmp.ne.s32.totalorder %s56, %s59
    %p68 = scmp.eq.s32.totalorder %s19, 7
    %p69 = por %p67, %p68
    %p70 = scmp.ne.s32.totalorder %s59, %s60
    %p71 = scmp.eq.s32.totalorder %s19, 0
    %p72 = por %p70, %p71
    %p73 = scmp.ne.s32.totalorder %s59, %s60
    %p74 = scmp.eq.s32.totalorder %s20, 7
    %p75 = por %p73, %p74
    %p77 = scmp.ne.s32.totalorder %s60, %s76
    %p78 = scmp.eq.s32.totalorder %s20, 0
    %p79 = por %p77, %p78
    %s80 = smul.u32 %s22, 2
    %s81 = sadd.s32 %s80, 1
    %s82 = smul.u32 %s43, 2
    %s83 = sadd.s32 %s82, 1
    %s84 = ssub.s32 %s21, %s47
    %s85 = ssub.s32 %s81, %s83
    %s86 = sor.u32 %s84, %s85
    %s87 = ssub.s32 %s23, %s39
    %s88 = sor.u32 %s86, %s87
    %p89 = scmp.eq.s32.totalorder %s88, 0
    %s91 = sadd.s32 %s90, 1
    %s92 = scalar_select %p89, %s90, %s91
    %p95 = pneg %p89
    %p96 = scmp.eq.s32.totalorder %s14, 7
    %p97 = por %p95, %p96
    %p98 = scmp.ne.s32.totalorder %s90, %s93
    %p99 = scmp.eq.s32.totalorder %s14, 0
    %p100 = por %p98, %p99
    %p101 = scmp.ne.s32.totalorder %s90, %s93
    %p102 = scmp.eq.s32.totalorder %s19, 7
    %p103 = por %p101, %p102
    %p104 = scmp.ne.s32.totalorder %s93, %s94
    %p105 = scmp.eq.s32.totalorder %s19, 0
    %p106 = por %p104, %p105
    %p107 = scmp.ne.s32.totalorder %s93, %s94
    %p108 = scmp.eq.s32.totalorder %s20, 7
    %p109 = por %p107, %p108
    %p111 = scmp.ne.s32.totalorder %s94, %s110
    %p112 = scmp.eq.s32.totalorder %s20, 0
    %p113 = por %p111, %p112
    %s114 = smul.u32 %s22, 2
    %s115 = sadd.s32 %s114, 2
    %s116 = smul.u32 %s43, 2
    %s117 = sadd.s32 %s116, 2
    %s118 = ssub.s32 %s21, %s47
    %s119 = ssub.s32 %s115, %s117
    %s120 = sor.u32 %s118, %s119
    %s121 = ssub.s32 %s23, %s39
    %s122 = sor.u32 %s120, %s121
    %p123 = scmp.eq.s32.totalorder %s122, 0
    %s125 = sadd.s32 %s124, 1
    %s126 = scalar_select %p123, %s124, %s125
    %p129 = pneg %p123
    %p130 = scmp.eq.s32.totalorder %s14, 7
    %p131 = por %p129, %p130
    %p132 = scmp.ne.s32.totalorder %s124, %s127
    %p133 = scmp.eq.s32.totalorder %s14, 0
    %p134 = por %p132, %p133
    %p135 = scmp.ne.s32.totalorder %s124, %s127
    %p136 = scmp.eq.s32.totalorder %s19, 7
    %p137 = por %p135, %p136
    %p138 = scmp.ne.s32.totalorder %s127, %s128
    %p139 = scmp.eq.s32.totalorder %s19, 0
    %p140 = por %p138, %p139
    %p141 = scmp.ne.s32.totalorder %s127, %s128
    %p142 = scmp.eq.s32.totalorder %s20, 7
    %p143 = por %p141, %p142
    %p145 = scmp.ne.s32.totalorder %s128, %s144
    %p146 = scmp.eq.s32.totalorder %s20, 0
    %p147 = por %p145, %p146
    %s148 = ssub.s32 %s24, %s35
    %p149 = scmp.eq.s32.totalorder %s148, 0
    %s151 = sadd.s32 %s150, 1
    %s152 = scalar_select %p149, %s150, %s151
    %p155 = pneg %p149
    %p156 = scmp.eq.s32.totalorder %s14, 7
    %p157 = por %p155, %p156
    %p158 = scmp.ne.s32.totalorder %s150, %s153
    %p159 = scmp.eq.s32.totalorder %s14, 0
    %p160 = por %p158, %p159
    %p161 = scmp.ne.s32.totalorder %s150, %s153
    %p162 = scmp.eq.s32.totalorder %s19, 7
    %p163 = por %p161, %p162
    %p164 = scmp.ne.s32.totalorder %s153, %s154
    %p165 = scmp.eq.s32.totalorder %s19, 0
    %p166 = por %p164, %p165
    %p167 = scmp.ne.s32.totalorder %s153, %s154
    %p168 = scmp.eq.s32.totalorder %s20, 7
    %p169 = por %p167, %p168
    %p171 = scmp.ne.s32.totalorder %s154, %s170
    %p172 = scmp.eq.s32.totalorder %s20, 0
    %p173 = por %p171, %p172
    %s174 = ssub.s32 %s24, %s35
    %p175 = scmp.eq.s32.totalorder %s174, 0
    %s177 = sadd.s32 %s176, 1
    %s178 = scalar_select %p175, %s176, %s177
    %p181 = pneg %p175
    %p182 = scmp.eq.s32.totalorder %s14, 7
    %p183 = por %p181, %p182
    %p184 = scmp.ne.s32.totalorder %s176, %s179
    %p185 = scmp.eq.s32.totalorder %s14, 0
    %p186 = por %p184, %p185
    %p187 = scmp.ne.s32.totalorder %s176, %s179
    %p188 = scmp.eq.s32.totalorder %s19, 7
    %p189 = por %p187, %p188
    %p190 = scmp.ne.s32.totalorder %s179, %s180
    %p191 = scmp.eq.s32.totalorder %s19, 0
    %p192 = por %p190, %p191
    %p193 = scmp.ne.s32.totalorder %s179, %s180
    %p194 = scmp.eq.s32.totalorder %s20, 7
    %p195 = por %p193, %p194
    %p197 = scmp.ne.s32.totalorder %s180, %s196
    %p198 = scmp.eq.s32.totalorder %s20, 0
    %p199 = por %p197, %p198
    %s200 = ssub.s32 %s24, %s35
    %p201 = scmp.eq.s32.totalorder %s200, 0
    %s203 = sadd.s32 %s202, 1
    %s204 = scalar_select %p201, %s202, %s203
    %p207 = pneg %p201
    %p208 = scmp.eq.s32.totalorder %s14, 7
    %p209 = por %p207, %p208
    %p210 = scmp.ne.s32.totalorder %s202, %s205
    %p211 = scmp.eq.s32.totalorder %s14, 0
    %p212 = por %p210, %p211
    %p213 = scmp.ne.s32.totalorder %s202, %s205
    %p214 = scmp.eq.s32.totalorder %s19, 7
    %p215 = por %p213, %p214
    %p216 = scmp.ne.s32.totalorder %s205, %s206
    %p217 = scmp.eq.s32.totalorder %s19, 0
    %p218 = por %p216, %p217
    %p219 = scmp.ne.s32.totalorder %s205, %s206
    %p220 = scmp.eq.s32.totalorder %s20, 7
    %p221 = por %p219, %p220
    %p223 = scmp.ne.s32.totalorder %s206, %s222
    %p224 = scmp.eq.s32.totalorder %s20, 0
    %p225 = por %p223, %p224
    %s226 = ssub.s32 %s24, %s35
    %p227 = scmp.eq.s32.totalorder %s226, 0
    %s229 = sadd.s32 %s228, 1
    %s230 = scalar_select %p227, %s228, %s229
    %p233 = pneg %p227
    %p234 = scmp.eq.s32.totalorder %s14, 7
    %p235 = por %p233, %p234
    %p236 = scmp.ne.s32.totalorder %s228, %s231
    %p237 = scmp.eq.s32.totalorder %s14, 0
    %p238 = por %p236, %p237
    %p239 = scmp.ne.s32.totalorder %s228, %s231
    %p240 = scmp.eq.s32.totalorder %s19, 7
    %p241 = por %p239, %p240
    %p242 = scmp.ne.s32.totalorder %s231, %s232
    %p243 = scmp.eq.s32.totalorder %s19, 0
    %p244 = por %p242, %p243
    %p245 = scmp.ne.s32.totalorder %s231, %s232
    %p246 = scmp.eq.s32.totalorder %s20, 7
    %p247 = por %p245, %p246
    %p249 = scmp.ne.s32.totalorder %s232, %s248
    %p250 = scmp.eq.s32.totalorder %s20, 0
    %p251 = por %p249, %p250
    %s252 = ssub.s32 %s24, %s35
    %p253 = scmp.eq.s32.totalorder %s252, 0
    %s255 = sadd.s32 %s254, 1
    %s256 = scalar_select %p253, %s254, %s255
    %p259 = pneg %p253
    %p260 = scmp.eq.s32.totalorder %s14, 7
    %p261 = por %p259, %p260
    %p262 = scmp.ne.s32.totalorder %s254, %s257
    %p263 = scmp.eq.s32.totalorder %s14, 0
    %p264 = por %p262, %p263
    %p265 = scmp.ne.s32.totalorder %s254, %s257
    %p266 = scmp.eq.s32.totalorder %s19, 7
    %p267 = por %p265, %p266
    %p268 = scmp.ne.s32.totalorder %s257, %s258
    %p269 = scmp.eq.s32.totalorder %s19, 0
    %p270 = por %p268, %p269
    %p271 = scmp.ne.s32.totalorder %s257, %s258
    %p272 = scmp.eq.s32.totalorder %s20, 7
    %p273 = por %p271, %p272
    %p275 = scmp.ne.s32.totalorder %s258, %s274
    %p276 = scmp.eq.s32.totalorder %s20, 0
    %p277 = por %p275, %p276
    %s278 = ssub.s32 %s21, %s47
    %s279 = ssub.s32 %s22, %s43
    %s280 = sor.u32 %s278, %s279
    %s281 = ssub.s32 %s23, %s39
    %s282 = sor.u32 %s280, %s281
    %s283 = ssub.s32 %s24, %s35
    %s284 = sor.u32 %s282, %s283
    %p285 = scmp.eq.s32.totalorder %s284, 0
    %s287 = sadd.s32 %s286, 1
    %s288 = scalar_select %p285, %s286, %s287
    %p291 = pneg %p285
    %p292 = scmp.eq.s32.totalorder %s14, 7
    %p293 = por %p291, %p292
    %p294 = scmp.ne.s32.totalorder %s286, %s289
    %p295 = scmp.eq.s32.totalorder %s14, 0
    %p296 = por %p294, %p295
    %p297 = scmp.ne.s32.totalorder %s286, %s289
    %p298 = scmp.eq.s32.totalorder %s19, 7
    %p299 = por %p297, %p298
    %p300 = scmp.ne.s32.totalorder %s289, %s290
    %p301 = scmp.eq.s32.totalorder %s19, 0
    %p302 = por %p300, %p301
    %p303 = scmp.ne.s32.totalorder %s289, %s290
    %p304 = scmp.eq.s32.totalorder %s20, 7
    %p305 = por %p303, %p304
    %p307 = scmp.ne.s32.totalorder %s290, %s306
    %p308 = scmp.eq.s32.totalorder %s20, 0
    %p309 = por %p307, %p308
    %p310 = scmp.le.s32.totalorder 1, %s14
    %p311 = scmp.lt.s32.totalorder %s14, 9
    %p312 = pnand %p310, %p311
    %p313 = pneg %p312
    // Predicated region
    $region9: #{downsample_causal3d.1} parent=5 // pred_check
      _
    $region10: #{downsample_causal3d.1} parent=5 // pred_check_branch
      %315 = sbr.rel (%p312) target = $region12
    $region11: #{downsample_causal3d.1} parent=5 // pred_region
      %s316 = ssub.s32 %s14, 1
      // Predicated region
      $region13: #{downsample_causal3d.1} parent=11 // pred_check
        %p317 = pneg %p166
      $region14: #{downsample_causal3d.1} parent=11 // pred_check_branch
        %319 = sbr.rel (%p317) target = $region16
      $region15: #{downsample_causal3d.1} parent=11 // pred_region
        %p320 = scmp.lt.s32.totalorder %s28, 0
        %s321 = scalar_select %p320, %s28, 0
        %s322 = smul.addr %s321, 4
        %s323 = scalar_lea.vmem %s3, %s322
      $region16: #{downsample_causal3d.1} parent=11 // pred_fallthru
        _
      // Predicated region
      $region17: #{downsample_causal3d.1} parent=11 // pred_check
        %p324 = pneg %p192
      $region18: #{downsample_causal3d.1} parent=11 // pred_check_branch
        %326 = sbr.rel (%p324) target = $region20
      $region19: #{downsample_causal3d.1} parent=11 // pred_region
        %p327 = scmp.lt.s32.totalorder %s28, 0
        %s328 = scalar_select %p327, %s28, 0
        %s329 = smul.addr %s328, 4
        %s330 = scalar_lea.vmem %s4, %s329
      $region20: #{downsample_causal3d.1} parent=11 // pred_fallthru
        _
      // Predicated region
      $region21: #{downsample_causal3d.1} parent=11 // pred_check
        %p331 = pneg %p218
      $region22: #{downsample_causal3d.1} parent=11 // pred_check_branch
        %333 = sbr.rel (%p331) target = $region24
      $region23: #{downsample_causal3d.1} parent=11 // pred_region
        %p334 = scmp.lt.s32.totalorder %s28, 0
        %s335 = scalar_select %p334, %s28, 0
        %s336 = smul.addr %s335, 4
        %s337 = scalar_lea.vmem %s5, %s336
      $region24: #{downsample_causal3d.1} parent=11 // pred_fallthru
        _
      // Predicated region
      $region25: #{downsample_causal3d.1} parent=11 // pred_check
        %p338 = pneg %p244
      $region26: #{downsample_causal3d.1} parent=11 // pred_check_branch
        %340 = sbr.rel (%p338) target = $region28
      $region27: #{downsample_causal3d.1} parent=11 // pred_region
        %p341 = scmp.lt.s32.totalorder %s28, 0
        %s342 = scalar_select %p341, %s28, 0
        %s343 = smul.addr %s342, 2
        %s344 = scalar_lea.vmem %s6, %s343
      $region28: #{downsample_causal3d.1} parent=11 // pred_fallthru
        _
      // Predicated region
      $region29: #{downsample_causal3d.1} parent=11 // pred_check
        %p345 = pneg %p270
      $region30: #{downsample_causal3d.1} parent=11 // pred_check_branch
        %347 = sbr.rel (%p345) target = $region32
      $region31: #{downsample_causal3d.1} parent=11 // pred_region
        %p348 = scmp.lt.s32.totalorder %s28, 0
        %s349 = scalar_select %p348, %s28, 0
        %s350 = scalar_lea.vmem %s7, %s349
      $region32: #{downsample_causal3d.1} parent=11 // pred_fallthru
        _
    $region12: #{downsample_causal3d.1} parent=5 // pred_fallthru
      _
    %p351 = scmp.lt.s32.totalorder %s14, 8
    // Predicated region
    $region33: #{downsample_causal3d.1} parent=5 // pred_check
      %p352 = pneg %p351
    $region34: #{downsample_causal3d.1} parent=5 // pred_check_branch
      %354 = sbr.rel (%p352) target = $region36
    $region35: #{downsample_causal3d.1} parent=5 // pred_region
      // Predicated region
      $region37: #{downsample_causal3d.1} parent=35 // pred_check
        %p355 = pneg %p66
      $region38: #{downsample_causal3d.1} parent=35 // pred_check_branch
        %357 = sbr.rel (%p355) target = $region40
      $region39: #{downsample_causal3d.1} parent=35 // pred_region
        %s358 = smul.u32 %s22, 2
        %p359 = scmp.lt.s32.totalorder %s21, 1
        %s360 = scalar_select %p359, %s21, 1
        %p361 = scmp.lt.s32.totalorder %s358, 9
        %s362 = scalar_select %p361, %s358, 9
        %p363 = scmp.lt.s32.totalorder %s23, 0
        %s364 = scalar_select %p363, %s23, 0
        %s365 = smul.addr %s364, 11
        %s366 = smul.addr %s362, 11
        %s367 = sadd.s32 %s365, %s366
        %s368 = smul.addr %s360, 110
        %s369 = sadd.s32 %s367, %s368
        %s370 = smul.addr %s369, 4
        %s371 = scalar_lea.vmem %s0, %s370
        %s372 = smul.u32 %s22, 2
      $region40: #{downsample_causal3d.1} parent=35 // pred_fallthru
        _
      // Predicated region
      $region41: #{downsample_causal3d.1} parent=35 // pred_check
        %p373 = pneg %p100
      $region42: #{downsample_causal3d.1} parent=35 // pred_check_branch
        %375 = sbr.rel (%p373) target = $region44
      $region43: #{downsample_causal3d.1} parent=35 // pred_region
        %s376 = smul.u32 %s22, 2
        %s377 = sadd.s32 %s376, 1
        %p378 = scmp.lt.s32.totalorder %s21, 1
        %s379 = scalar_select %p378, %s21, 1
        %p380 = scmp.lt.s32.totalorder %s377, 9
        %s381 = scalar_select %p380, %s377, 9
        %p382 = scmp.lt.s32.totalorder %s23, 0
        %s383 = scalar_select %p382, %s23, 0
        %s384 = smul.addr %s383, 11
        %s385 = smul.addr %s381, 11
        %s386 = sadd.s32 %s384, %s385
        %s387 = smul.addr %s379, 110
        %s388 = sadd.s32 %s386, %s387
        %s389 = smul.addr %s388, 4
        %s390 = scalar_lea.vmem %s1, %s389
        %s391 = smul.u32 %s22, 2
        %s392 = sadd.s32 %s391, 1
      $region44: #{downsample_causal3d.1} parent=35 // pred_fallthru
        _
      // Predicated region
      $region45: #{downsample_causal3d.1} parent=35 // pred_check
        %p393 = pneg %p134
      $region46: #{downsample_causal3d.1} parent=35 // pred_check_branch
        %395 = sbr.rel (%p393) target = $region48
      $region47: #{downsample_causal3d.1} parent=35 // pred_region
        %s396 = smul.u32 %s22, 2
        %s397 = sadd.s32 %s396, 2
        %p398 = scmp.lt.s32.totalorder %s21, 1
        %s399 = scalar_select %p398, %s21, 1
        %p400 = scmp.lt.s32.totalorder %s397, 9
        %s401 = scalar_select %p400, %s397, 9
        %p402 = scmp.lt.s32.totalorder %s23, 0
        %s403 = scalar_select %p402, %s23, 0
        %s404 = smul.addr %s403, 11
        %s405 = smul.addr %s401, 11
        %s406 = sadd.s32 %s404, %s405
        %s407 = smul.addr %s399, 110
        %s408 = sadd.s32 %s406, %s407
        %s409 = smul.addr %s408, 4
        %s410 = scalar_lea.vmem %s2, %s409
        %s411 = smul.u32 %s22, 2
        %s412 = sadd.s32 %s411, 2
      $region48: #{downsample_causal3d.1} parent=35 // pred_fallthru
        _
    $region36: #{downsample_causal3d.1} parent=5 // pred_fallthru
      _
    %p413 = scmp.le.s32.totalorder 1, %s14
    %p414 = scmp.lt.s32.totalorder %s14, 9
    %p415 = pnand %p413, %p414
    %p416 = pneg %p415
    // Predicated region
    $region49: #{downsample_causal3d.1} parent=5 // pred_check
      _
    $region50: #{downsample_causal3d.1} parent=5 // pred_check_branch
      %418 = sbr.rel (%p415) target = $region52
    $region51: #{downsample_causal3d.1} parent=5 // pred_region
      %s419 = ssub.s32 %s14, 1
      %s420 = smul.u32 %s26, 2
      %p421 = scmp.lt.s32.totalorder %s25, 1
      %s422 = scalar_select %p421, %s25, 1
      %p423 = scmp.lt.s32.totalorder %s420, 9
      %s424 = scalar_select %p423, %s420, 9
      %p425 = scmp.lt.s32.totalorder %s27, 0
      %s426 = scalar_select %p425, %s27, 0
      %s427 = smul.addr %s426, 11
      %s428 = smul.addr %s424, 11
      %s429 = sadd.s32 %s427, %s428
      %s430 = smul.addr %s422, 110
      %s431 = sadd.s32 %s429, %s430
      %s432 = smul.addr %s431, 4
      %s433 = scalar_lea.vmem %s0, %s432
      %p434 = pneg %p72
      %p435 = pneg %p69
      %s436 = smul.u32 %s26, 2
      %s437 = sadd.s32 %s436, 1
      %p438 = scmp.lt.s32.totalorder %s25, 1
      %s439 = scalar_select %p438, %s25, 1
      %p440 = scmp.lt.s32.totalorder %s437, 9
      %s441 = scalar_select %p440, %s437, 9
      %p442 = scmp.lt.s32.totalorder %s27, 0
      %s443 = scalar_select %p442, %s27, 0
      %s444 = smul.addr %s443, 11
      %s445 = smul.addr %s441, 11
      %s446 = sadd.s32 %s444, %s445
      %s447 = smul.addr %s439, 110
      %s448 = sadd.s32 %s446, %s447
      %s449 = smul.addr %s448, 4
      %s450 = scalar_lea.vmem %s1, %s449
      %p451 = pneg %p106
      %p452 = pneg %p103
      %s453 = smul.u32 %s26, 2
      %s454 = sadd.s32 %s453, 2
      %p455 = scmp.lt.s32.totalorder %s25, 1
      %s456 = scalar_select %p455, %s25, 1
      %p457 = scmp.lt.s32.totalorder %s454, 9
      %s458 = scalar_select %p457, %s454, 9
      %p459 = scmp.lt.s32.totalorder %s27, 0
      %s460 = scalar_select %p459, %s27, 0
      %s461 = smul.addr %s460, 11
      %s462 = smul.addr %s458, 11
      %s463 = sadd.s32 %s461, %s462
      %s464 = smul.addr %s456, 110
      %s465 = sadd.s32 %s463, %s464
      %s466 = smul.addr %s465, 4
      %s467 = scalar_lea.vmem %s2, %s466
      %p468 = pneg %p140
      %p469 = pneg %p137
      %p470 = scmp.lt.s32.totalorder %s28, 0
      %s471 = scalar_select %p470, %s28, 0
      %s472 = smul.addr %s471, 4
      %s473 = scalar_lea.vmem %s3, %s472
      %p474 = pneg %p166
      %p475 = pneg %p163
      %p476 = scmp.lt.s32.totalorder %s28, 0
      %s477 = scalar_select %p476, %s28, 0
      %s478 = smul.addr %s477, 4
      %s479 = scalar_lea.vmem %s4, %s478
      %p480 = pneg %p192
      %p481 = pneg %p189
      %p482 = scmp.lt.s32.totalorder %s28, 0
      %s483 = scalar_select %p482, %s28, 0
      %s484 = smul.addr %s483, 4
      %s485 = scalar_lea.vmem %s5, %s484
      %p486 = pneg %p218
      %p487 = pneg %p215
      %p488 = scmp.lt.s32.totalorder %s28, 0
      %s489 = scalar_select %p488, %s28, 0
      %s490 = smul.addr %s489, 2
      %s491 = scalar_lea.vmem %s6, %s490
      %p492 = pneg %p244
      %p493 = pneg %p241
      %p494 = scmp.lt.s32.totalorder %s28, 0
      %s495 = scalar_select %p494, %s28, 0
      %s496 = scalar_lea.vmem %s7, %s495
      %p497 = pneg %p270
      %p498 = pneg %p267
      %p499 = pneg %p302
      %p500 = pneg %p299
      %s501 = smul.u32 8, %s27
      %p502 = scmp.lt.s32.totalorder %s25, 1
      %s503 = scalar_select %p502, %s25, 1
      %p504 = scmp.lt.s32.totalorder %s26, 3
      %s505 = scalar_select %p504, %s26, 3
      %p506 = scmp.lt.s32.totalorder %s501, 7
      %s507 = scalar_select %p506, %s501, 7
      %p508 = scmp.lt.s32.totalorder %s28, 0
      %s509 = scalar_select %p508, %s28, 0
      %s510 = sadd.s32 %s509, %s507
      %s511 = smul.addr %s505, 8
      %s512 = sadd.s32 %s510, %s511
      %s513 = smul.addr %s503, 32
      %s514 = sadd.s32 %s512, %s513
      %s515 = smul.addr %s514, 8
      %s516 = scalar_lea.vmem %s8, %s515
      %s517 = smul.u32 %s26, 2
      %p518 = scmp.lt.s32.totalorder %s25, 1
      %s519 = scalar_select %p518, %s25, 1
      %p520 = scmp.lt.s32.totalorder %s517, 9
      %s521 = scalar_select %p520, %s517, 9
      %p522 = scmp.lt.s32.totalorder %s27, 0
      %s523 = scalar_select %p522, %s27, 0
      %s524 = smul.addr %s523, 11
      %s525 = smul.addr %s521, 11
      %s526 = sadd.s32 %s524, %s525
      %s527 = smul.addr %s519, 110
      %s528 = sadd.s32 %s526, %s527
      %s529 = smul.addr %s528, 4
      %s530 = scalar_lea.vmem %s0, %s529
      %s531 = smul.u32 %s26, 2
      %s532 = smul.u32 %s26, 2
      %s533 = sadd.s32 %s532, 1
      %p534 = scmp.lt.s32.totalorder %s25, 1
      %s535 = scalar_select %p534, %s25, 1
      %p536 = scmp.lt.s32.totalorder %s533, 9
      %s537 = scalar_select %p536, %s533, 9
      %p538 = scmp.lt.s32.totalorder %s27, 0
      %s539 = scalar_select %p538, %s27, 0
      %s540 = smul.addr %s539, 11
      %s541 = smul.addr %s537, 11
      %s542 = sadd.s32 %s540, %s541
      %s543 = smul.addr %s535, 110
      %s544 = sadd.s32 %s542, %s543
      %s545 = smul.addr %s544, 4
      %s546 = scalar_lea.vmem %s1, %s545
      %s547 = smul.u32 %s26, 2
      %s548 = sadd.s32 %s547, 1
      %s549 = smul.u32 %s26, 2
      %s550 = sadd.s32 %s549, 2
      %p551 = scmp.lt.s32.totalorder %s25, 1
      %s552 = scalar_select %p551, %s25, 1
      %p553 = scmp.lt.s32.totalorder %s550, 9
      %s554 = scalar_select %p553, %s550, 9
      %p555 = scmp.lt.s32.totalorder %s27, 0
      %s556 = scalar_select %p555, %s27, 0
      %s557 = smul.addr %s556, 11
      %s558 = smul.addr %s554, 11
      %s559 = sadd.s32 %s557, %s558
      %s560 = smul.addr %s552, 110
      %s561 = sadd.s32 %s559, %s560
      %s562 = smul.addr %s561, 4
      %s563 = scalar_lea.vmem %s2, %s562
      %s564 = smul.u32 %s26, 2
      %s565 = sadd.s32 %s564, 2
      %p566 = scmp.lt.s32.totalorder %s28, 0
      %s567 = scalar_select %p566, %s28, 0
      %s568 = smul.addr %s567, 4
      %s569 = scalar_lea.vmem %s3, %s568
      %p570 = scmp.lt.s32.totalorder %s28, 0
      %s571 = scalar_select %p570, %s28, 0
      %s572 = smul.addr %s571, 4
      %s573 = scalar_lea.vmem %s4, %s572
      %p574 = scmp.lt.s32.totalorder %s28, 0
      %s575 = scalar_select %p574, %s28, 0
      %s576 = smul.addr %s575, 4
      %s577 = scalar_lea.vmem %s5, %s576
      %p578 = scmp.lt.s32.totalorder %s28, 0
      %s579 = scalar_select %p578, %s28, 0
      %s580 = smul.addr %s579, 2
      %s581 = scalar_lea.vmem %s6, %s580
      %p582 = scmp.lt.s32.totalorder %s28, 0
      %s583 = scalar_select %p582, %s28, 0
      %s584 = scalar_lea.vmem %s7, %s583
      %s585 = smul.u32 8, %s27
      %p586 = scmp.lt.s32.totalorder %s25, 1
      %s587 = scalar_select %p586, %s25, 1
      %p588 = scmp.lt.s32.totalorder %s26, 3
      %s589 = scalar_select %p588, %s26, 3
      %p590 = scmp.lt.s32.totalorder %s585, 7
      %s591 = scalar_select %p590, %s585, 7
      %p592 = scmp.lt.s32.totalorder %s28, 0
      %s593 = scalar_select %p592, %s28, 0
      %s594 = sadd.s32 %s593, %s591
      %s595 = smul.addr %s589, 8
      %s596 = sadd.s32 %s594, %s595
      %s597 = smul.addr %s587, 32
      %s598 = sadd.s32 %s596, %s597
      %s599 = smul.addr %s598, 8
      %s600 = scalar_lea.vmem %s8, %s599
      %s601 = smul.u32 8, %s27
      %v603 = vld [vmem:[%s584] sm:$0x1]
      %v605 = vlaneseq
      %v606 = vshrl.u32 %v605, 7
      %v607 = vsub.s32 0, %v606
      %v608 = vrot.slane %v603, %v607
      %v610 = vld [vmem:[%s530] sm:$0xf]
      %v611 = vld [vmem:[%s530 + $0x4] sm:$0xf]
      %v612 = vld [vmem:[%s530 + $0x8] sm:$0xf]
      %v613 = vld [vmem:[%s530 + $0xc] sm:$0xf]
      %v614 = vld [vmem:[%s530 + $0x10] sm:$0xf]
      %v615 = vld [vmem:[%s530 + $0x14] sm:$0xf]
      %v616 = vld [vmem:[%s530 + $0x18] sm:$0xf]
      %v617 = vld [vmem:[%s530 + $0x1c] sm:$0xf]
      %v618 = vld [vmem:[%s530 + $0x20] sm:$0xf]
      %v619 = vld [vmem:[%s530 + $0x24] sm:$0xf]
      %v620 = vld [vmem:[%s530 + $0x28] sm:$0x1]
      %v621 = vld [vmem:[%s569] sm:$0xf]
      %v622 = vld [vmem:[%s569 + $0x4] sm:$0xf]
      %v632 = vunpack.c.l.b16 %v610
      %v633 = vunpack.c.l.b16 %v611
      %v634 = vunpack.c.l.b16 %v612
      %v635 = vunpack.c.l.b16 %v613
      %v636 = vunpack.c.l.b16 %v614
      %v637 = vunpack.c.l.b16 %v615
      %v638 = vunpack.c.l.b16 %v616
      %v639 = vunpack.c.l.b16 %v617
      %v640 = vunpack.c.l.b16 %v618
      %v641 = vpack.c.b16 %v633, %v632
      %v642 = vpack.c.b16 %v635, %v634
      %v643 = vpack.c.b16 %v637, %v636
      %v644 = vpack.c.b16 %v639, %v638
      %v645 = vpack.c.b16 %v640, %v640
      %v648 = vunpack.c.l.b16 %v621
      %v649 = vunpack.c.l.b16 %v622
      %v650 = vpack.c.b16 %v649, %v648
      %vm652 = vcmask 130048
      %v654 = vsel %vm652, %v641, 0
      %v657 = vsel %vm652, %v642, 0
      %v660 = vsel %vm652, %v643, 0
      %v663 = vsel %vm652, %v644, 0
      %v666 = vsel %vm652, %v645, 0
      %668 = vmatprep.subr.bf16.mxu0 0
      %669 = vmatpush1.bf16.msra.mxu0 0
      %670 = vmatprep.subr.bf16.mxu0 0
      %671 = vmatpush1.bf16.msra.mxu0 0
      %672 = vmatprep.subr.bf16.mxu0 0
      %673 = vmatpush1.bf16.msra.mxu0 0
      %674 = vmatprep.subr.bf16.mxu0 0
      %675 = vmatpush1.bf16.msra.mxu0 0
      %676 = vmatprep.subr.bf16.mxu0 0
      %677 = vmatpush1.bf16.msra.mxu0 0
      %678 = vmatprep.subr.bf16.mxu0 0
      %679 = vmatpush1.bf16.msra.mxu0 0
      %680 = vmatprep.subr.bf16.mxu0 0
      %681 = vmatpush1.bf16.msra.mxu0 0
      %682 = vmatprep.subr.bf16.mxu0 0
      %683 = vmatpush1.bf16.msra.mxu0 %v650
      %684 = vmatprep.subr.bf16.mxu0 0
      %685 = vmatpush2.bf16.msra.mxu0 0
      %686 = vmatprep.subr.bf16.mxu0 0
      %687 = vmatpush2.bf16.msra.mxu0 0
      %688 = vmatprep.subr.bf16.mxu0 0
      %689 = vmatpush2.bf16.msra.mxu0 0
      %690 = vmatprep.subr.bf16.mxu0 0
      %691 = vmatpush2.bf16.msra.mxu0 0
      %692 = vmatprep.subr.bf16.mxu0 0
      %693 = vmatpush2.bf16.msra.mxu0 0
      %694 = vmatprep.subr.bf16.mxu0 0
      %695 = vmatpush2.bf16.msra.mxu0 0
      %696 = vmatprep.subr.bf16.mxu0 0
      %697 = vmatpush2.bf16.msra.mxu0 0
      %698 = vmatprep.subr.bf16.mxu0 0
      %699 = vmatpush2.bf16.msra.mxu0 0
      %700 = vmatprep.mubr.bf16.mxu0 0
      %701 = vmatmul.mubr.bf16.gmra.mxu0 %v654
      %v702 = vpop.f32.mrf.mxu0
      %v703 = vadd.f32 0.0, %v702
      %v704 = vpop.f32.mrf.mxu0
      %v705 = vpop.f32.mrf.mxu0
      %v706 = vadd.f32 0.0, %v705
      %v707 = vpop.f32.mrf.mxu0
      %708 = vmatprep.mubr.bf16.mxu0 0
      %709 = vmatmul.mubr.bf16.gmra.mxu0 %v657
      %v710 = vpop.f32.mrf.mxu0
      %v711 = vadd.f32 0.0, %v710
      %v712 = vpop.f32.mrf.mxu0
      %v713 = vpop.f32.mrf.mxu0
      %v714 = vadd.f32 0.0, %v713
      %v715 = vpop.f32.mrf.mxu0
      %716 = vmatprep.mubr.bf16.mxu0 0
      %717 = vmatmul.mubr.bf16.gmra.mxu0 %v660
      %v718 = vpop.f32.mrf.mxu0
      %v719 = vadd.f32 0.0, %v718
      %v720 = vpop.f32.mrf.mxu0
      %v721 = vpop.f32.mrf.mxu0
      %v722 = vadd.f32 0.0, %v721
      %v723 = vpop.f32.mrf.mxu0
      %724 = vmatprep.mubr.bf16.mxu0 0
      %725 = vmatmul.mubr.bf16.gmra.mxu0 %v663
      %v726 = vpop.f32.mrf.mxu0
      %v727 = vadd.f32 0.0, %v726
      %v728 = vpop.f32.mrf.mxu0
      %v729 = vpop.f32.mrf.mxu0
      %v730 = vadd.f32 0.0, %v729
      %v731 = vpop.f32.mrf.mxu0
      %732 = vmatprep.mubr.bf16.mxu0 0
      %733 = vmatmul.mubr.bf16.gmra.mxu0 %v666
      %v734 = vpop.f32.mrf.mxu0
      %v735 = vadd.f32 0.0, %v734
      %v736 = vpop.f32.mrf.mxu0
      %v737 = vpop.f32.mrf.mxu0
      %v738 = vpop.f32.mrf.mxu0
      %739 = vdwg.mxu0
      %v740 = vadd.f32 %v608, %v703
      %v741 = vadd.f32 %v608, %v706
      %v742 = vadd.f32 %v608, %v711
      %v743 = vadd.f32 %v608, %v714
      %v744 = vadd.f32 %v608, %v719
      %v745 = vadd.f32 %v608, %v722
      %v746 = vadd.f32 %v608, %v727
      %v747 = vadd.f32 %v608, %v730
      %v748 = vadd.f32 %v608, %v735
      %v749 = vld [vmem:[%s573] sm:$0xf]
      %v750 = vld [vmem:[%s577] sm:$0xf]
      %v753 = vunpack.c.l.b16 %v619
      %v754 = vunpack.c.l.b16 %v620
      %v755 = vpack.c.b16 %v634, %v633
      %v756 = vpack.c.b16 %v636, %v635
      %v757 = vpack.c.b16 %v638, %v637
      %v758 = vpack.c.b16 %v640, %v639
      %v759 = vpack.c.b16 %v754, %v753
      %vm760 = vsmask.f32 7424
      %v762 = vshrl.u32 %v755, 16
      %v764 = vshll.u32 %v755, 16
      %v766 = vrot.slane %v764, 1
      %v767 = vor.u32 %v762, %v766
      %v769 = vshll.u32 %v756, 16
      %v771 = vrot.slane %v769, 1
      %v772 = vsel %vm760, %v767, %v771
      %v773 = vshrl.u32 %v756, 16
      %v775 = vor.u32 %v773, %v771
      %v777 = vshll.u32 %v757, 16
      %v779 = vrot.slane %v777, 1
      %v780 = vsel %vm760, %v775, %v779
      %v781 = vshrl.u32 %v757, 16
      %v783 = vor.u32 %v781, %v779
      %v785 = vshll.u32 %v758, 16
      %v787 = vrot.slane %v785, 1
      %v788 = vsel %vm760, %v783, %v787
      %v789 = vshrl.u32 %v758, 16
      %v791 = vor.u32 %v789, %v787
      %v793 = vshll.u32 %v759, 16
      %v795 = vrot.slane %v793, 1
      %v796 = vsel %vm760, %v791, %v795
      %v797 = vshrl.u32 %v759, 16
      %v799 = vor.u32 %v797, %v795
      %vm800 = vcmask 64512
      %v802 = vsel %vm800, %v772, 0
      %v805 = vsel %vm800, %v780, 0
      %v808 = vsel %vm800, %v788, 0
      %v811 = vsel %vm800, %v796, 0
      %v814 = vsel %vm800, %v799, 0
      %vm816 = vcmask 1043456
      %v818 = vsel %vm816, %v750, 0
      %820 = vmatprep.subr.bf16.mxu0 0
      %821 = vmatpush1.bf16.msra.mxu0 0
      %822 = vmatprep.subr.bf16.mxu0 0
      %823 = vmatpush1.bf16.msra.mxu0 0
      %824 = vmatprep.subr.bf16.mxu0 0
      %825 = vmatpush1.bf16.msra.mxu0 0
      %826 = vmatprep.subr.bf16.mxu0 0
      %827 = vmatpush1.bf16.msra.mxu0 0
      %828 = vmatprep.subr.bf16.mxu0 0
      %829 = vmatpush1.bf16.msra.mxu0 0
      %830 = vmatprep.subr.bf16.mxu0 0
      %831 = vmatpush1.bf16.msra.mxu0 0
      %832 = vmatprep.subr.bf16.mxu0 0
      %833 = vmatpush1.bf16.msra.mxu0 0
      %834 = vmatprep.subr.bf16.mxu0 0
      %835 = vmatpush1.bf16.msra.mxu0 %v818
      %836 = vmatprep.subr.bf16.mxu0 0
      %837 = vmatpush2.bf16.msra.mxu0 0
      %838 = vmatprep.subr.bf16.mxu0 0
      %839 = vmatpush2.bf16.msra.mxu0 0
      %840 = vmatprep.subr.bf16.mxu0 0
      %841 = vmatpush2.bf16.msra.mxu0 0
      %842 = vmatprep.subr.bf16.mxu0 0
      %843 = vmatpush2.bf16.msra.mxu0 0
      %844 = vmatprep.subr.bf16.mxu0 0
      %845 = vmatpush2.bf16.msra.mxu0 0
      %846 = vmatprep.subr.bf16.mxu0 0
      %847 = vmatpush2.bf16.msra.mxu0 0
      %848 = vmatprep.subr.bf16.mxu0 0
      %849 = vmatpush2.bf16.msra.mxu0 0
      %850 = vmatprep.subr.bf16.mxu0 0
      %851 = vmatpush2.bf16.msra.mxu0 0
      %852 = vmatprep.mubr.bf16.mxu0 0
      %853 = vmatmul.mubr.bf16.gmra.mxu0 %v802
      %v854 = vpop.f32.mrf.mxu0
      %v855 = vadd.f32 0.0, %v854
      %v856 = vpop.f32.mrf.mxu0
      %v857 = vpop.f32.mrf.mxu0
      %v858 = vadd.f32 0.0, %v857
      %v859 = vpop.f32.mrf.mxu0
      %860 = vmatprep.mubr.bf16.mxu0 0
      %861 = vmatmul.mubr.bf16.gmra.mxu0 %v805
      %v862 = vpop.f32.mrf.mxu0
      %v863 = vadd.f32 0.0, %v862
      %v864 = vpop.f32.mrf.mxu0
      %v865 = vpop.f32.mrf.mxu0
      %v866 = vadd.f32 0.0, %v865
      %v867 = vpop.f32.mrf.mxu0
      %868 = vmatprep.mubr.bf16.mxu0 0
      %869 = vmatmul.mubr.bf16.gmra.mxu0 %v808
      %v870 = vpop.f32.mrf.mxu0
      %v871 = vadd.f32 0.0, %v870
      %v872 = vpop.f32.mrf.mxu0
      %v873 = vpop.f32.mrf.mxu0
      %v874 = vadd.f32 0.0, %v873
      %v875 = vpop.f32.mrf.mxu0
      %876 = vmatprep.mubr.bf16.mxu0 0
      %877 = vmatmul.mubr.bf16.gmra.mxu0 %v811
      %v878 = vpop.f32.mrf.mxu0
      %v879 = vadd.f32 0.0, %v878
      %v880 = vpop.f32.mrf.mxu0
      %v881 = vpop.f32.mrf.mxu0
      %v882 = vadd.f32 0.0, %v881
      %v883 = vpop.f32.mrf.mxu0
      %884 = vmatprep.mubr.bf16.mxu0 0
      %885 = vmatmul.mubr.bf16.gmra.mxu0 %v814
      %v886 = vpop.f32.mrf.mxu0
      %v887 = vadd.f32 0.0, %v886
      %v888 = vpop.f32.mrf.mxu0
      %v889 = vpop.f32.mrf.mxu0
      %v890 = vpop.f32.mrf.mxu0
      %891 = vdwg.mxu0
      %v892 = vadd.f32 %v740, %v855
      %v893 = vadd.f32 %v741, %v858
      %v894 = vadd.f32 %v742, %v863
      %v895 = vadd.f32 %v743, %v866
      %v896 = vadd.f32 %v744, %v871
      %v897 = vadd.f32 %v745, %v874
      %v898 = vadd.f32 %v746, %v879
      %v899 = vadd.f32 %v747, %v882
      %v900 = vadd.f32 %v748, %v887
      %v901 = vld [vmem:[%s581] sm:$0x3]
      %902 = vrot.lane.b32.xlu0 %v772, 124
      %v903 = vpop.permute.xlu0 %902
      %904 = vrot.lane.b32.xlu0 %v780, 124
      %v905 = vpop.permute.xlu0 %904
      %906 = vrot.lane.b32.xlu0 %v788, 124
      %v907 = vpop.permute.xlu0 %906
      %908 = vrot.lane.b32.xlu0 %v796, 124
      %v909 = vpop.permute.xlu0 %908
      %910 = vrot.lane.b32.xlu0 %v799, 124
      %v911 = vpop.permute.xlu0 %910
      %vm912 = vcmask 31744
      %v914 = vsel %vm912, %v903, 0
      %v917 = vsel %vm912, %v905, 0
      %v920 = vsel %vm912, %v907, 0
      %v923 = vsel %vm912, %v909, 0
      %v926 = vsel %vm912, %v911, 0
      %vm928 = vcmask 1041408
      %v930 = vsel %vm928, %v901, 0
      %932 = vmatprep.subr.bf16.mxu0 0
      %933 = vmatpush1.bf16.msra.mxu0 0
      %934 = vmatprep.subr.bf16.mxu0 0
      %935 = vmatpush1.bf16.msra.mxu0 0
      %936 = vmatprep.subr.bf16.mxu0 0
      %937 = vmatpush1.bf16.msra.mxu0 0
      %938 = vmatprep.subr.bf16.mxu0 0
      %939 = vmatpush1.bf16.msra.mxu0 0
      %940 = vmatprep.subr.bf16.mxu0 0
      %941 = vmatpush1.bf16.msra.mxu0 0
      %942 = vmatprep.subr.bf16.mxu0 0
      %943 = vmatpush1.bf16.msra.mxu0 0
      %944 = vmatprep.subr.bf16.mxu0 0
      %945 = vmatpush1.bf16.msra.mxu0 0
      %946 = vmatprep.subr.bf16.mxu0 0
      %947 = vmatpush1.bf16.msra.mxu0 %v930
      %948 = vmatprep.subr.bf16.mxu0 0
      %949 = vmatpush2.bf16.msra.mxu0 0
      %950 = vmatprep.subr.bf16.mxu0 0
      %951 = vmatpush2.bf16.msra.mxu0 0
      %952 = vmatprep.subr.bf16.mxu0 0
      %953 = vmatpush2.bf16.msra.mxu0 0
      %954 = vmatprep.subr.bf16.mxu0 0
      %955 = vmatpush2.bf16.msra.mxu0 0
      %956 = vmatprep.subr.bf16.mxu0 0
      %957 = vmatpush2.bf16.msra.mxu0 0
      %958 = vmatprep.subr.bf16.mxu0 0
      %959 = vmatpush2.bf16.msra.mxu0 0
      %960 = vmatprep.subr.bf16.mxu0 0
      %961 = vmatpush2.bf16.msra.mxu0 0
      %962 = vmatprep.subr.bf16.mxu0 0
      %963 = vmatpush2.bf16.msra.mxu0 0
      %964 = vmatprep.mubr.bf16.mxu0 0
      %965 = vmatmul.mubr.bf16.gmra.mxu0 %v914
      %v966 = vpop.f32.mrf.mxu0
      %v967 = vadd.f32 0.0, %v966
      %v968 = vpop.f32.mrf.mxu0
      %v969 = vpop.f32.mrf.mxu0
      %v970 = vadd.f32 0.0, %v969
      %v971 = vpop.f32.mrf.mxu0
      %972 = vmatprep.mubr.bf16.mxu0 0
      %973 = vmatmul.mubr.bf16.gmra.mxu0 %v917
      %v974 = vpop.f32.mrf.mxu0
      %v975 = vadd.f32 0.0, %v974
      %v976 = vpop.f32.mrf.mxu0
      %v977 = vpop.f32.mrf.mxu0
      %v978 = vadd.f32 0.0, %v977
      %v979 = vpop.f32.mrf.mxu0
      %980 = vmatprep.mubr.bf16.mxu0 0
      %981 = vmatmul.mubr.bf16.gmra.mxu0 %v920
      %v982 = vpop.f32.mrf.mxu0
      %v983 = vadd.f32 0.0, %v982
      %v984 = vpop.f32.mrf.mxu0
      %v985 = vpop.f32.mrf.mxu0
      %v986 = vadd.f32 0.0, %v985
      %v987 = vpop.f32.mrf.mxu0
      %988 = vmatprep.mubr.bf16.mxu0 0
      %989 = vmatmul.mubr.bf16.gmra.mxu0 %v923
      %v990 = vpop.f32.mrf.mxu0
      %v991 = vadd.f32 0.0, %v990
      %v992 = vpop.f32.mrf.mxu0
      %v993 = vpop.f32.mrf.mxu0
      %v994 = vadd.f32 0.0, %v993
      %v995 = vpop.f32.mrf.mxu0
      %996 = vmatprep.mubr.bf16.mxu0 0
      %997 = vmatmul.mubr.bf16.gmra.mxu0 %v926
      %v998 = vpop.f32.mrf.mxu0
      %v999 = vadd.f32 0.0, %v998
      %v1000 = vpop.f32.mrf.mxu0
      %v1001 = vpop.f32.mrf.mxu0
      %v1002 = vpop.f32.mrf.mxu0
      %1003 = vdwg.mxu0
      %1004 = vrot.lane.b32.xlu0 %v641, 124
      %v1005 = vpop.permute.xlu0 %1004
      %1006 = vrot.lane.b32.xlu0 %v642, 124
      %v1007 = vpop.permute.xlu0 %1006
      %1008 = vrot.lane.b32.xlu0 %v643, 124
      %v1009 = vpop.permute.xlu0 %1008
      %1010 = vrot.lane.b32.xlu0 %v644, 124
      %v1011 = vpop.permute.xlu0 %1010
      %1012 = vrot.lane.b32.xlu0 %v645, 124
      %v1013 = vpop.permute.xlu0 %1012
      %v1015 = vsel %vm800, %v1005, 0
      %v1018 = vsel %vm800, %v1007, 0
      %v1021 = vsel %vm800, %v1009, 0
      %v1024 = vsel %vm800, %v1011, 0
      %v1027 = vsel %vm800, %v1013, 0
      %v1030 = vsel %vm816, %v749, 0
      %1032 = vmatprep.subr.bf16.mxu0 0
      %1033 = vmatpush1.bf16.msra.mxu0 0
      %1034 = vmatprep.subr.bf16.mxu0 0
      %1035 = vmatpush1.bf16.msra.mxu0 0
      %1036 = vmatprep.subr.bf16.mxu0 0
      %1037 = vmatpush1.bf16.msra.mxu0 0
      %1038 = vmatprep.subr.bf16.mxu0 0
      %1039 = vmatpush1.bf16.msra.mxu0 0
      %1040 = vmatprep.subr.bf16.mxu0 0
      %1041 = vmatpush1.bf16.msra.mxu0 0
      %1042 = vmatprep.subr.bf16.mxu0 0
      %1043 = vmatpush1.bf16.msra.mxu0 0
      %1044 = vmatprep.subr.bf16.mxu0 0
      %1045 = vmatpush1.bf16.msra.mxu0 0
      %1046 = vmatprep.subr.bf16.mxu0 0
      %1047 = vmatpush1.bf16.msra.mxu0 %v1030
      %1048 = vmatprep.subr.bf16.mxu0 0
      %1049 = vmatpush2.bf16.msra.mxu0 0
      %1050 = vmatprep.subr.bf16.mxu0 0
      %1051 = vmatpush2.bf16.msra.mxu0 0
      %1052 = vmatprep.subr.bf16.mxu0 0
      %1053 = vmatpush2.bf16.msra.mxu0 0
      %1054 = vmatprep.subr.bf16.mxu0 0
      %1055 = vmatpush2.bf16.msra.mxu0 0
      %1056 = vmatprep.subr.bf16.mxu0 0
      %1057 = vmatpush2.bf16.msra.mxu0 0
      %1058 = vmatprep.subr.bf16.mxu0 0
      %1059 = vmatpush2.bf16.msra.mxu0 0
      %1060 = vmatprep.subr.bf16.mxu0 0
      %1061 = vmatpush2.bf16.msra.mxu0 0
      %1062 = vmatprep.subr.bf16.mxu0 0
      %1063 = vmatpush2.bf16.msra.mxu0 0
      %1064 = vmatprep.mubr.bf16.mxu0 0
      %1065 = vmatmul.mubr.bf16.gmra.mxu0 %v1015
      %v1066 = vpop.f32.mrf.mxu0
      %v1067 = vadd.f32 %v967, %v1066
      %v1068 = vpop.f32.mrf.mxu0
      %v1069 = vpop.f32.mrf.mxu0
      %v1070 = vadd.f32 %v970, %v1069
      %v1071 = vpop.f32.mrf.mxu0
      %1072 = vmatprep.mubr.bf16.mxu0 0
      %1073 = vmatmul.mubr.bf16.gmra.mxu0 %v1018
      %v1074 = vpop.f32.mrf.mxu0
      %v1075 = vadd.f32 %v975, %v1074
      %v1076 = vpop.f32.mrf.mxu0
      %v1077 = vpop.f32.mrf.mxu0
      %v1078 = vadd.f32 %v978, %v1077
      %v1079 = vpop.f32.mrf.mxu0
      %1080 = vmatprep.mubr.bf16.mxu0 0
      %1081 = vmatmul.mubr.bf16.gmra.mxu0 %v1021
      %v1082 = vpop.f32.mrf.mxu0
      %v1083 = vadd.f32 %v983, %v1082
      %v1084 = vpop.f32.mrf.mxu0
      %v1085 = vpop.f32.mrf.mxu0
      %v1086 = vadd.f32 %v986, %v1085
      %v1087 = vpop.f32.mrf.mxu0
      %1088 = vmatprep.mubr.bf16.mxu0 0
      %1089 = vmatmul.mubr.bf16.gmra.mxu0 %v1024
      %v1090 = vpop.f32.mrf.mxu0
      %v1091 = vadd.f32 %v991, %v1090
      %v1092 = vpop.f32.mrf.mxu0
      %v1093 = vpop.f32.mrf.mxu0
      %v1094 = vadd.f32 %v994, %v1093
      %v1095 = vpop.f32.mrf.mxu0
      %1096 = vmatprep.mubr.bf16.mxu0 0
      %1097 = vmatmul.mubr.bf16.gmra.mxu0 %v1027
      %v1098 = vpop.f32.mrf.mxu0
      %v1099 = vadd.f32 %v999, %v1098
      %v1100 = vpop.f32.mrf.mxu0
      %v1101 = vpop.f32.mrf.mxu0
      %v1102 = vpop.f32.mrf.mxu0
      %1103 = vdwg.mxu0
      %v1104 = vld [vmem:[%s546] sm:$0xf]
      %v1105 = vld [vmem:[%s546 + $0x4] sm:$0xf]
      %v1106 = vld [vmem:[%s546 + $0x8] sm:$0xf]
      %v1107 = vld [vmem:[%s546 + $0xc] sm:$0xf]
      %v1108 = vld [vmem:[%s546 + $0x10] sm:$0xf]
      %v1109 = vld [vmem:[%s546 + $0x14] sm:$0xf]
      %v1110 = vld [vmem:[%s546 + $0x18] sm:$0xf]
      %v1111 = vld [vmem:[%s546 + $0x1c] sm:$0xf]
      %v1112 = vld [vmem:[%s546 + $0x20] sm:$0xf]
      %v1113 = vld [vmem:[%s546 + $0x24] sm:$0xf]
      %v1114 = vld [vmem:[%s546 + $0x28] sm:$0x1]
      %s1115 = scalar_lea.vmem %s569, 8
      %v1116 = vld [vmem:[%s1115] sm:$0xf]
      %v1117 = vld [vmem:[%s1115 + $0x4] sm:$0xf]
      %v1127 = vunpack.c.l.b16 %v1104
      %v1128 = vunpack.c.l.b16 %v1105
      %v1129 = vunpack.c.l.b16 %v1106
      %v1130 = vunpack.c.l.b16 %v1107
      %v1131 = vunpack.c.l.b16 %v1108
      %v1132 = vunpack.c.l.b16 %v1109
      %v1133 = vunpack.c.l.b16 %v1110
      %v1134 = vunpack.c.l.b16 %v1111
      %v1135 = vunpack.c.l.b16 %v1112
      %v1136 = vpack.c.b16 %v1128, %v1127
      %v1137 = vpack.c.b16 %v1130, %v1129
      %v1138 = vpack.c.b16 %v1132, %v1131
      %v1139 = vpack.c.b16 %v1134, %v1133
      %v1140 = vpack.c.b16 %v1135, %v1135
      %v1143 = vunpack.c.l.b16 %v1116
      %v1144 = vunpack.c.l.b16 %v1117
      %v1145 = vpack.c.b16 %v1144, %v1143
      %v1148 = vsel %vm652, %v1136, 0
      %v1151 = vsel %vm652, %v1137, 0
      %v1154 = vsel %vm652, %v1138, 0
      %v1157 = vsel %vm652, %v1139, 0
      %v1160 = vsel %vm652, %v1140, 0
      %1162 = vmatprep.subr.bf16.mxu0 0
      %1163 = vmatpush1.bf16.msra.mxu0 0
      %1164 = vmatprep.subr.bf16.mxu0 0
      %1165 = vmatpush1.bf16.msra.mxu0 0
      %1166 = vmatprep.subr.bf16.mxu0 0
      %1167 = vmatpush1.bf16.msra.mxu0 0
      %1168 = vmatprep.subr.bf16.mxu0 0
      %1169 = vmatpush1.bf16.msra.mxu0 0
      %1170 = vmatprep.subr.bf16.mxu0 0
      %1171 = vmatpush1.bf16.msra.mxu0 0
      %1172 = vmatprep.subr.bf16.mxu0 0
      %1173 = vmatpush1.bf16.msra.mxu0 0
      %1174 = vmatprep.subr.bf16.mxu0 0
      %1175 = vmatpush1.bf16.msra.mxu0 0
      %1176 = vmatprep.subr.bf16.mxu0 0
      %1177 = vmatpush1.bf16.msra.mxu0 %v1145
      %1178 = vmatprep.subr.bf16.mxu0 0
      %1179 = vmatpush2.bf16.msra.mxu0 0
      %1180 = vmatprep.subr.bf16.mxu0 0
      %1181 = vmatpush2.bf16.msra.mxu0 0
      %1182 = vmatprep.subr.bf16.mxu0 0
      %1183 = vmatpush2.bf16.msra.mxu0 0
      %1184 = vmatprep.subr.bf16.mxu0 0
      %1185 = vmatpush2.bf16.msra.mxu0 0
      %1186 = vmatprep.subr.bf16.mxu0 0
      %1187 = vmatpush2.bf16.msra.mxu0 0
      %1188 = vmatprep.subr.bf16.mxu0 0
      %1189 = vmatpush2.bf16.msra.mxu0 0
      %1190 = vmatprep.subr.bf16.mxu0 0
      %1191 = vmatpush2.bf16.msra.mxu0 0
      %1192 = vmatprep.subr.bf16.mxu0 0
      %1193 = vmatpush2.bf16.msra.mxu0 0
      %1194 = vmatprep.mubr.bf16.mxu0 0
      %1195 = vmatmul.mubr.bf16.gmra.mxu0 %v1148
      %v1196 = vpop.f32.mrf.mxu0
      %v1197 = vadd.f32 0.0, %v1196
      %v1198 = vpop.f32.mrf.mxu0
      %v1199 = vpop.f32.mrf.mxu0
      %v1200 = vadd.f32 0.0, %v1199
      %v1201 = vpop.f32.mrf.mxu0
      %1202 = vmatprep.mubr.bf16.mxu0 0
      %1203 = vmatmul.mubr.bf16.gmra.mxu0 %v1151
      %v1204 = vpop.f32.mrf.mxu0
      %v1205 = vadd.f32 0.0, %v1204
      %v1206 = vpop.f32.mrf.mxu0
      %v1207 = vpop.f32.mrf.mxu0
      %v1208 = vadd.f32 0.0, %v1207
      %v1209 = vpop.f32.mrf.mxu0
      %1210 = vmatprep.mubr.bf16.mxu0 0
      %1211 = vmatmul.mubr.bf16.gmra.mxu0 %v1154
      %v1212 = vpop.f32.mrf.mxu0
      %v1213 = vadd.f32 0.0, %v1212
      %v1214 = vpop.f32.mrf.mxu0
      %v1215 = vpop.f32.mrf.mxu0
      %v1216 = vadd.f32 0.0, %v1215
      %v1217 = vpop.f32.mrf.mxu0
      %1218 = vmatprep.mubr.bf16.mxu0 0
      %1219 = vmatmul.mubr.bf16.gmra.mxu0 %v1157
      %v1220 = vpop.f32.mrf.mxu0
      %v1221 = vadd.f32 0.0, %v1220
      %v1222 = vpop.f32.mrf.mxu0
      %v1223 = vpop.f32.mrf.mxu0
      %v1224 = vadd.f32 0.0, %v1223
      %v1225 = vpop.f32.mrf.mxu0
      %1226 = vmatprep.mubr.bf16.mxu0 0
      %1227 = vmatmul.mubr.bf16.gmra.mxu0 %v1160
      %v1228 = vpop.f32.mrf.mxu0
      %v1229 = vadd.f32 0.0, %v1228
      %v1230 = vpop.f32.mrf.mxu0
      %v1231 = vpop.f32.mrf.mxu0
      %v1232 = vpop.f32.mrf.mxu0
      %1233 = vdwg.mxu0
      %v1234 = vadd.f32 %v892, %v1197
      %v1235 = vadd.f32 %v893, %v1200
      %v1236 = vadd.f32 %v894, %v1205
      %v1237 = vadd.f32 %v895, %v1208
      %v1238 = vadd.f32 %v896, %v1213
      %v1239 = vadd.f32 %v897, %v1216
      %v1240 = vadd.f32 %v898, %v1221
      %v1241 = vadd.f32 %v899, %v1224
      %v1242 = vadd.f32 %v900, %v1229
      %s1243 = scalar_lea.vmem %s573, 4
      %v1244 = vld [vmem:[%s1243] sm:$0xf]
      %1245 = vrot.lane.b32.xlu0 %v1136, 124
      %v1246 = vpop.permute.xlu0 %1245
      %1247 = vrot.lane.b32.xlu0 %v1137, 124
      %v1248 = vpop.permute.xlu0 %1247
      %1249 = vrot.lane.b32.xlu0 %v1138, 124
      %v1250 = vpop.permute.xlu0 %1249
      %1251 = vrot.lane.b32.xlu0 %v1139, 124
      %v1252 = vpop.permute.xlu0 %1251
      %1253 = vrot.lane.b32.xlu0 %v1140, 124
      %v1254 = vpop.permute.xlu0 %1253
      %v1256 = vsel %vm800, %v1246, 0
      %v1259 = vsel %vm800, %v1248, 0
      %v1262 = vsel %vm800, %v1250, 0
      %v1265 = vsel %vm800, %v1252, 0
      %v1268 = vsel %vm800, %v1254, 0
      %v1271 = vsel %vm816, %v1244, 0
      %1273 = vmatprep.subr.bf16.mxu0 0
      %1274 = vmatpush1.bf16.msra.mxu0 0
      %1275 = vmatprep.subr.bf16.mxu0 0
      %1276 = vmatpush1.bf16.msra.mxu0 0
      %1277 = vmatprep.subr.bf16.mxu0 0
      %1278 = vmatpush1.bf16.msra.mxu0 0
      %1279 = vmatprep.subr.bf16.mxu0 0
      %1280 = vmatpush1.bf16.msra.mxu0 0
      %1281 = vmatprep.subr.bf16.mxu0 0
      %1282 = vmatpush1.bf16.msra.mxu0 0
      %1283 = vmatprep.subr.bf16.mxu0 0
      %1284 = vmatpush1.bf16.msra.mxu0 0
      %1285 = vmatprep.subr.bf16.mxu0 0
      %1286 = vmatpush1.bf16.msra.mxu0 0
      %1287 = vmatprep.subr.bf16.mxu0 0
      %1288 = vmatpush1.bf16.msra.mxu0 %v1271
      %1289 = vmatprep.subr.bf16.mxu0 0
      %1290 = vmatpush2.bf16.msra.mxu0 0
      %1291 = vmatprep.subr.bf16.mxu0 0
      %1292 = vmatpush2.bf16.msra.mxu0 0
      %1293 = vmatprep.subr.bf16.mxu0 0
      %1294 = vmatpush2.bf16.msra.mxu0 0
      %1295 = vmatprep.subr.bf16.mxu0 0
      %1296 = vmatpush2.bf16.msra.mxu0 0
      %1297 = vmatprep.subr.bf16.mxu0 0
      %1298 = vmatpush2.bf16.msra.mxu0 0
      %1299 = vmatprep.subr.bf16.mxu0 0
      %1300 = vmatpush2.bf16.msra.mxu0 0
      %1301 = vmatprep.subr.bf16.mxu0 0
      %1302 = vmatpush2.bf16.msra.mxu0 0
      %1303 = vmatprep.subr.bf16.mxu0 0
      %1304 = vmatpush2.bf16.msra.mxu0 0
      %1305 = vmatprep.mubr.bf16.mxu0 0
      %1306 = vmatmul.mubr.bf16.gmra.mxu0 %v1256
      %v1307 = vpop.f32.mrf.mxu0
      %v1308 = vadd.f32 0.0, %v1307
      %v1309 = vpop.f32.mrf.mxu0
      %v1310 = vpop.f32.mrf.mxu0
      %v1311 = vadd.f32 0.0, %v1310
      %v1312 = vpop.f32.mrf.mxu0
      %1313 = vmatprep.mubr.bf16.mxu0 0
      %1314 = vmatmul.mubr.bf16.gmra.mxu0 %v1259
      %v1315 = vpop.f32.mrf.mxu0
      %v1316 = vadd.f32 0.0, %v1315
      %v1317 = vpop.f32.mrf.mxu0
      %v1318 = vpop.f32.mrf.mxu0
      %v1319 = vadd.f32 0.0, %v1318
      %v1320 = vpop.f32.mrf.mxu0
      %1321 = vmatprep.mubr.bf16.mxu0 0
      %1322 = vmatmul.mubr.bf16.gmra.mxu0 %v1262
      %v1323 = vpop.f32.mrf.mxu0
      %v1324 = vadd.f32 0.0, %v1323
      %v1325 = vpop.f32.mrf.mxu0
      %v1326 = vpop.f32.mrf.mxu0
      %v1327 = vadd.f32 0.0, %v1326
      %v1328 = vpop.f32.mrf.mxu0
      %1329 = vmatprep.mubr.bf16.mxu0 0
      %1330 = vmatmul.mubr.bf16.gmra.mxu0 %v1265
      %v1331 = vpop.f32.mrf.mxu0
      %v1332 = vadd.f32 0.0, %v1331
      %v1333 = vpop.f32.mrf.mxu0
      %v1334 = vpop.f32.mrf.mxu0
      %v1335 = vadd.f32 0.0, %v1334
      %v1336 = vpop.f32.mrf.mxu0
      %1337 = vmatprep.mubr.bf16.mxu0 0
      %1338 = vmatmul.mubr.bf16.gmra.mxu0 %v1268
      %v1339 = vpop.f32.mrf.mxu0
      %v1340 = vadd.f32 0.0, %v1339
      %v1341 = vpop.f32.mrf.mxu0
      %v1342 = vpop.f32.mrf.mxu0
      %v1343 = vpop.f32.mrf.mxu0
      %1344 = vdwg.mxu0
      %v1345 = vadd.f32 %v1067, %v1308
      %v1346 = vadd.f32 %v1070, %v1311
      %v1347 = vadd.f32 %v1075, %v1316
      %v1348 = vadd.f32 %v1078, %v1319
      %v1349 = vadd.f32 %v1083, %v1324
      %v1350 = vadd.f32 %v1086, %v1327
      %v1351 = vadd.f32 %v1091, %v1332
      %v1352 = vadd.f32 %v1094, %v1335
      %v1353 = vadd.f32 %v1099, %v1340
      %s1354 = scalar_lea.vmem %s577, 4
      %v1355 = vld [vmem:[%s1354] sm:$0xf]
      %v1358 = vunpack.c.l.b16 %v1113
      %v1359 = vunpack.c.l.b16 %v1114
      %v1360 = vpack.c.b16 %v1129, %v1128
      %v1361 = vpack.c.b16 %v1131, %v1130
      %v1362 = vpack.c.b16 %v1133, %v1132
      %v1363 = vpack.c.b16 %v1135, %v1134
      %v1364 = vpack.c.b16 %v1359, %v1358
      %v1366 = vshrl.u32 %v1360, 16
      %v1368 = vshll.u32 %v1360, 16
      %v1370 = vrot.slane %v1368, 1
      %v1371 = vor.u32 %v1366, %v1370
      %v1373 = vshll.u32 %v1361, 16
      %v1375 = vrot.slane %v1373, 1
      %v1376 = vsel %vm760, %v1371, %v1375
      %v1377 = vshrl.u32 %v1361, 16
      %v1379 = vor.u32 %v1377, %v1375
      %v1381 = vshll.u32 %v1362, 16
      %v1383 = vrot.slane %v1381, 1
      %v1384 = vsel %vm760, %v1379, %v1383
      %v1385 = vshrl.u32 %v1362, 16
      %v1387 = vor.u32 %v1385, %v1383
      %v1389 = vshll.u32 %v1363, 16
      %v1391 = vrot.slane %v1389, 1
      %v1392 = vsel %vm760, %v1387, %v1391
      %v1393 = vshrl.u32 %v1363, 16
      %v1395 = vor.u32 %v1393, %v1391
      %v1397 = vshll.u32 %v1364, 16
      %v1399 = vrot.slane %v1397, 1
      %v1400 = vsel %vm760, %v1395, %v1399
      %v1401 = vshrl.u32 %v1364, 16
      %v1403 = vor.u32 %v1401, %v1399
      %v1405 = vsel %vm800, %v1376, 0
      %v1408 = vsel %vm800, %v1384, 0
      %v1411 = vsel %vm800, %v1392, 0
      %v1414 = vsel %vm800, %v1400, 0
      %v1417 = vsel %vm800, %v1403, 0
      %v1420 = vsel %vm816, %v1355, 0
      %1422 = vmatprep.subr.bf16.mxu0 0
      %1423 = vmatpush1.bf16.msra.mxu0 0
      %1424 = vmatprep.subr.bf16.mxu0 0
      %1425 = vmatpush1.bf16.msra.mxu0 0
      %1426 = vmatprep.subr.bf16.mxu0 0
      %1427 = vmatpush1.bf16.msra.mxu0 0
      %1428 = vmatprep.subr.bf16.mxu0 0
      %1429 = vmatpush1.bf16.msra.mxu0 0
      %1430 = vmatprep.subr.bf16.mxu0 0
      %1431 = vmatpush1.bf16.msra.mxu0 0
      %1432 = vmatprep.subr.bf16.mxu0 0
      %1433 = vmatpush1.bf16.msra.mxu0 0
      %1434 = vmatprep.subr.bf16.mxu0 0
      %1435 = vmatpush1.bf16.msra.mxu0 0
      %1436 = vmatprep.subr.bf16.mxu0 0
      %1437 = vmatpush1.bf16.msra.mxu0 %v1420
      %1438 = vmatprep.subr.bf16.mxu0 0
      %1439 = vmatpush2.bf16.msra.mxu0 0
      %1440 = vmatprep.subr.bf16.mxu0 0
      %1441 = vmatpush2.bf16.msra.mxu0 0
      %1442 = vmatprep.subr.bf16.mxu0 0
      %1443 = vmatpush2.bf16.msra.mxu0 0
      %1444 = vmatprep.subr.bf16.mxu0 0
      %1445 = vmatpush2.bf16.msra.mxu0 0
      %1446 = vmatprep.subr.bf16.mxu0 0
      %1447 = vmatpush2.bf16.msra.mxu0 0
      %1448 = vmatprep.subr.bf16.mxu0 0
      %1449 = vmatpush2.bf16.msra.mxu0 0
      %1450 = vmatprep.subr.bf16.mxu0 0
      %1451 = vmatpush2.bf16.msra.mxu0 0
      %1452 = vmatprep.subr.bf16.mxu0 0
      %1453 = vmatpush2.bf16.msra.mxu0 0
      %1454 = vmatprep.mubr.bf16.mxu0 0
      %1455 = vmatmul.mubr.bf16.gmra.mxu0 %v1405
      %v1456 = vpop.f32.mrf.mxu0
      %v1457 = vadd.f32 0.0, %v1456
      %v1458 = vpop.f32.mrf.mxu0
      %v1459 = vpop.f32.mrf.mxu0
      %v1460 = vadd.f32 0.0, %v1459
      %v1461 = vpop.f32.mrf.mxu0
      %1462 = vmatprep.mubr.bf16.mxu0 0
      %1463 = vmatmul.mubr.bf16.gmra.mxu0 %v1408
      %v1464 = vpop.f32.mrf.mxu0
      %v1465 = vadd.f32 0.0, %v1464
      %v1466 = vpop.f32.mrf.mxu0
      %v1467 = vpop.f32.mrf.mxu0
      %v1468 = vadd.f32 0.0, %v1467
      %v1469 = vpop.f32.mrf.mxu0
      %1470 = vmatprep.mubr.bf16.mxu0 0
      %1471 = vmatmul.mubr.bf16.gmra.mxu0 %v1411
      %v1472 = vpop.f32.mrf.mxu0
      %v1473 = vadd.f32 0.0, %v1472
      %v1474 = vpop.f32.mrf.mxu0
      %v1475 = vpop.f32.mrf.mxu0
      %v1476 = vadd.f32 0.0, %v1475
      %v1477 = vpop.f32.mrf.mxu0
      %1478 = vmatprep.mubr.bf16.mxu0 0
      %1479 = vmatmul.mubr.bf16.gmra.mxu0 %v1414
      %v1480 = vpop.f32.mrf.mxu0
      %v1481 = vadd.f32 0.0, %v1480
      %v1482 = vpop.f32.mrf.mxu0
      %v1483 = vpop.f32.mrf.mxu0
      %v1484 = vadd.f32 0.0, %v1483
      %v1485 = vpop.f32.mrf.mxu0
      %1486 = vmatprep.mubr.bf16.mxu0 0
      %1487 = vmatmul.mubr.bf16.gmra.mxu0 %v1417
      %v1488 = vpop.f32.mrf.mxu0
      %v1489 = vadd.f32 0.0, %v1488
      %v1490 = vpop.f32.mrf.mxu0
      %v1491 = vpop.f32.mrf.mxu0
      %v1492 = vpop.f32.mrf.mxu0
      %1493 = vdwg.mxu0
      %v1494 = vadd.f32 %v1234, %v1457
      %v1495 = vadd.f32 %v1235, %v1460
      %v1496 = vadd.f32 %v1236, %v1465
      %v1497 = vadd.f32 %v1237, %v1468
      %v1498 = vadd.f32 %v1238, %v1473
      %v1499 = vadd.f32 %v1239, %v1476
      %v1500 = vadd.f32 %v1240, %v1481
      %v1501 = vadd.f32 %v1241, %v1484
      %v1502 = vadd.f32 %v1242, %v1489
      %s1503 = scalar_lea.vmem %s581, 2
      %v1504 = vld [vmem:[%s1503] sm:$0x3]
      %1505 = vrot.lane.b32.xlu0 %v1376, 124
      %v1506 = vpop.permute.xlu0 %1505
      %1507 = vrot.lane.b32.xlu0 %v1384, 124
      %v1508 = vpop.permute.xlu0 %1507
      %1509 = vrot.lane.b32.xlu0 %v1392, 124
      %v1510 = vpop.permute.xlu0 %1509
      %1511 = vrot.lane.b32.xlu0 %v1400, 124
      %v1512 = vpop.permute.xlu0 %1511
      %1513 = vrot.lane.b32.xlu0 %v1403, 124
      %v1514 = vpop.permute.xlu0 %1513
      %v1516 = vsel %vm912, %v1506, 0
      %v1519 = vsel %vm912, %v1508, 0
      %v1522 = vsel %vm912, %v1510, 0
      %v1525 = vsel %vm912, %v1512, 0
      %v1528 = vsel %vm912, %v1514, 0
      %v1531 = vsel %vm928, %v1504, 0
      %1533 = vmatprep.subr.bf16.mxu0 0
      %1534 = vmatpush1.bf16.msra.mxu0 0
      %1535 = vmatprep.subr.bf16.mxu0 0
      %1536 = vmatpush1.bf16.msra.mxu0 0
      %1537 = vmatprep.subr.bf16.mxu0 0
      %1538 = vmatpush1.bf16.msra.mxu0 0
      %1539 = vmatprep.subr.bf16.mxu0 0
      %1540 = vmatpush1.bf16.msra.mxu0 0
      %1541 = vmatprep.subr.bf16.mxu0 0
      %1542 = vmatpush1.bf16.msra.mxu0 0
      %1543 = vmatprep.subr.bf16.mxu0 0
      %1544 = vmatpush1.bf16.msra.mxu0 0
      %1545 = vmatprep.subr.bf16.mxu0 0
      %1546 = vmatpush1.bf16.msra.mxu0 0
      %1547 = vmatprep.subr.bf16.mxu0 0
      %1548 = vmatpush1.bf16.msra.mxu0 %v1531
      %1549 = vmatprep.subr.bf16.mxu0 0
      %1550 = vmatpush2.bf16.msra.mxu0 0
      %1551 = vmatprep.subr.bf16.mxu0 0
      %1552 = vmatpush2.bf16.msra.mxu0 0
      %1553 = vmatprep.subr.bf16.mxu0 0
      %1554 = vmatpush2.bf16.msra.mxu0 0
      %1555 = vmatprep.subr.bf16.mxu0 0
      %1556 = vmatpush2.bf16.msra.mxu0 0
      %1557 = vmatprep.subr.bf16.mxu0 0
      %1558 = vmatpush2.bf16.msra.mxu0 0
      %1559 = vmatprep.subr.bf16.mxu0 0
      %1560 = vmatpush2.bf16.msra.mxu0 0
      %1561 = vmatprep.subr.bf16.mxu0 0
      %1562 = vmatpush2.bf16.msra.mxu0 0
      %1563 = vmatprep.subr.bf16.mxu0 0
      %1564 = vmatpush2.bf16.msra.mxu0 0
      %1565 = vmatprep.mubr.bf16.mxu0 0
      %1566 = vmatmul.mubr.bf16.gmra.mxu0 %v1516
      %v1567 = vpop.f32.mrf.mxu0
      %v1568 = vadd.f32 0.0, %v1567
      %v1569 = vpop.f32.mrf.mxu0
      %v1570 = vpop.f32.mrf.mxu0
      %v1571 = vadd.f32 0.0, %v1570
      %v1572 = vpop.f32.mrf.mxu0
      %1573 = vmatprep.mubr.bf16.mxu0 0
      %1574 = vmatmul.mubr.bf16.gmra.mxu0 %v1519
      %v1575 = vpop.f32.mrf.mxu0
      %v1576 = vadd.f32 0.0, %v1575
      %v1577 = vpop.f32.mrf.mxu0
      %v1578 = vpop.f32.mrf.mxu0
      %v1579 = vadd.f32 0.0, %v1578
      %v1580 = vpop.f32.mrf.mxu0
      %1581 = vmatprep.mubr.bf16.mxu0 0
      %1582 = vmatmul.mubr.bf16.gmra.mxu0 %v1522
      %v1583 = vpop.f32.mrf.mxu0
      %v1584 = vadd.f32 0.0, %v1583
      %v1585 = vpop.f32.mrf.mxu0
      %v1586 = vpop.f32.mrf.mxu0
      %v1587 = vadd.f32 0.0, %v1586
      %v1588 = vpop.f32.mrf.mxu0
      %1589 = vmatprep.mubr.bf16.mxu0 0
      %1590 = vmatmul.mubr.bf16.gmra.mxu0 %v1525
      %v1591 = vpop.f32.mrf.mxu0
      %v1592 = vadd.f32 0.0, %v1591
      %v1593 = vpop.f32.mrf.mxu0
      %v1594 = vpop.f32.mrf.mxu0
      %v1595 = vadd.f32 0.0, %v1594
      %v1596 = vpop.f32.mrf.mxu0
      %1597 = vmatprep.mubr.bf16.mxu0 0
      %1598 = vmatmul.mubr.bf16.gmra.mxu0 %v1528
      %v1599 = vpop.f32.mrf.mxu0
      %v1600 = vadd.f32 0.0, %v1599
      %v1601 = vpop.f32.mrf.mxu0
      %v1602 = vpop.f32.mrf.mxu0
      %v1603 = vpop.f32.mrf.mxu0
      %1604 = vdwg.mxu0
      %v1605 = vadd.f32 %v1345, %v1568
      %v1606 = vadd.f32 %v1346, %v1571
      %v1607 = vadd.f32 %v1347, %v1576
      %v1608 = vadd.f32 %v1348, %v1579
      %v1609 = vadd.f32 %v1349, %v1584
      %v1610 = vadd.f32 %v1350, %v1587
      %v1611 = vadd.f32 %v1351, %v1592
      %v1612 = vadd.f32 %v1352, %v1595
      %v1613 = vadd.f32 %v1353, %v1600
      %v1614 = vld [vmem:[%s563] sm:$0xf]
      %v1615 = vld [vmem:[%s563 + $0x4] sm:$0xf]
      %v1616 = vld [vmem:[%s563 + $0x8] sm:$0xf]
      %v1617 = vld [vmem:[%s563 + $0xc] sm:$0xf]
      %v1618 = vld [vmem:[%s563 + $0x10] sm:$0xf]
      %v1619 = vld [vmem:[%s563 + $0x14] sm:$0xf]
      %v1620 = vld [vmem:[%s563 + $0x18] sm:$0xf]
      %v1621 = vld [vmem:[%s563 + $0x1c] sm:$0xf]
      %v1622 = vld [vmem:[%s563 + $0x20] sm:$0xf]
      %v1623 = vld [vmem:[%s563 + $0x24] sm:$0xf]
      %v1624 = vld [vmem:[%s563 + $0x28] sm:$0x1]
      %s1625 = scalar_lea.vmem %s569, 16
      %v1626 = vld [vmem:[%s1625] sm:$0xf]
      %v1627 = vld [vmem:[%s1625 + $0x4] sm:$0xf]
      %v1637 = vunpack.c.l.b16 %v1614
      %v1638 = vunpack.c.l.b16 %v1615
      %v1639 = vunpack.c.l.b16 %v1616
      %v1640 = vunpack.c.l.b16 %v1617
      %v1641 = vunpack.c.l.b16 %v1618
      %v1642 = vunpack.c.l.b16 %v1619
      %v1643 = vunpack.c.l.b16 %v1620
      %v1644 = vunpack.c.l.b16 %v1621
      %v1645 = vunpack.c.l.b16 %v1622
      %v1646 = vpack.c.b16 %v1638, %v1637
      %v1647 = vpack.c.b16 %v1640, %v1639
      %v1648 = vpack.c.b16 %v1642, %v1641
      %v1649 = vpack.c.b16 %v1644, %v1643
      %v1650 = vpack.c.b16 %v1645, %v1645
      %v1653 = vunpack.c.l.b16 %v1626
      %v1654 = vunpack.c.l.b16 %v1627
      %v1655 = vpack.c.b16 %v1654, %v1653
      %v1658 = vsel %vm652, %v1646, 0
      %v1661 = vsel %vm652, %v1647, 0
      %v1664 = vsel %vm652, %v1648, 0
      %v1667 = vsel %vm652, %v1649, 0
      %v1670 = vsel %vm652, %v1650, 0
      %1672 = vmatprep.subr.bf16.mxu0 0
      %1673 = vmatpush1.bf16.msra.mxu0 0
      %1674 = vmatprep.subr.bf16.mxu0 0
      %1675 = vmatpush1.bf16.msra.mxu0 0
      %1676 = vmatprep.subr.bf16.mxu0 0
      %1677 = vmatpush1.bf16.msra.mxu0 0
      %1678 = vmatprep.subr.bf16.mxu0 0
      %1679 = vmatpush1.bf16.msra.mxu0 0
      %1680 = vmatprep.subr.bf16.mxu0 0
      %1681 = vmatpush1.bf16.msra.mxu0 0
      %1682 = vmatprep.subr.bf16.mxu0 0
      %1683 = vmatpush1.bf16.msra.mxu0 0
      %1684 = vmatprep.subr.bf16.mxu0 0
      %1685 = vmatpush1.bf16.msra.mxu0 0
      %1686 = vmatprep.subr.bf16.mxu0 0
      %1687 = vmatpush1.bf16.msra.mxu0 %v1655
      %1688 = vmatprep.subr.bf16.mxu0 0
      %1689 = vmatpush2.bf16.msra.mxu0 0
      %1690 = vmatprep.subr.bf16.mxu0 0
      %1691 = vmatpush2.bf16.msra.mxu0 0
      %1692 = vmatprep.subr.bf16.mxu0 0
      %1693 = vmatpush2.bf16.msra.mxu0 0
      %1694 = vmatprep.subr.bf16.mxu0 0
      %1695 = vmatpush2.bf16.msra.mxu0 0
      %1696 = vmatprep.subr.bf16.mxu0 0
      %1697 = vmatpush2.bf16.msra.mxu0 0
      %1698 = vmatprep.subr.bf16.mxu0 0
      %1699 = vmatpush2.bf16.msra.mxu0 0
      %1700 = vmatprep.subr.bf16.mxu0 0
      %1701 = vmatpush2.bf16.msra.mxu0 0
      %1702 = vmatprep.subr.bf16.mxu0 0
      %1703 = vmatpush2.bf16.msra.mxu0 0
      %1704 = vmatprep.mubr.bf16.mxu0 0
      %1705 = vmatmul.mubr.bf16.gmra.mxu0 %v1658
      %v1706 = vpop.f32.mrf.mxu0
      %v1707 = vadd.f32 0.0, %v1706
      %v1708 = vpop.f32.mrf.mxu0
      %v1709 = vpop.f32.mrf.mxu0
      %v1710 = vadd.f32 0.0, %v1709
      %v1711 = vpop.f32.mrf.mxu0
      %1712 = vmatprep.mubr.bf16.mxu0 0
      %1713 = vmatmul.mubr.bf16.gmra.mxu0 %v1661
      %v1714 = vpop.f32.mrf.mxu0
      %v1715 = vadd.f32 0.0, %v1714
      %v1716 = vpop.f32.mrf.mxu0
      %v1717 = vpop.f32.mrf.mxu0
      %v1718 = vadd.f32 0.0, %v1717
      %v1719 = vpop.f32.mrf.mxu0
      %1720 = vmatprep.mubr.bf16.mxu0 0
      %1721 = vmatmul.mubr.bf16.gmra.mxu0 %v1664
      %v1722 = vpop.f32.mrf.mxu0
      %v1723 = vadd.f32 0.0, %v1722
      %v1724 = vpop.f32.mrf.mxu0
      %v1725 = vpop.f32.mrf.mxu0
      %v1726 = vadd.f32 0.0, %v1725
      %v1727 = vpop.f32.mrf.mxu0
      %1728 = vmatprep.mubr.bf16.mxu0 0
      %1729 = vmatmul.mubr.bf16.gmra.mxu0 %v1667
      %v1730 = vpop.f32.mrf.mxu0
      %v1731 = vadd.f32 0.0, %v1730
      %v1732 = vpop.f32.mrf.mxu0
      %v1733 = vpop.f32.mrf.mxu0
      %v1734 = vadd.f32 0.0, %v1733
      %v1735 = vpop.f32.mrf.mxu0
      %1736 = vmatprep.mubr.bf16.mxu0 0
      %1737 = vmatmul.mubr.bf16.gmra.mxu0 %v1670
      %v1738 = vpop.f32.mrf.mxu0
      %v1739 = vadd.f32 0.0, %v1738
      %v1740 = vpop.f32.mrf.mxu0
      %v1741 = vpop.f32.mrf.mxu0
      %v1742 = vpop.f32.mrf.mxu0
      %1743 = vdwg.mxu0
      %v1744 = vadd.f32 %v1494, %v1707
      %v1745 = vadd.f32 %v1495, %v1710
      %v1746 = vadd.f32 %v1496, %v1715
      %v1747 = vadd.f32 %v1497, %v1718
      %v1748 = vadd.f32 %v1498, %v1723
      %v1749 = vadd.f32 %v1499, %v1726
      %v1750 = vadd.f32 %v1500, %v1731
      %v1751 = vadd.f32 %v1501, %v1734
      %v1752 = vadd.f32 %v1502, %v1739
      %s1753 = scalar_lea.vmem %s573, 8
      %v1754 = vld [vmem:[%s1753] sm:$0xf]
      %1755 = vrot.lane.b32.xlu0 %v1646, 124
      %v1756 = vpop.permute.xlu0 %1755
      %1757 = vrot.lane.b32.xlu0 %v1647, 124
      %v1758 = vpop.permute.xlu0 %1757
      %1759 = vrot.lane.b32.xlu0 %v1648, 124
      %v1760 = vpop.permute.xlu0 %1759
      %1761 = vrot.lane.b32.xlu0 %v1649, 124
      %v1762 = vpop.permute.xlu0 %1761
      %1763 = vrot.lane.b32.xlu0 %v1650, 124
      %v1764 = vpop.permute.xlu0 %1763
      %v1766 = vsel %vm800, %v1756, 0
      %v1769 = vsel %vm800, %v1758, 0
      %v1772 = vsel %vm800, %v1760, 0
      %v1775 = vsel %vm800, %v1762, 0
      %v1778 = vsel %vm800, %v1764, 0
      %v1781 = vsel %vm816, %v1754, 0
      %1783 = vmatprep.subr.bf16.mxu0 0
      %1784 = vmatpush1.bf16.msra.mxu0 0
      %1785 = vmatprep.subr.bf16.mxu0 0
      %1786 = vmatpush1.bf16.msra.mxu0 0
      %1787 = vmatprep.subr.bf16.mxu0 0
      %1788 = vmatpush1.bf16.msra.mxu0 0
      %1789 = vmatprep.subr.bf16.mxu0 0
      %1790 = vmatpush1.bf16.msra.mxu0 0
      %1791 = vmatprep.subr.bf16.mxu0 0
      %1792 = vmatpush1.bf16.msra.mxu0 0
      %1793 = vmatprep.subr.bf16.mxu0 0
      %1794 = vmatpush1.bf16.msra.mxu0 0
      %1795 = vmatprep.subr.bf16.mxu0 0
      %1796 = vmatpush1.bf16.msra.mxu0 0
      %1797 = vmatprep.subr.bf16.mxu0 0
      %1798 = vmatpush1.bf16.msra.mxu0 %v1781
      %1799 = vmatprep.subr.bf16.mxu0 0
      %1800 = vmatpush2.bf16.msra.mxu0 0
      %1801 = vmatprep.subr.bf16.mxu0 0
      %1802 = vmatpush2.bf16.msra.mxu0 0
      %1803 = vmatprep.subr.bf16.mxu0 0
      %1804 = vmatpush2.bf16.msra.mxu0 0
      %1805 = vmatprep.subr.bf16.mxu0 0
      %1806 = vmatpush2.bf16.msra.mxu0 0
      %1807 = vmatprep.subr.bf16.mxu0 0
      %1808 = vmatpush2.bf16.msra.mxu0 0
      %1809 = vmatprep.subr.bf16.mxu0 0
      %1810 = vmatpush2.bf16.msra.mxu0 0
      %1811 = vmatprep.subr.bf16.mxu0 0
      %1812 = vmatpush2.bf16.msra.mxu0 0
      %1813 = vmatprep.subr.bf16.mxu0 0
      %1814 = vmatpush2.bf16.msra.mxu0 0
      %1815 = vmatprep.mubr.bf16.mxu0 0
      %1816 = vmatmul.mubr.bf16.gmra.mxu0 %v1766
      %v1817 = vpop.f32.mrf.mxu0
      %v1818 = vadd.f32 0.0, %v1817
      %v1819 = vpop.f32.mrf.mxu0
      %v1820 = vpop.f32.mrf.mxu0
      %v1821 = vadd.f32 0.0, %v1820
      %v1822 = vpop.f32.mrf.mxu0
      %1823 = vmatprep.mubr.bf16.mxu0 0
      %1824 = vmatmul.mubr.bf16.gmra.mxu0 %v1769
      %v1825 = vpop.f32.mrf.mxu0
      %v1826 = vadd.f32 0.0, %v1825
      %v1827 = vpop.f32.mrf.mxu0
      %v1828 = vpop.f32.mrf.mxu0
      %v1829 = vadd.f32 0.0, %v1828
      %v1830 = vpop.f32.mrf.mxu0
      %1831 = vmatprep.mubr.bf16.mxu0 0
      %1832 = vmatmul.mubr.bf16.gmra.mxu0 %v1772
      %v1833 = vpop.f32.mrf.mxu0
      %v1834 = vadd.f32 0.0, %v1833
      %v1835 = vpop.f32.mrf.mxu0
      %v1836 = vpop.f32.mrf.mxu0
      %v1837 = vadd.f32 0.0, %v1836
      %v1838 = vpop.f32.mrf.mxu0
      %1839 = vmatprep.mubr.bf16.mxu0 0
      %1840 = vmatmul.mubr.bf16.gmra.mxu0 %v1775
      %v1841 = vpop.f32.mrf.mxu0
      %v1842 = vadd.f32 0.0, %v1841
      %v1843 = vpop.f32.mrf.mxu0
      %v1844 = vpop.f32.mrf.mxu0
      %v1845 = vadd.f32 0.0, %v1844
      %v1846 = vpop.f32.mrf.mxu0
      %1847 = vmatprep.mubr.bf16.mxu0 0
      %1848 = vmatmul.mubr.bf16.gmra.mxu0 %v1778
      %v1849 = vpop.f32.mrf.mxu0
      %v1850 = vadd.f32 0.0, %v1849
      %v1851 = vpop.f32.mrf.mxu0
      %v1852 = vpop.f32.mrf.mxu0
      %v1853 = vpop.f32.mrf.mxu0
      %1854 = vdwg.mxu0
      %v1855 = vadd.f32 %v1605, %v1818
      %v1856 = vadd.f32 %v1606, %v1821
      %v1857 = vadd.f32 %v1607, %v1826
      %v1858 = vadd.f32 %v1608, %v1829
      %v1859 = vadd.f32 %v1609, %v1834
      %v1860 = vadd.f32 %v1610, %v1837
      %v1861 = vadd.f32 %v1611, %v1842
      %v1862 = vadd.f32 %v1612, %v1845
      %v1863 = vadd.f32 %v1613, %v1850
      %s1864 = scalar_lea.vmem %s577, 8
      %v1865 = vld [vmem:[%s1864] sm:$0xf]
      %v1868 = vunpack.c.l.b16 %v1623
      %v1869 = vunpack.c.l.b16 %v1624
      %v1870 = vpack.c.b16 %v1639, %v1638
      %v1871 = vpack.c.b16 %v1641, %v1640
      %v1872 = vpack.c.b16 %v1643, %v1642
      %v1873 = vpack.c.b16 %v1645, %v1644
      %v1874 = vpack.c.b16 %v1869, %v1868
      %v1876 = vshrl.u32 %v1870, 16
      %v1878 = vshll.u32 %v1870, 16
      %v1880 = vrot.slane %v1878, 1
      %v1881 = vor.u32 %v1876, %v1880
      %v1883 = vshll.u32 %v1871, 16
      %v1885 = vrot.slane %v1883, 1
      %v1886 = vsel %vm760, %v1881, %v1885
      %v1887 = vshrl.u32 %v1871, 16
      %v1889 = vor.u32 %v1887, %v1885
      %v1891 = vshll.u32 %v1872, 16
      %v1893 = vrot.slane %v1891, 1
      %v1894 = vsel %vm760, %v1889, %v1893
      %v1895 = vshrl.u32 %v1872, 16
      %v1897 = vor.u32 %v1895, %v1893
      %v1899 = vshll.u32 %v1873, 16
      %v1901 = vrot.slane %v1899, 1
      %v1902 = vsel %vm760, %v1897, %v1901
      %v1903 = vshrl.u32 %v1873, 16
      %v1905 = vor.u32 %v1903, %v1901
      %v1907 = vshll.u32 %v1874, 16
      %v1909 = vrot.slane %v1907, 1
      %v1910 = vsel %vm760, %v1905, %v1909
      %v1911 = vshrl.u32 %v1874, 16
      %v1913 = vor.u32 %v1911, %v1909
      %v1915 = vsel %vm800, %v1886, 0
      %v1918 = vsel %vm800, %v1894, 0
      %v1921 = vsel %vm800, %v1902, 0
      %v1924 = vsel %vm800, %v1910, 0
      %v1927 = vsel %vm800, %v1913, 0
      %v1930 = vsel %vm816, %v1865, 0
      %1932 = vmatprep.subr.bf16.mxu0 0
      %1933 = vmatpush1.bf16.msra.mxu0 0
      %1934 = vmatprep.subr.bf16.mxu0 0
      %1935 = vmatpush1.bf16.msra.mxu0 0
      %1936 = vmatprep.subr.bf16.mxu0 0
      %1937 = vmatpush1.bf16.msra.mxu0 0
      %1938 = vmatprep.subr.bf16.mxu0 0
      %1939 = vmatpush1.bf16.msra.mxu0 0
      %1940 = vmatprep.subr.bf16.mxu0 0
      %1941 = vmatpush1.bf16.msra.mxu0 0
      %1942 = vmatprep.subr.bf16.mxu0 0
      %1943 = vmatpush1.bf16.msra.mxu0 0
      %1944 = vmatprep.subr.bf16.mxu0 0
      %1945 = vmatpush1.bf16.msra.mxu0 0
      %1946 = vmatprep.subr.bf16.mxu0 0
      %1947 = vmatpush1.bf16.msra.mxu0 %v1930
      %1948 = vmatprep.subr.bf16.mxu0 0
      %1949 = vmatpush2.bf16.msra.mxu0 0
      %1950 = vmatprep.subr.bf16.mxu0 0
      %1951 = vmatpush2.bf16.msra.mxu0 0
      %1952 = vmatprep.subr.bf16.mxu0 0
      %1953 = vmatpush2.bf16.msra.mxu0 0
      %1954 = vmatprep.subr.bf16.mxu0 0
      %1955 = vmatpush2.bf16.msra.mxu0 0
      %1956 = vmatprep.subr.bf16.mxu0 0
      %1957 = vmatpush2.bf16.msra.mxu0 0
      %1958 = vmatprep.subr.bf16.mxu0 0
      %1959 = vmatpush2.bf16.msra.mxu0 0
      %1960 = vmatprep.subr.bf16.mxu0 0
      %1961 = vmatpush2.bf16.msra.mxu0 0
      %1962 = vmatprep.subr.bf16.mxu0 0
      %1963 = vmatpush2.bf16.msra.mxu0 0
      %1964 = vmatprep.mubr.bf16.mxu0 0
      %1965 = vmatmul.mubr.bf16.gmra.mxu0 %v1915
      %v1966 = vpop.f32.mrf.mxu0
      %v1967 = vadd.f32 0.0, %v1966
      %v1968 = vpop.f32.mrf.mxu0
      %v1969 = vpop.f32.mrf.mxu0
      %v1970 = vadd.f32 0.0, %v1969
      %v1971 = vpop.f32.mrf.mxu0
      %1972 = vmatprep.mubr.bf16.mxu0 0
      %1973 = vmatmul.mubr.bf16.gmra.mxu0 %v1918
      %v1974 = vpop.f32.mrf.mxu0
      %v1975 = vadd.f32 0.0, %v1974
      %v1976 = vpop.f32.mrf.mxu0
      %v1977 = vpop.f32.mrf.mxu0
      %v1978 = vadd.f32 0.0, %v1977
      %v1979 = vpop.f32.mrf.mxu0
      %1980 = vmatprep.mubr.bf16.mxu0 0
      %1981 = vmatmul.mubr.bf16.gmra.mxu0 %v1921
      %v1982 = vpop.f32.mrf.mxu0
      %v1983 = vadd.f32 0.0, %v1982
      %v1984 = vpop.f32.mrf.mxu0
      %v1985 = vpop.f32.mrf.mxu0
      %v1986 = vadd.f32 0.0, %v1985
      %v1987 = vpop.f32.mrf.mxu0
      %1988 = vmatprep.mubr.bf16.mxu0 0
      %1989 = vmatmul.mubr.bf16.gmra.mxu0 %v1924
      %v1990 = vpop.f32.mrf.mxu0
      %v1991 = vadd.f32 0.0, %v1990
      %v1992 = vpop.f32.mrf.mxu0
      %v1993 = vpop.f32.mrf.mxu0
      %v1994 = vadd.f32 0.0, %v1993
      %v1995 = vpop.f32.mrf.mxu0
      %1996 = vmatprep.mubr.bf16.mxu0 0
      %1997 = vmatmul.mubr.bf16.gmra.mxu0 %v1927
      %v1998 = vpop.f32.mrf.mxu0
      %v1999 = vadd.f32 0.0, %v1998
      %v2000 = vpop.f32.mrf.mxu0
      %v2001 = vpop.f32.mrf.mxu0
      %v2002 = vpop.f32.mrf.mxu0
      %2003 = vdwg.mxu0
      %v2004 = vadd.f32 %v1744, %v1967
      %v2005 = vadd.f32 %v1745, %v1970
      %v2006 = vadd.f32 %v1746, %v1975
      %v2007 = vadd.f32 %v1747, %v1978
      %v2008 = vadd.f32 %v1748, %v1983
      %v2009 = vadd.f32 %v1749, %v1986
      %v2010 = vadd.f32 %v1750, %v1991
      %v2011 = vadd.f32 %v1751, %v1994
      %v2012 = vadd.f32 %v1752, %v1999
      %s2013 = scalar_lea.vmem %s581, 4
      %v2014 = vld [vmem:[%s2013] sm:$0x3]
      %2015 = vrot.lane.b32.xlu0 %v1886, 124
      %v2016 = vpop.permute.xlu0 %2015
      %2017 = vrot.lane.b32.xlu0 %v1894, 124
      %v2018 = vpop.permute.xlu0 %2017
      %2019 = vrot.lane.b32.xlu0 %v1902, 124
      %v2020 = vpop.permute.xlu0 %2019
      %2021 = vrot.lane.b32.xlu0 %v1910, 124
      %v2022 = vpop.permute.xlu0 %2021
      %2023 = vrot.lane.b32.xlu0 %v1913, 124
      %v2024 = vpop.permute.xlu0 %2023
      %v2026 = vsel %vm912, %v2016, 0
      %v2029 = vsel %vm912, %v2018, 0
      %v2032 = vsel %vm912, %v2020, 0
      %v2035 = vsel %vm912, %v2022, 0
      %v2038 = vsel %vm912, %v2024, 0
      %v2041 = vsel %vm928, %v2014, 0
      %2043 = vmatprep.subr.bf16.mxu0 0
      %2044 = vmatpush1.bf16.msra.mxu0 0
      %2045 = vmatprep.subr.bf16.mxu0 0
      %2046 = vmatpush1.bf16.msra.mxu0 0
      %2047 = vmatprep.subr.bf16.mxu0 0
      %2048 = vmatpush1.bf16.msra.mxu0 0
      %2049 = vmatprep.subr.bf16.mxu0 0
      %2050 = vmatpush1.bf16.msra.mxu0 0
      %2051 = vmatprep.subr.bf16.mxu0 0
      %2052 = vmatpush1.bf16.msra.mxu0 0
      %2053 = vmatprep.subr.bf16.mxu0 0
      %2054 = vmatpush1.bf16.msra.mxu0 0
      %2055 = vmatprep.subr.bf16.mxu0 0
      %2056 = vmatpush1.bf16.msra.mxu0 0
      %2057 = vmatprep.subr.bf16.mxu0 0
      %2058 = vmatpush1.bf16.msra.mxu0 %v2041
      %2059 = vmatprep.subr.bf16.mxu0 0
      %2060 = vmatpush2.bf16.msra.mxu0 0
      %2061 = vmatprep.subr.bf16.mxu0 0
      %2062 = vmatpush2.bf16.msra.mxu0 0
      %2063 = vmatprep.subr.bf16.mxu0 0
      %2064 = vmatpush2.bf16.msra.mxu0 0
      %2065 = vmatprep.subr.bf16.mxu0 0
      %2066 = vmatpush2.bf16.msra.mxu0 0
      %2067 = vmatprep.subr.bf16.mxu0 0
      %2068 = vmatpush2.bf16.msra.mxu0 0
      %2069 = vmatprep.subr.bf16.mxu0 0
      %2070 = vmatpush2.bf16.msra.mxu0 0
      %2071 = vmatprep.subr.bf16.mxu0 0
      %2072 = vmatpush2.bf16.msra.mxu0 0
      %2073 = vmatprep.subr.bf16.mxu0 0
      %2074 = vmatpush2.bf16.msra.mxu0 0
      %2075 = vmatprep.mubr.bf16.mxu0 0
      %2076 = vmatmul.mubr.bf16.gmra.mxu0 %v2026
      %v2077 = vpop.f32.mrf.mxu0
      %v2078 = vadd.f32 0.0, %v2077
      %v2079 = vpop.f32.mrf.mxu0
      %v2080 = vpop.f32.mrf.mxu0
      %v2081 = vadd.f32 0.0, %v2080
      %v2082 = vpop.f32.mrf.mxu0
      %2083 = vmatprep.mubr.bf16.mxu0 0
      %2084 = vmatmul.mubr.bf16.gmra.mxu0 %v2029
      %v2085 = vpop.f32.mrf.mxu0
      %v2086 = vadd.f32 0.0, %v2085
      %v2087 = vpop.f32.mrf.mxu0
      %v2088 = vpop.f32.mrf.mxu0
      %v2089 = vadd.f32 0.0, %v2088
      %v2090 = vpop.f32.mrf.mxu0
      %2091 = vmatprep.mubr.bf16.mxu0 0
      %2092 = vmatmul.mubr.bf16.gmra.mxu0 %v2032
      %v2093 = vpop.f32.mrf.mxu0
      %v2094 = vadd.f32 0.0, %v2093
      %v2095 = vpop.f32.mrf.mxu0
      %v2096 = vpop.f32.mrf.mxu0
      %v2097 = vadd.f32 0.0, %v2096
      %v2098 = vpop.f32.mrf.mxu0
      %2099 = vmatprep.mubr.bf16.mxu0 0
      %2100 = vmatmul.mubr.bf16.gmra.mxu0 %v2035
      %v2101 = vpop.f32.mrf.mxu0
      %v2102 = vadd.f32 0.0, %v2101
      %v2103 = vpop.f32.mrf.mxu0
      %v2104 = vpop.f32.mrf.mxu0
      %v2105 = vadd.f32 0.0, %v2104
      %v2106 = vpop.f32.mrf.mxu0
      %2107 = vmatprep.mubr.bf16.mxu0 0
      %2108 = vmatmul.mubr.bf16.gmra.mxu0 %v2038
      %v2109 = vpop.f32.mrf.mxu0
      %v2110 = vadd.f32 0.0, %v2109
      %v2111 = vpop.f32.mrf.mxu0
      %v2112 = vpop.f32.mrf.mxu0
      %v2113 = vpop.f32.mrf.mxu0
      %2114 = vdwg.mxu0
      %v2115 = vadd.f32 %v1855, %v2078
      %v2116 = vadd.f32 %v1856, %v2081
      %v2117 = vadd.f32 %v1857, %v2086
      %v2118 = vadd.f32 %v1858, %v2089
      %v2119 = vadd.f32 %v1859, %v2094
      %v2120 = vadd.f32 %v1860, %v2097
      %v2121 = vadd.f32 %v1861, %v2102
      %v2122 = vadd.f32 %v1862, %v2105
      %v2123 = vadd.f32 %v1863, %v2110
      %v2133 = vcombine.high %v2004, %v2004
      %v2135 = vunpack.c.l.s4 1966171168
      %v2136 = vunpack.c.0.s8 %v2135
      %v2137 = vlaneseq
      %v2138 = vshrl.u32 %v2137, 7
      %v2139 = vsub.s32 %v2136, %v2138
      %v2140 = vrot.slane %v2004, %v2139
      %v2142 = vunpack.c.l.s4 1966171168
      %v2143 = vunpack.c.0.s8 %v2142
      %v2144 = vlaneseq
      %v2145 = vshrl.u32 %v2144, 7
      %v2146 = vsub.s32 %v2143, %v2145
      %v2147 = vrot.slane %v2133, %v2146
      %v2148 = vcombine.high %v2140, %v2140
      %v2149 = vcombine.high %v2147, %v2147
      %v2151 = vunpack.c.l.s4 1966171168
      %v2152 = vunpack.c.0.s8 %v2151
      %v2153 = vlaneseq
      %v2154 = vshrl.u32 %v2153, 7
      %v2155 = vsub.s32 %v2152, %v2154
      %v2156 = vrot.slane %v2140, %v2155
      %v2158 = vunpack.c.l.s4 1966171168
      %v2159 = vunpack.c.0.s8 %v2158
      %v2160 = vlaneseq
      %v2161 = vshrl.u32 %v2160, 7
      %v2162 = vsub.s32 %v2159, %v2161
      %v2163 = vrot.slane %v2147, %v2162
      %v2165 = vunpack.c.l.s4 1966171168
      %v2166 = vunpack.c.0.s8 %v2165
      %v2167 = vlaneseq
      %v2168 = vshrl.u32 %v2167, 7
      %v2169 = vsub.s32 %v2166, %v2168
      %v2170 = vrot.slane %v2148, %v2169
      %v2172 = vunpack.c.l.s4 1966171168
      %v2173 = vunpack.c.0.s8 %v2172
      %v2174 = vlaneseq
      %v2175 = vshrl.u32 %v2174, 7
      %v2176 = vsub.s32 %v2173, %v2175
      %v2177 = vrot.slane %v2149, %v2176
      %v2178 = vcombine.high %v2156, %v2156
      %v2179 = vcombine.high %v2163, %v2163
      %v2180 = vcombine.high %v2170, %v2170
      %v2181 = vcombine.high %v2177, %v2177
      %v2182 = vcombine.high %v2005, %v2005
      %v2184 = vunpack.c.l.s4 1966171168
      %v2185 = vunpack.c.0.s8 %v2184
      %v2186 = vlaneseq
      %v2187 = vshrl.u32 %v2186, 7
      %v2188 = vsub.s32 %v2185, %v2187
      %v2189 = vrot.slane %v2005, %v2188
      %v2191 = vunpack.c.l.s4 1966171168
      %v2192 = vunpack.c.0.s8 %v2191
      %v2193 = vlaneseq
      %v2194 = vshrl.u32 %v2193, 7
      %v2195 = vsub.s32 %v2192, %v2194
      %v2196 = vrot.slane %v2182, %v2195
      %v2197 = vcombine.high %v2189, %v2189
      %v2198 = vcombine.high %v2196, %v2196
      %v2200 = vunpack.c.l.s4 1966171168
      %v2201 = vunpack.c.0.s8 %v2200
      %v2202 = vlaneseq
      %v2203 = vshrl.u32 %v2202, 7
      %v2204 = vsub.s32 %v2201, %v2203
      %v2205 = vrot.slane %v2189, %v2204
      %v2207 = vunpack.c.l.s4 1966171168
      %v2208 = vunpack.c.0.s8 %v2207
      %v2209 = vlaneseq
      %v2210 = vshrl.u32 %v2209, 7
      %v2211 = vsub.s32 %v2208, %v2210
      %v2212 = vrot.slane %v2196, %v2211
      %v2214 = vunpack.c.l.s4 1966171168
      %v2215 = vunpack.c.0.s8 %v2214
      %v2216 = vlaneseq
      %v2217 = vshrl.u32 %v2216, 7
      %v2218 = vsub.s32 %v2215, %v2217
      %v2219 = vrot.slane %v2197, %v2218
      %v2221 = vunpack.c.l.s4 1966171168
      %v2222 = vunpack.c.0.s8 %v2221
      %v2223 = vlaneseq
      %v2224 = vshrl.u32 %v2223, 7
      %v2225 = vsub.s32 %v2222, %v2224
      %v2226 = vrot.slane %v2198, %v2225
      %v2227 = vcombine.high %v2205, %v2205
      %v2228 = vcombine.high %v2212, %v2212
      %v2229 = vcombine.high %v2219, %v2219
      %v2230 = vcombine.high %v2226, %v2226
      %v2231 = vcombine.high %v2006, %v2006
      %v2233 = vunpack.c.l.s4 1966171168
      %v2234 = vunpack.c.0.s8 %v2233
      %v2235 = vlaneseq
      %v2236 = vshrl.u32 %v2235, 7
      %v2237 = vsub.s32 %v2234, %v2236
      %v2238 = vrot.slane %v2006, %v2237
      %v2240 = vunpack.c.l.s4 1966171168
      %v2241 = vunpack.c.0.s8 %v2240
      %v2242 = vlaneseq
      %v2243 = vshrl.u32 %v2242, 7
      %v2244 = vsub.s32 %v2241, %v2243
      %v2245 = vrot.slane %v2231, %v2244
      %v2246 = vcombine.high %v2238, %v2238
      %v2247 = vcombine.high %v2245, %v2245
      %v2249 = vunpack.c.l.s4 1966171168
      %v2250 = vunpack.c.0.s8 %v2249
      %v2251 = vlaneseq
      %v2252 = vshrl.u32 %v2251, 7
      %v2253 = vsub.s32 %v2250, %v2252
      %v2254 = vrot.slane %v2238, %v2253
      %v2256 = vunpack.c.l.s4 1966171168
      %v2257 = vunpack.c.0.s8 %v2256
      %v2258 = vlaneseq
      %v2259 = vshrl.u32 %v2258, 7
      %v2260 = vsub.s32 %v2257, %v2259
      %v2261 = vrot.slane %v2245, %v2260
      %v2263 = vunpack.c.l.s4 1966171168
      %v2264 = vunpack.c.0.s8 %v2263
      %v2265 = vlaneseq
      %v2266 = vshrl.u32 %v2265, 7
      %v2267 = vsub.s32 %v2264, %v2266
      %v2268 = vrot.slane %v2246, %v2267
      %v2270 = vunpack.c.l.s4 1966171168
      %v2271 = vunpack.c.0.s8 %v2270
      %v2272 = vlaneseq
      %v2273 = vshrl.u32 %v2272, 7
      %v2274 = vsub.s32 %v2271, %v2273
      %v2275 = vrot.slane %v2247, %v2274
      %v2276 = vcombine.high %v2254, %v2254
      %v2277 = vcombine.high %v2261, %v2261
      %v2278 = vcombine.high %v2268, %v2268
      %v2279 = vcombine.high %v2275, %v2275
      %v2280 = vcombine.high %v2007, %v2007
      %v2282 = vunpack.c.l.s4 1966171168
      %v2283 = vunpack.c.0.s8 %v2282
      %v2284 = vlaneseq
      %v2285 = vshrl.u32 %v2284, 7
      %v2286 = vsub.s32 %v2283, %v2285
      %v2287 = vrot.slane %v2007, %v2286
      %v2289 = vunpack.c.l.s4 1966171168
      %v2290 = vunpack.c.0.s8 %v2289
      %v2291 = vlaneseq
      %v2292 = vshrl.u32 %v2291, 7
      %v2293 = vsub.s32 %v2290, %v2292
      %v2294 = vrot.slane %v2280, %v2293
      %v2295 = vcombine.high %v2287, %v2287
      %v2296 = vcombine.high %v2294, %v2294
      %v2298 = vunpack.c.l.s4 1966171168
      %v2299 = vunpack.c.0.s8 %v2298
      %v2300 = vlaneseq
      %v2301 = vshrl.u32 %v2300, 7
      %v2302 = vsub.s32 %v2299, %v2301
      %v2303 = vrot.slane %v2287, %v2302
      %v2305 = vunpack.c.l.s4 1966171168
      %v2306 = vunpack.c.0.s8 %v2305
      %v2307 = vlaneseq
      %v2308 = vshrl.u32 %v2307, 7
      %v2309 = vsub.s32 %v2306, %v2308
      %v2310 = vrot.slane %v2294, %v2309
      %v2312 = vunpack.c.l.s4 1966171168
      %v2313 = vunpack.c.0.s8 %v2312
      %v2314 = vlaneseq
      %v2315 = vshrl.u32 %v2314, 7
      %v2316 = vsub.s32 %v2313, %v2315
      %v2317 = vrot.slane %v2295, %v2316
      %v2319 = vunpack.c.l.s4 1966171168
      %v2320 = vunpack.c.0.s8 %v2319
      %v2321 = vlaneseq
      %v2322 = vshrl.u32 %v2321, 7
      %v2323 = vsub.s32 %v2320, %v2322
      %v2324 = vrot.slane %v2296, %v2323
      %v2325 = vcombine.high %v2310, %v2310
      %v2326 = vcombine.high %v2317, %v2317
      %v2327 = vcombine.high %v2324, %v2324
      %v2328 = vcombine.high %v2008, %v2008
      %v2330 = vunpack.c.l.s4 1966171168
      %v2331 = vunpack.c.0.s8 %v2330
      %v2332 = vlaneseq
      %v2333 = vshrl.u32 %v2332, 7
      %v2334 = vsub.s32 %v2331, %v2333
      %v2335 = vrot.slane %v2008, %v2334
      %v2337 = vunpack.c.l.s4 1966171168
      %v2338 = vunpack.c.0.s8 %v2337
      %v2339 = vlaneseq
      %v2340 = vshrl.u32 %v2339, 7
      %v2341 = vsub.s32 %v2338, %v2340
      %v2342 = vrot.slane %v2328, %v2341
      %v2343 = vcombine.high %v2335, %v2335
      %v2344 = vcombine.high %v2342, %v2342
      %v2346 = vunpack.c.l.s4 1966171168
      %v2347 = vunpack.c.0.s8 %v2346
      %v2348 = vlaneseq
      %v2349 = vshrl.u32 %v2348, 7
      %v2350 = vsub.s32 %v2347, %v2349
      %v2351 = vrot.slane %v2335, %v2350
      %v2353 = vunpack.c.l.s4 1966171168
      %v2354 = vunpack.c.0.s8 %v2353
      %v2355 = vlaneseq
      %v2356 = vshrl.u32 %v2355, 7
      %v2357 = vsub.s32 %v2354, %v2356
      %v2358 = vrot.slane %v2342, %v2357
      %v2360 = vunpack.c.l.s4 1966171168
      %v2361 = vunpack.c.0.s8 %v2360
      %v2362 = vlaneseq
      %v2363 = vshrl.u32 %v2362, 7
      %v2364 = vsub.s32 %v2361, %v2363
      %v2365 = vrot.slane %v2343, %v2364
      %v2367 = vunpack.c.l.s4 1966171168
      %v2368 = vunpack.c.0.s8 %v2367
      %v2369 = vlaneseq
      %v2370 = vshrl.u32 %v2369, 7
      %v2371 = vsub.s32 %v2368, %v2370
      %v2372 = vrot.slane %v2344, %v2371
      %v2373 = vcombine.high %v2351, %v2351
      %v2374 = vcombine.high %v2358, %v2358
      %v2375 = vcombine.high %v2372, %v2372
      %v2376 = vcombine.high %v2009, %v2009
      %v2378 = vunpack.c.l.s4 1966171168
      %v2379 = vunpack.c.0.s8 %v2378
      %v2380 = vlaneseq
      %v2381 = vshrl.u32 %v2380, 7
      %v2382 = vsub.s32 %v2379, %v2381
      %v2383 = vrot.slane %v2009, %v2382
      %v2385 = vunpack.c.l.s4 1966171168
      %v2386 = vunpack.c.0.s8 %v2385
      %v2387 = vlaneseq
      %v2388 = vshrl.u32 %v2387, 7
      %v2389 = vsub.s32 %v2386, %v2388
      %v2390 = vrot.slane %v2376, %v2389
      %v2391 = vcombine.high %v2383, %v2383
      %v2392 = vcombine.high %v2390, %v2390
      %v2394 = vunpack.c.l.s4 1966171168
      %v2395 = vunpack.c.0.s8 %v2394
      %v2396 = vlaneseq
      %v2397 = vshrl.u32 %v2396, 7
      %v2398 = vsub.s32 %v2395, %v2397
      %v2399 = vrot.slane %v2383, %v2398
      %v2401 = vunpack.c.l.s4 1966171168
      %v2402 = vunpack.c.0.s8 %v2401
      %v2403 = vlaneseq
      %v2404 = vshrl.u32 %v2403, 7
      %v2405 = vsub.s32 %v2402, %v2404
      %v2406 = vrot.slane %v2390, %v2405
      %v2408 = vunpack.c.l.s4 1966171168
      %v2409 = vunpack.c.0.s8 %v2408
      %v2410 = vlaneseq
      %v2411 = vshrl.u32 %v2410, 7
      %v2412 = vsub.s32 %v2409, %v2411
      %v2413 = vrot.slane %v2391, %v2412
      %v2415 = vunpack.c.l.s4 1966171168
      %v2416 = vunpack.c.0.s8 %v2415
      %v2417 = vlaneseq
      %v2418 = vshrl.u32 %v2417, 7
      %v2419 = vsub.s32 %v2416, %v2418
      %v2420 = vrot.slane %v2392, %v2419
      %v2421 = vcombine.high %v2399, %v2399
      %v2422 = vcombine.high %v2406, %v2406
      %v2423 = vcombine.high %v2413, %v2413
      %v2424 = vcombine.high %v2420, %v2420
      %v2425 = vcombine.high %v2010, %v2010
      %v2427 = vunpack.c.l.s4 1966171168
      %v2428 = vunpack.c.0.s8 %v2427
      %v2429 = vlaneseq
      %v2430 = vshrl.u32 %v2429, 7
      %v2431 = vsub.s32 %v2428, %v2430
      %v2432 = vrot.slane %v2010, %v2431
      %v2434 = vunpack.c.l.s4 1966171168
      %v2435 = vunpack.c.0.s8 %v2434
      %v2436 = vlaneseq
      %v2437 = vshrl.u32 %v2436, 7
      %v2438 = vsub.s32 %v2435, %v2437
      %v2439 = vrot.slane %v2425, %v2438
      %v2440 = vcombine.high %v2432, %v2432
      %v2441 = vcombine.high %v2439, %v2439
      %v2443 = vunpack.c.l.s4 1966171168
      %v2444 = vunpack.c.0.s8 %v2443
      %v2445 = vlaneseq
      %v2446 = vshrl.u32 %v2445, 7
      %v2447 = vsub.s32 %v2444, %v2446
      %v2448 = vrot.slane %v2432, %v2447
      %v2450 = vunpack.c.l.s4 1966171168
      %v2451 = vunpack.c.0.s8 %v2450
      %v2452 = vlaneseq
      %v2453 = vshrl.u32 %v2452, 7
      %v2454 = vsub.s32 %v2451, %v2453
      %v2455 = vrot.slane %v2439, %v2454
      %v2457 = vunpack.c.l.s4 1966171168
      %v2458 = vunpack.c.0.s8 %v2457
      %v2459 = vlaneseq
      %v2460 = vshrl.u32 %v2459, 7
      %v2461 = vsub.s32 %v2458, %v2460
      %v2462 = vrot.slane %v2440, %v2461
      %v2464 = vunpack.c.l.s4 1966171168
      %v2465 = vunpack.c.0.s8 %v2464
      %v2466 = vlaneseq
      %v2467 = vshrl.u32 %v2466, 7
      %v2468 = vsub.s32 %v2465, %v2467
      %v2469 = vrot.slane %v2441, %v2468
      %v2470 = vcombine.high %v2448, %v2448
      %v2471 = vcombine.high %v2455, %v2455
      %v2472 = vcombine.high %v2462, %v2462
      %v2473 = vcombine.high %v2469, %v2469
      %v2474 = vcombine.high %v2011, %v2011
      %v2476 = vunpack.c.l.s4 1966171168
      %v2477 = vunpack.c.0.s8 %v2476
      %v2478 = vlaneseq
      %v2479 = vshrl.u32 %v2478, 7
      %v2480 = vsub.s32 %v2477, %v2479
      %v2481 = vrot.slane %v2011, %v2480
      %v2483 = vunpack.c.l.s4 1966171168
      %v2484 = vunpack.c.0.s8 %v2483
      %v2485 = vlaneseq
      %v2486 = vshrl.u32 %v2485, 7
      %v2487 = vsub.s32 %v2484, %v2486
      %v2488 = vrot.slane %v2474, %v2487
      %v2489 = vcombine.high %v2481, %v2481
      %v2490 = vcombine.high %v2488, %v2488
      %v2492 = vunpack.c.l.s4 1966171168
      %v2493 = vunpack.c.0.s8 %v2492
      %v2494 = vlaneseq
      %v2495 = vshrl.u32 %v2494, 7
      %v2496 = vsub.s32 %v2493, %v2495
      %v2497 = vrot.slane %v2481, %v2496
      %v2499 = vunpack.c.l.s4 1966171168
      %v2500 = vunpack.c.0.s8 %v2499
      %v2501 = vlaneseq
      %v2502 = vshrl.u32 %v2501, 7
      %v2503 = vsub.s32 %v2500, %v2502
      %v2504 = vrot.slane %v2488, %v2503
      %v2506 = vunpack.c.l.s4 1966171168
      %v2507 = vunpack.c.0.s8 %v2506
      %v2508 = vlaneseq
      %v2509 = vshrl.u32 %v2508, 7
      %v2510 = vsub.s32 %v2507, %v2509
      %v2511 = vrot.slane %v2489, %v2510
      %v2513 = vunpack.c.l.s4 1966171168
      %v2514 = vunpack.c.0.s8 %v2513
      %v2515 = vlaneseq
      %v2516 = vshrl.u32 %v2515, 7
      %v2517 = vsub.s32 %v2514, %v2516
      %v2518 = vrot.slane %v2490, %v2517
      %v2519 = vcombine.high %v2497, %v2497
      %v2520 = vcombine.high %v2511, %v2511
      %v2521 = vcombine.high %v2518, %v2518
      %v2522 = vcombine.high %v2012, %v2012
      %v2524 = vunpack.c.l.s4 1966171168
      %v2525 = vunpack.c.0.s8 %v2524
      %v2526 = vlaneseq
      %v2527 = vshrl.u32 %v2526, 7
      %v2528 = vsub.s32 %v2525, %v2527
      %v2529 = vrot.slane %v2012, %v2528
      %v2531 = vunpack.c.l.s4 1966171168
      %v2532 = vunpack.c.0.s8 %v2531
      %v2533 = vlaneseq
      %v2534 = vshrl.u32 %v2533, 7
      %v2535 = vsub.s32 %v2532, %v2534
      %v2536 = vrot.slane %v2522, %v2535
      %v2537 = vcombine.high %v2529, %v2529
      %v2538 = vcombine.high %v2536, %v2536
      %v2540 = vunpack.c.l.s4 1966171168
      %v2541 = vunpack.c.0.s8 %v2540
      %v2542 = vlaneseq
      %v2543 = vshrl.u32 %v2542, 7
      %v2544 = vsub.s32 %v2541, %v2543
      %v2545 = vrot.slane %v2529, %v2544
      %v2547 = vunpack.c.l.s4 1966171168
      %v2548 = vunpack.c.0.s8 %v2547
      %v2549 = vlaneseq
      %v2550 = vshrl.u32 %v2549, 7
      %v2551 = vsub.s32 %v2548, %v2550
      %v2552 = vrot.slane %v2536, %v2551
      %v2554 = vunpack.c.l.s4 1966171168
      %v2555 = vunpack.c.0.s8 %v2554
      %v2556 = vlaneseq
      %v2557 = vshrl.u32 %v2556, 7
      %v2558 = vsub.s32 %v2555, %v2557
      %v2559 = vrot.slane %v2537, %v2558
      %v2561 = vunpack.c.l.s4 1966171168
      %v2562 = vunpack.c.0.s8 %v2561
      %v2563 = vlaneseq
      %v2564 = vshrl.u32 %v2563, 7
      %v2565 = vsub.s32 %v2562, %v2564
      %v2566 = vrot.slane %v2538, %v2565
      %v2567 = vcombine.high %v2545, %v2545
      %v2568 = vcombine.high %v2552, %v2552
      %v2569 = vcombine.high %v2559, %v2559
      %v2643 = vcombine.high %v2115, %v2115
      %v2645 = vunpack.c.l.s4 1966171168
      %v2646 = vunpack.c.0.s8 %v2645
      %v2647 = vlaneseq
      %v2648 = vshrl.u32 %v2647, 7
      %v2649 = vsub.s32 %v2646, %v2648
      %v2650 = vrot.slane %v2115, %v2649
      %v2652 = vunpack.c.l.s4 1966171168
      %v2653 = vunpack.c.0.s8 %v2652
      %v2654 = vlaneseq
      %v2655 = vshrl.u32 %v2654, 7
      %v2656 = vsub.s32 %v2653, %v2655
      %v2657 = vrot.slane %v2643, %v2656
      %v2658 = vcombine.high %v2650, %v2650
      %v2659 = vcombine.high %v2657, %v2657
      %v2661 = vunpack.c.l.s4 1966171168
      %v2662 = vunpack.c.0.s8 %v2661
      %v2663 = vlaneseq
      %v2664 = vshrl.u32 %v2663, 7
      %v2665 = vsub.s32 %v2662, %v2664
      %v2666 = vrot.slane %v2650, %v2665
      %v2668 = vunpack.c.l.s4 1966171168
      %v2669 = vunpack.c.0.s8 %v2668
      %v2670 = vlaneseq
      %v2671 = vshrl.u32 %v2670, 7
      %v2672 = vsub.s32 %v2669, %v2671
      %v2673 = vrot.slane %v2657, %v2672
      %v2675 = vunpack.c.l.s4 1966171168
      %v2676 = vunpack.c.0.s8 %v2675
      %v2677 = vlaneseq
      %v2678 = vshrl.u32 %v2677, 7
      %v2679 = vsub.s32 %v2676, %v2678
      %v2680 = vrot.slane %v2658, %v2679
      %v2682 = vunpack.c.l.s4 1966171168
      %v2683 = vunpack.c.0.s8 %v2682
      %v2684 = vlaneseq
      %v2685 = vshrl.u32 %v2684, 7
      %v2686 = vsub.s32 %v2683, %v2685
      %v2687 = vrot.slane %v2659, %v2686
      %v2688 = vcombine.high %v2666, %v2666
      %v2689 = vcombine.high %v2673, %v2673
      %v2690 = vcombine.high %v2680, %v2680
      %v2691 = vcombine.high %v2687, %v2687
      %v2692 = vcombine.high %v2116, %v2116
      %v2694 = vunpack.c.l.s4 1966171168
      %v2695 = vunpack.c.0.s8 %v2694
      %v2696 = vlaneseq
      %v2697 = vshrl.u32 %v2696, 7
      %v2698 = vsub.s32 %v2695, %v2697
      %v2699 = vrot.slane %v2116, %v2698
      %v2701 = vunpack.c.l.s4 1966171168
      %v2702 = vunpack.c.0.s8 %v2701
      %v2703 = vlaneseq
      %v2704 = vshrl.u32 %v2703, 7
      %v2705 = vsub.s32 %v2702, %v2704
      %v2706 = vrot.slane %v2692, %v2705
      %v2707 = vcombine.high %v2699, %v2699
      %v2708 = vcombine.high %v2706, %v2706
      %v2710 = vunpack.c.l.s4 1966171168
      %v2711 = vunpack.c.0.s8 %v2710
      %v2712 = vlaneseq
      %v2713 = vshrl.u32 %v2712, 7
      %v2714 = vsub.s32 %v2711, %v2713
      %v2715 = vrot.slane %v2699, %v2714
      %v2717 = vunpack.c.l.s4 1966171168
      %v2718 = vunpack.c.0.s8 %v2717
      %v2719 = vlaneseq
      %v2720 = vshrl.u32 %v2719, 7
      %v2721 = vsub.s32 %v2718, %v2720
      %v2722 = vrot.slane %v2706, %v2721
      %v2724 = vunpack.c.l.s4 1966171168
      %v2725 = vunpack.c.0.s8 %v2724
      %v2726 = vlaneseq
      %v2727 = vshrl.u32 %v2726, 7
      %v2728 = vsub.s32 %v2725, %v2727
      %v2729 = vrot.slane %v2707, %v2728
      %v2731 = vunpack.c.l.s4 1966171168
      %v2732 = vunpack.c.0.s8 %v2731
      %v2733 = vlaneseq
      %v2734 = vshrl.u32 %v2733, 7
      %v2735 = vsub.s32 %v2732, %v2734
      %v2736 = vrot.slane %v2708, %v2735
      %v2737 = vcombine.high %v2715, %v2715
      %v2738 = vcombine.high %v2722, %v2722
      %v2739 = vcombine.high %v2729, %v2729
      %v2740 = vcombine.high %v2736, %v2736
      %v2741 = vcombine.high %v2117, %v2117
      %v2743 = vunpack.c.l.s4 1966171168
      %v2744 = vunpack.c.0.s8 %v2743
      %v2745 = vlaneseq
      %v2746 = vshrl.u32 %v2745, 7
      %v2747 = vsub.s32 %v2744, %v2746
      %v2748 = vrot.slane %v2117, %v2747
      %v2750 = vunpack.c.l.s4 1966171168
      %v2751 = vunpack.c.0.s8 %v2750
      %v2752 = vlaneseq
      %v2753 = vshrl.u32 %v2752, 7
      %v2754 = vsub.s32 %v2751, %v2753
      %v2755 = vrot.slane %v2741, %v2754
      %v2756 = vcombine.high %v2748, %v2748
      %v2757 = vcombine.high %v2755, %v2755
      %v2759 = vunpack.c.l.s4 1966171168
      %v2760 = vunpack.c.0.s8 %v2759
      %v2761 = vlaneseq
      %v2762 = vshrl.u32 %v2761, 7
      %v2763 = vsub.s32 %v2760, %v2762
      %v2764 = vrot.slane %v2748, %v2763
      %v2766 = vunpack.c.l.s4 1966171168
      %v2767 = vunpack.c.0.s8 %v2766
      %v2768 = vlaneseq
      %v2769 = vshrl.u32 %v2768, 7
      %v2770 = vsub.s32 %v2767, %v2769
      %v2771 = vrot.slane %v2755, %v2770
      %v2773 = vunpack.c.l.s4 1966171168
      %v2774 = vunpack.c.0.s8 %v2773
      %v2775 = vlaneseq
      %v2776 = vshrl.u32 %v2775, 7
      %v2777 = vsub.s32 %v2774, %v2776
      %v2778 = vrot.slane %v2756, %v2777
      %v2780 = vunpack.c.l.s4 1966171168
      %v2781 = vunpack.c.0.s8 %v2780
      %v2782 = vlaneseq
      %v2783 = vshrl.u32 %v2782, 7
      %v2784 = vsub.s32 %v2781, %v2783
      %v2785 = vrot.slane %v2757, %v2784
      %v2786 = vcombine.high %v2771, %v2771
      %v2787 = vcombine.high %v2778, %v2778
      %v2788 = vcombine.high %v2785, %v2785
      %v2789 = vcombine.high %v2118, %v2118
      %v2791 = vunpack.c.l.s4 1966171168
      %v2792 = vunpack.c.0.s8 %v2791
      %v2793 = vlaneseq
      %v2794 = vshrl.u32 %v2793, 7
      %v2795 = vsub.s32 %v2792, %v2794
      %v2796 = vrot.slane %v2118, %v2795
      %v2798 = vunpack.c.l.s4 1966171168
      %v2799 = vunpack.c.0.s8 %v2798
      %v2800 = vlaneseq
      %v2801 = vshrl.u32 %v2800, 7
      %v2802 = vsub.s32 %v2799, %v2801
      %v2803 = vrot.slane %v2789, %v2802
      %v2804 = vcombine.high %v2796, %v2796
      %v2805 = vcombine.high %v2803, %v2803
      %v2807 = vunpack.c.l.s4 1966171168
      %v2808 = vunpack.c.0.s8 %v2807
      %v2809 = vlaneseq
      %v2810 = vshrl.u32 %v2809, 7
      %v2811 = vsub.s32 %v2808, %v2810
      %v2812 = vrot.slane %v2796, %v2811
      %v2814 = vunpack.c.l.s4 1966171168
      %v2815 = vunpack.c.0.s8 %v2814
      %v2816 = vlaneseq
      %v2817 = vshrl.u32 %v2816, 7
      %v2818 = vsub.s32 %v2815, %v2817
      %v2819 = vrot.slane %v2803, %v2818
      %v2821 = vunpack.c.l.s4 1966171168
      %v2822 = vunpack.c.0.s8 %v2821
      %v2823 = vlaneseq
      %v2824 = vshrl.u32 %v2823, 7
      %v2825 = vsub.s32 %v2822, %v2824
      %v2826 = vrot.slane %v2804, %v2825
      %v2828 = vunpack.c.l.s4 1966171168
      %v2829 = vunpack.c.0.s8 %v2828
      %v2830 = vlaneseq
      %v2831 = vshrl.u32 %v2830, 7
      %v2832 = vsub.s32 %v2829, %v2831
      %v2833 = vrot.slane %v2805, %v2832
      %v2834 = vcombine.high %v2812, %v2812
      %v2835 = vcombine.high %v2819, %v2819
      %v2836 = vcombine.high %v2833, %v2833
      %v2837 = vcombine.high %v2119, %v2119
      %v2839 = vunpack.c.l.s4 1966171168
      %v2840 = vunpack.c.0.s8 %v2839
      %v2841 = vlaneseq
      %v2842 = vshrl.u32 %v2841, 7
      %v2843 = vsub.s32 %v2840, %v2842
      %v2844 = vrot.slane %v2119, %v2843
      %v2846 = vunpack.c.l.s4 1966171168
      %v2847 = vunpack.c.0.s8 %v2846
      %v2848 = vlaneseq
      %v2849 = vshrl.u32 %v2848, 7
      %v2850 = vsub.s32 %v2847, %v2849
      %v2851 = vrot.slane %v2837, %v2850
      %v2852 = vcombine.high %v2844, %v2844
      %v2853 = vcombine.high %v2851, %v2851
      %v2855 = vunpack.c.l.s4 1966171168
      %v2856 = vunpack.c.0.s8 %v2855
      %v2857 = vlaneseq
      %v2858 = vshrl.u32 %v2857, 7
      %v2859 = vsub.s32 %v2856, %v2858
      %v2860 = vrot.slane %v2844, %v2859
      %v2862 = vunpack.c.l.s4 1966171168
      %v2863 = vunpack.c.0.s8 %v2862
      %v2864 = vlaneseq
      %v2865 = vshrl.u32 %v2864, 7
      %v2866 = vsub.s32 %v2863, %v2865
      %v2867 = vrot.slane %v2851, %v2866
      %v2869 = vunpack.c.l.s4 1966171168
      %v2870 = vunpack.c.0.s8 %v2869
      %v2871 = vlaneseq
      %v2872 = vshrl.u32 %v2871, 7
      %v2873 = vsub.s32 %v2870, %v2872
      %v2874 = vrot.slane %v2852, %v2873
      %v2876 = vunpack.c.l.s4 1966171168
      %v2877 = vunpack.c.0.s8 %v2876
      %v2878 = vlaneseq
      %v2879 = vshrl.u32 %v2878, 7
      %v2880 = vsub.s32 %v2877, %v2879
      %v2881 = vrot.slane %v2853, %v2880
      %v2882 = vcombine.high %v2860, %v2860
      %v2883 = vcombine.high %v2867, %v2867
      %v2884 = vcombine.high %v2874, %v2874
      %v2885 = vcombine.high %v2881, %v2881
      %v2886 = vcombine.high %v2120, %v2120
      %v2888 = vunpack.c.l.s4 1966171168
      %v2889 = vunpack.c.0.s8 %v2888
      %v2890 = vlaneseq
      %v2891 = vshrl.u32 %v2890, 7
      %v2892 = vsub.s32 %v2889, %v2891
      %v2893 = vrot.slane %v2120, %v2892
      %v2895 = vunpack.c.l.s4 1966171168
      %v2896 = vunpack.c.0.s8 %v2895
      %v2897 = vlaneseq
      %v2898 = vshrl.u32 %v2897, 7
      %v2899 = vsub.s32 %v2896, %v2898
      %v2900 = vrot.slane %v2886, %v2899
      %v2901 = vcombine.high %v2893, %v2893
      %v2902 = vcombine.high %v2900, %v2900
      %v2904 = vunpack.c.l.s4 1966171168
      %v2905 = vunpack.c.0.s8 %v2904
      %v2906 = vlaneseq
      %v2907 = vshrl.u32 %v2906, 7
      %v2908 = vsub.s32 %v2905, %v2907
      %v2909 = vrot.slane %v2893, %v2908
      %v2911 = vunpack.c.l.s4 1966171168
      %v2912 = vunpack.c.0.s8 %v2911
      %v2913 = vlaneseq
      %v2914 = vshrl.u32 %v2913, 7
      %v2915 = vsub.s32 %v2912, %v2914
      %v2916 = vrot.slane %v2900, %v2915
      %v2918 = vunpack.c.l.s4 1966171168
      %v2919 = vunpack.c.0.s8 %v2918
      %v2920 = vlaneseq
      %v2921 = vshrl.u32 %v2920, 7
      %v2922 = vsub.s32 %v2919, %v2921
      %v2923 = vrot.slane %v2901, %v2922
      %v2925 = vunpack.c.l.s4 1966171168
      %v2926 = vunpack.c.0.s8 %v2925
      %v2927 = vlaneseq
      %v2928 = vshrl.u32 %v2927, 7
      %v2929 = vsub.s32 %v2926, %v2928
      %v2930 = vrot.slane %v2902, %v2929
      %v2931 = vcombine.high %v2909, %v2909
      %v2932 = vcombine.high %v2916, %v2916
      %v2933 = vcombine.high %v2923, %v2923
      %v2934 = vcombine.high %v2930, %v2930
      %v2935 = vcombine.high %v2121, %v2121
      %v2937 = vunpack.c.l.s4 1966171168
      %v2938 = vunpack.c.0.s8 %v2937
      %v2939 = vlaneseq
      %v2940 = vshrl.u32 %v2939, 7
      %v2941 = vsub.s32 %v2938, %v2940
      %v2942 = vrot.slane %v2121, %v2941
      %v2944 = vunpack.c.l.s4 1966171168
      %v2945 = vunpack.c.0.s8 %v2944
      %v2946 = vlaneseq
      %v2947 = vshrl.u32 %v2946, 7
      %v2948 = vsub.s32 %v2945, %v2947
      %v2949 = vrot.slane %v2935, %v2948
      %v2950 = vcombine.high %v2942, %v2942
      %v2951 = vcombine.high %v2949, %v2949
      %v2953 = vunpack.c.l.s4 1966171168
      %v2954 = vunpack.c.0.s8 %v2953
      %v2955 = vlaneseq
      %v2956 = vshrl.u32 %v2955, 7
      %v2957 = vsub.s32 %v2954, %v2956
      %v2958 = vrot.slane %v2942, %v2957
      %v2960 = vunpack.c.l.s4 1966171168
      %v2961 = vunpack.c.0.s8 %v2960
      %v2962 = vlaneseq
      %v2963 = vshrl.u32 %v2962, 7
      %v2964 = vsub.s32 %v2961, %v2963
      %v2965 = vrot.slane %v2949, %v2964
      %v2967 = vunpack.c.l.s4 1966171168
      %v2968 = vunpack.c.0.s8 %v2967
      %v2969 = vlaneseq
      %v2970 = vshrl.u32 %v2969, 7
      %v2971 = vsub.s32 %v2968, %v2970
      %v2972 = vrot.slane %v2950, %v2971
      %v2974 = vunpack.c.l.s4 1966171168
      %v2975 = vunpack.c.0.s8 %v2974
      %v2976 = vlaneseq
      %v2977 = vshrl.u32 %v2976, 7
      %v2978 = vsub.s32 %v2975, %v2977
      %v2979 = vrot.slane %v2951, %v2978
      %v2980 = vcombine.high %v2958, %v2958
      %v2981 = vcombine.high %v2972, %v2972
      %v2982 = vcombine.high %v2979, %v2979
      %v2983 = vcombine.high %v2122, %v2122
      %v2985 = vunpack.c.l.s4 1966171168
      %v2986 = vunpack.c.0.s8 %v2985
      %v2987 = vlaneseq
      %v2988 = vshrl.u32 %v2987, 7
      %v2989 = vsub.s32 %v2986, %v2988
      %v2990 = vrot.slane %v2122, %v2989
      %v2992 = vunpack.c.l.s4 1966171168
      %v2993 = vunpack.c.0.s8 %v2992
      %v2994 = vlaneseq
      %v2995 = vshrl.u32 %v2994, 7
      %v2996 = vsub.s32 %v2993, %v2995
      %v2997 = vrot.slane %v2983, %v2996
      %v2998 = vcombine.high %v2990, %v2990
      %v2999 = vcombine.high %v2997, %v2997
      %v3001 = vunpack.c.l.s4 1966171168
      %v3002 = vunpack.c.0.s8 %v3001
      %v3003 = vlaneseq
      %v3004 = vshrl.u32 %v3003, 7
      %v3005 = vsub.s32 %v3002, %v3004
      %v3006 = vrot.slane %v2990, %v3005
      %v3008 = vunpack.c.l.s4 1966171168
      %v3009 = vunpack.c.0.s8 %v3008
      %v3010 = vlaneseq
      %v3011 = vshrl.u32 %v3010, 7
      %v3012 = vsub.s32 %v3009, %v3011
      %v3013 = vrot.slane %v2997, %v3012
      %v3015 = vunpack.c.l.s4 1966171168
      %v3016 = vunpack.c.0.s8 %v3015
      %v3017 = vlaneseq
      %v3018 = vshrl.u32 %v3017, 7
      %v3019 = vsub.s32 %v3016, %v3018
      %v3020 = vrot.slane %v2998, %v3019
      %v3022 = vunpack.c.l.s4 1966171168
      %v3023 = vunpack.c.0.s8 %v3022
      %v3024 = vlaneseq
      %v3025 = vshrl.u32 %v3024, 7
      %v3026 = vsub.s32 %v3023, %v3025
      %v3027 = vrot.slane %v2999, %v3026
      %v3028 = vcombine.high %v3006, %v3006
      %v3029 = vcombine.high %v3013, %v3013
      %v3030 = vcombine.high %v3020, %v3020
      %v3031 = vcombine.high %v2123, %v2123
      %v3033 = vunpack.c.l.s4 1966171168
      %v3034 = vunpack.c.0.s8 %v3033
      %v3035 = vlaneseq
      %v3036 = vshrl.u32 %v3035, 7
      %v3037 = vsub.s32 %v3034, %v3036
      %v3038 = vrot.slane %v2123, %v3037
      %v3040 = vunpack.c.l.s4 1966171168
      %v3041 = vunpack.c.0.s8 %v3040
      %v3042 = vlaneseq
      %v3043 = vshrl.u32 %v3042, 7
      %v3044 = vsub.s32 %v3041, %v3043
      %v3045 = vrot.slane %v3031, %v3044
      %v3046 = vcombine.high %v3038, %v3038
      %v3047 = vcombine.high %v3045, %v3045
      %v3049 = vunpack.c.l.s4 1966171168
      %v3050 = vunpack.c.0.s8 %v3049
      %v3051 = vlaneseq
      %v3052 = vshrl.u32 %v3051, 7
      %v3053 = vsub.s32 %v3050, %v3052
      %v3054 = vrot.slane %v3038, %v3053
      %v3056 = vunpack.c.l.s4 1966171168
      %v3057 = vunpack.c.0.s8 %v3056
      %v3058 = vlaneseq
      %v3059 = vshrl.u32 %v3058, 7
      %v3060 = vsub.s32 %v3057, %v3059
      %v3061 = vrot.slane %v3045, %v3060
      %v3063 = vunpack.c.l.s4 1966171168
      %v3064 = vunpack.c.0.s8 %v3063
      %v3065 = vlaneseq
      %v3066 = vshrl.u32 %v3065, 7
      %v3067 = vsub.s32 %v3064, %v3066
      %v3068 = vrot.slane %v3046, %v3067
      %v3070 = vunpack.c.l.s4 1966171168
      %v3071 = vunpack.c.0.s8 %v3070
      %v3072 = vlaneseq
      %v3073 = vshrl.u32 %v3072, 7
      %v3074 = vsub.s32 %v3071, %v3073
      %v3075 = vrot.slane %v3047, %v3074
      %v3076 = vcombine.high %v3054, %v3054
      %v3077 = vcombine.high %v3061, %v3061
      %v3078 = vcombine.high %v3068, %v3068
      %v3079 = vcombine.high %v3075, %v3075
      %v3144 = vadd.f32 %v2156, %v2680
      %v3145 = vadd.f32 %v2170, %v2688
      %v3146 = vadd.f32 %v2178, %v2690
      %v3147 = vadd.f32 %v2180, %v2673
      %v3148 = vadd.f32 %v2163, %v2687
      %v3149 = vadd.f32 %v2177, %v2689
      %v3150 = vadd.f32 %v2179, %v2691
      %v3151 = vadd.f32 %v2181, %v2715
      %v3152 = vadd.f32 %v2219, %v2737
      %v3153 = vadd.f32 %v2227, %v2739
      %v3154 = vadd.f32 %v2229, %v2722
      %v3155 = vadd.f32 %v2212, %v2736
      %v3156 = vadd.f32 %v2226, %v2738
      %v3157 = vadd.f32 %v2228, %v2740
      %v3158 = vadd.f32 %v2230, %v2764
      %v3159 = vadd.f32 %v2254, %v2778
      %v3160 = vadd.f32 %v2276, %v2787
      %v3161 = vadd.f32 %v2278, %v2771
      %v3162 = vadd.f32 %v2261, %v2785
      %v3163 = vadd.f32 %v2275, %v2786
      %v3164 = vadd.f32 %v2277, %v2788
      %v3165 = vadd.f32 %v2279, %v2812
      %v3166 = vadd.f32 %v2303, %v2826
      %v3167 = vadd.f32 %v2317, %v2834
      %v3168 = vadd.f32 %v2326, %v2819
      %v3169 = vadd.f32 %v2310, %v2833
      %v3170 = vadd.f32 %v2324, %v2835
      %v3171 = vadd.f32 %v2325, %v2836
      %v3172 = vadd.f32 %v2327, %v2860
      %v3173 = vadd.f32 %v2351, %v2874
      %v3174 = vadd.f32 %v2365, %v2882
      %v3175 = vadd.f32 %v2373, %v2884
      %v3176 = vadd.f32 %v2358, %v2881
      %v3177 = vadd.f32 %v2372, %v2883
      %v3178 = vadd.f32 %v2374, %v2885
      %v3179 = vadd.f32 %v2375, %v2909
      %v3180 = vadd.f32 %v2399, %v2923
      %v3181 = vadd.f32 %v2413, %v2931
      %v3182 = vadd.f32 %v2421, %v2933
      %v3183 = vadd.f32 %v2423, %v2916
      %v3184 = vadd.f32 %v2420, %v2932
      %v3185 = vadd.f32 %v2422, %v2934
      %v3186 = vadd.f32 %v2424, %v2958
      %v3187 = vadd.f32 %v2448, %v2972
      %v3188 = vadd.f32 %v2462, %v2980
      %v3189 = vadd.f32 %v2470, %v2981
      %v3190 = vadd.f32 %v2472, %v2965
      %v3191 = vadd.f32 %v2455, %v2979
      %v3192 = vadd.f32 %v2471, %v2982
      %v3193 = vadd.f32 %v2473, %v3006
      %v3194 = vadd.f32 %v2497, %v3020
      %v3195 = vadd.f32 %v2511, %v3028
      %v3196 = vadd.f32 %v2519, %v3030
      %v3197 = vadd.f32 %v2520, %v3013
      %v3198 = vadd.f32 %v2504, %v3027
      %v3199 = vadd.f32 %v2518, %v3029
      %v3200 = vadd.f32 %v2521, %v3054
      %v3201 = vadd.f32 %v2545, %v3068
      %v3202 = vadd.f32 %v2559, %v3076
      %v3203 = vadd.f32 %v2567, %v3078
      %v3204 = vadd.f32 %v2569, %v3061
      %v3205 = vadd.f32 %v2552, %v3075
      %v3206 = vadd.f32 %v2566, %v3077
      %v3207 = vadd.f32 %v2568, %v3079
      %v3272 = vcombine.low %v3144, %v3145
      %v3273 = vcombine.low %v3146, %v3147
      %v3274 = vcombine.low %v3148, %v3149
      %v3275 = vcombine.low %v3150, %v3151
      %v3277 = vunpack.c.l.s4 1966171168
      %v3278 = vunpack.c.0.s8 %v3277
      %v3279 = vlaneseq
      %v3280 = vshrl.u32 %v3279, 7
      %v3281 = vsub.s32 %v3278, %v3280
      %v3282 = vrot.slane %v3272, %v3281
      %v3284 = vunpack.c.l.s4 1966171168
      %v3285 = vunpack.c.0.s8 %v3284
      %v3286 = vlaneseq
      %v3287 = vshrl.u32 %v3286, 7
      %v3288 = vsub.s32 %v3285, %v3287
      %v3289 = vrot.slane %v3273, %v3288
      %v3291 = vunpack.c.l.s4 1966171168
      %v3292 = vunpack.c.0.s8 %v3291
      %v3293 = vlaneseq
      %v3294 = vshrl.u32 %v3293, 7
      %v3295 = vsub.s32 %v3292, %v3294
      %v3296 = vrot.slane %v3274, %v3295
      %v3298 = vunpack.c.l.s4 1966171168
      %v3299 = vunpack.c.0.s8 %v3298
      %v3300 = vlaneseq
      %v3301 = vshrl.u32 %v3300, 7
      %v3302 = vsub.s32 %v3299, %v3301
      %v3303 = vrot.slane %v3275, %v3302
      %v3304 = vcombine.low %v3282, %v3289
      %v3305 = vcombine.low %v3296, %v3303
      %v3307 = vunpack.c.l.s4 1966171168
      %v3308 = vunpack.c.0.s8 %v3307
      %v3309 = vlaneseq
      %v3310 = vshrl.u32 %v3309, 7
      %v3311 = vsub.s32 %v3308, %v3310
      %v3312 = vrot.slane %v3304, %v3311
      %v3314 = vunpack.c.l.s4 1966171168
      %v3315 = vunpack.c.0.s8 %v3314
      %v3316 = vlaneseq
      %v3317 = vshrl.u32 %v3316, 7
      %v3318 = vsub.s32 %v3315, %v3317
      %v3319 = vrot.slane %v3305, %v3318
      %v3320 = vcombine.low %v3312, %v3319
      %v3321 = vcombine.low %v3152, %v3153
      %v3322 = vcombine.low %v3154, %v3155
      %v3323 = vcombine.low %v3156, %v3157
      %v3324 = vcombine.low %v3158, %v3159
      %v3326 = vunpack.c.l.s4 1966171168
      %v3327 = vunpack.c.0.s8 %v3326
      %v3328 = vlaneseq
      %v3329 = vshrl.u32 %v3328, 7
      %v3330 = vsub.s32 %v3327, %v3329
      %v3331 = vrot.slane %v3321, %v3330
      %v3333 = vunpack.c.l.s4 1966171168
      %v3334 = vunpack.c.0.s8 %v3333
      %v3335 = vlaneseq
      %v3336 = vshrl.u32 %v3335, 7
      %v3337 = vsub.s32 %v3334, %v3336
      %v3338 = vrot.slane %v3322, %v3337
      %v3340 = vunpack.c.l.s4 1966171168
      %v3341 = vunpack.c.0.s8 %v3340
      %v3342 = vlaneseq
      %v3343 = vshrl.u32 %v3342, 7
      %v3344 = vsub.s32 %v3341, %v3343
      %v3345 = vrot.slane %v3323, %v3344
      %v3347 = vunpack.c.l.s4 1966171168
      %v3348 = vunpack.c.0.s8 %v3347
      %v3349 = vlaneseq
      %v3350 = vshrl.u32 %v3349, 7
      %v3351 = vsub.s32 %v3348, %v3350
      %v3352 = vrot.slane %v3324, %v3351
      %v3353 = vcombine.low %v3331, %v3338
      %v3354 = vcombine.low %v3345, %v3352
      %v3356 = vunpack.c.l.s4 1966171168
      %v3357 = vunpack.c.0.s8 %v3356
      %v3358 = vlaneseq
      %v3359 = vshrl.u32 %v3358, 7
      %v3360 = vsub.s32 %v3357, %v3359
      %v3361 = vrot.slane %v3353, %v3360
      %v3363 = vunpack.c.l.s4 1966171168
      %v3364 = vunpack.c.0.s8 %v3363
      %v3365 = vlaneseq
      %v3366 = vshrl.u32 %v3365, 7
      %v3367 = vsub.s32 %v3364, %v3366
      %v3368 = vrot.slane %v3354, %v3367
      %v3369 = vcombine.low %v3361, %v3368
      %v3370 = vcombine.low %v3160, %v3161
      %v3371 = vcombine.low %v3162, %v3163
      %v3372 = vcombine.low %v3164, %v3165
      %v3373 = vcombine.low %v3166, %v3167
      %v3375 = vunpack.c.l.s4 1966171168
      %v3376 = vunpack.c.0.s8 %v3375
      %v3377 = vlaneseq
      %v3378 = vshrl.u32 %v3377, 7
      %v3379 = vsub.s32 %v3376, %v3378
      %v3380 = vrot.slane %v3370, %v3379
      %v3382 = vunpack.c.l.s4 1966171168
      %v3383 = vunpack.c.0.s8 %v3382
      %v3384 = vlaneseq
      %v3385 = vshrl.u32 %v3384, 7
      %v3386 = vsub.s32 %v3383, %v3385
      %v3387 = vrot.slane %v3371, %v3386
      %v3389 = vunpack.c.l.s4 1966171168
      %v3390 = vunpack.c.0.s8 %v3389
      %v3391 = vlaneseq
      %v3392 = vshrl.u32 %v3391, 7
      %v3393 = vsub.s32 %v3390, %v3392
      %v3394 = vrot.slane %v3372, %v3393
      %v3396 = vunpack.c.l.s4 1966171168
      %v3397 = vunpack.c.0.s8 %v3396
      %v3398 = vlaneseq
      %v3399 = vshrl.u32 %v3398, 7
      %v3400 = vsub.s32 %v3397, %v3399
      %v3401 = vrot.slane %v3373, %v3400
      %v3402 = vcombine.low %v3380, %v3387
      %v3403 = vcombine.low %v3394, %v3401
      %v3405 = vunpack.c.l.s4 1966171168
      %v3406 = vunpack.c.0.s8 %v3405
      %v3407 = vlaneseq
      %v3408 = vshrl.u32 %v3407, 7
      %v3409 = vsub.s32 %v3406, %v3408
      %v3410 = vrot.slane %v3402, %v3409
      %v3412 = vunpack.c.l.s4 1966171168
      %v3413 = vunpack.c.0.s8 %v3412
      %v3414 = vlaneseq
      %v3415 = vshrl.u32 %v3414, 7
      %v3416 = vsub.s32 %v3413, %v3415
      %v3417 = vrot.slane %v3403, %v3416
      %v3418 = vcombine.low %v3410, %v3417
      %v3419 = vcombine.low %v3168, %v3169
      %v3420 = vcombine.low %v3170, %v3171
      %v3421 = vcombine.low %v3172, %v3173
      %v3422 = vcombine.low %v3174, %v3175
      %v3424 = vunpack.c.l.s4 1966171168
      %v3425 = vunpack.c.0.s8 %v3424
      %v3426 = vlaneseq
      %v3427 = vshrl.u32 %v3426, 7
      %v3428 = vsub.s32 %v3425, %v3427
      %v3429 = vrot.slane %v3419, %v3428
      %v3431 = vunpack.c.l.s4 1966171168
      %v3432 = vunpack.c.0.s8 %v3431
      %v3433 = vlaneseq
      %v3434 = vshrl.u32 %v3433, 7
      %v3435 = vsub.s32 %v3432, %v3434
      %v3436 = vrot.slane %v3420, %v3435
      %v3438 = vunpack.c.l.s4 1966171168
      %v3439 = vunpack.c.0.s8 %v3438
      %v3440 = vlaneseq
      %v3441 = vshrl.u32 %v3440, 7
      %v3442 = vsub.s32 %v3439, %v3441
      %v3443 = vrot.slane %v3421, %v3442
      %v3445 = vunpack.c.l.s4 1966171168
      %v3446 = vunpack.c.0.s8 %v3445
      %v3447 = vlaneseq
      %v3448 = vshrl.u32 %v3447, 7
      %v3449 = vsub.s32 %v3446, %v3448
      %v3450 = vrot.slane %v3422, %v3449
      %v3451 = vcombine.low %v3429, %v3436
      %v3452 = vcombine.low %v3443, %v3450
      %v3454 = vunpack.c.l.s4 1966171168
      %v3455 = vunpack.c.0.s8 %v3454
      %v3456 = vlaneseq
      %v3457 = vshrl.u32 %v3456, 7
      %v3458 = vsub.s32 %v3455, %v3457
      %v3459 = vrot.slane %v3451, %v3458
      %v3461 = vunpack.c.l.s4 1966171168
      %v3462 = vunpack.c.0.s8 %v3461
      %v3463 = vlaneseq
      %v3464 = vshrl.u32 %v3463, 7
      %v3465 = vsub.s32 %v3462, %v3464
      %v3466 = vrot.slane %v3452, %v3465
      %v3467 = vcombine.low %v3459, %v3466
      %v3468 = vcombine.low %v3176, %v3177
      %v3469 = vcombine.low %v3178, %v3179
      %v3470 = vcombine.low %v3180, %v3181
      %v3471 = vcombine.low %v3182, %v3183
      %v3473 = vunpack.c.l.s4 1966171168
      %v3474 = vunpack.c.0.s8 %v3473
      %v3475 = vlaneseq
      %v3476 = vshrl.u32 %v3475, 7
      %v3477 = vsub.s32 %v3474, %v3476
      %v3478 = vrot.slane %v3468, %v3477
      %v3480 = vunpack.c.l.s4 1966171168
      %v3481 = vunpack.c.0.s8 %v3480
      %v3482 = vlaneseq
      %v3483 = vshrl.u32 %v3482, 7
      %v3484 = vsub.s32 %v3481, %v3483
      %v3485 = vrot.slane %v3469, %v3484
      %v3487 = vunpack.c.l.s4 1966171168
      %v3488 = vunpack.c.0.s8 %v3487
      %v3489 = vlaneseq
      %v3490 = vshrl.u32 %v3489, 7
      %v3491 = vsub.s32 %v3488, %v3490
      %v3492 = vrot.slane %v3470, %v3491
      %v3494 = vunpack.c.l.s4 1966171168
      %v3495 = vunpack.c.0.s8 %v3494
      %v3496 = vlaneseq
      %v3497 = vshrl.u32 %v3496, 7
      %v3498 = vsub.s32 %v3495, %v3497
      %v3499 = vrot.slane %v3471, %v3498
      %v3500 = vcombine.low %v3478, %v3485
      %v3501 = vcombine.low %v3492, %v3499
      %v3503 = vunpack.c.l.s4 1966171168
      %v3504 = vunpack.c.0.s8 %v3503
      %v3505 = vlaneseq
      %v3506 = vshrl.u32 %v3505, 7
      %v3507 = vsub.s32 %v3504, %v3506
      %v3508 = vrot.slane %v3500, %v3507
      %v3510 = vunpack.c.l.s4 1966171168
      %v3511 = vunpack.c.0.s8 %v3510
      %v3512 = vlaneseq
      %v3513 = vshrl.u32 %v3512, 7
      %v3514 = vsub.s32 %v3511, %v3513
      %v3515 = vrot.slane %v3501, %v3514
      %v3516 = vcombine.low %v3508, %v3515
      %v3517 = vcombine.low %v3184, %v3185
      %v3518 = vcombine.low %v3186, %v3187
      %v3519 = vcombine.low %v3188, %v3189
      %v3520 = vcombine.low %v3190, %v3191
      %v3522 = vunpack.c.l.s4 1966171168
      %v3523 = vunpack.c.0.s8 %v3522
      %v3524 = vlaneseq
      %v3525 = vshrl.u32 %v3524, 7
      %v3526 = vsub.s32 %v3523, %v3525
      %v3527 = vrot.slane %v3517, %v3526
      %v3529 = vunpack.c.l.s4 1966171168
      %v3530 = vunpack.c.0.s8 %v3529
      %v3531 = vlaneseq
      %v3532 = vshrl.u32 %v3531, 7
      %v3533 = vsub.s32 %v3530, %v3532
      %v3534 = vrot.slane %v3518, %v3533
      %v3536 = vunpack.c.l.s4 1966171168
      %v3537 = vunpack.c.0.s8 %v3536
      %v3538 = vlaneseq
      %v3539 = vshrl.u32 %v3538, 7
      %v3540 = vsub.s32 %v3537, %v3539
      %v3541 = vrot.slane %v3519, %v3540
      %v3543 = vunpack.c.l.s4 1966171168
      %v3544 = vunpack.c.0.s8 %v3543
      %v3545 = vlaneseq
      %v3546 = vshrl.u32 %v3545, 7
      %v3547 = vsub.s32 %v3544, %v3546
      %v3548 = vrot.slane %v3520, %v3547
      %v3549 = vcombine.low %v3527, %v3534
      %v3550 = vcombine.low %v3541, %v3548
      %v3552 = vunpack.c.l.s4 1966171168
      %v3553 = vunpack.c.0.s8 %v3552
      %v3554 = vlaneseq
      %v3555 = vshrl.u32 %v3554, 7
      %v3556 = vsub.s32 %v3553, %v3555
      %v3557 = vrot.slane %v3549, %v3556
      %v3559 = vunpack.c.l.s4 1966171168
      %v3560 = vunpack.c.0.s8 %v3559
      %v3561 = vlaneseq
      %v3562 = vshrl.u32 %v3561, 7
      %v3563 = vsub.s32 %v3560, %v3562
      %v3564 = vrot.slane %v3550, %v3563
      %v3565 = vcombine.low %v3557, %v3564
      %v3566 = vcombine.low %v3192, %v3193
      %v3567 = vcombine.low %v3194, %v3195
      %v3568 = vcombine.low %v3196, %v3197
      %v3569 = vcombine.low %v3198, %v3199
      %v3571 = vunpack.c.l.s4 1966171168
      %v3572 = vunpack.c.0.s8 %v3571
      %v3573 = vlaneseq
      %v3574 = vshrl.u32 %v3573, 7
      %v3575 = vsub.s32 %v3572, %v3574
      %v3576 = vrot.slane %v3566, %v3575
      %v3578 = vunpack.c.l.s4 1966171168
      %v3579 = vunpack.c.0.s8 %v3578
      %v3580 = vlaneseq
      %v3581 = vshrl.u32 %v3580, 7
      %v3582 = vsub.s32 %v3579, %v3581
      %v3583 = vrot.slane %v3567, %v3582
      %v3585 = vunpack.c.l.s4 1966171168
      %v3586 = vunpack.c.0.s8 %v3585
      %v3587 = vlaneseq
      %v3588 = vshrl.u32 %v3587, 7
      %v3589 = vsub.s32 %v3586, %v3588
      %v3590 = vrot.slane %v3568, %v3589
      %v3592 = vunpack.c.l.s4 1966171168
      %v3593 = vunpack.c.0.s8 %v3592
      %v3594 = vlaneseq
      %v3595 = vshrl.u32 %v3594, 7
      %v3596 = vsub.s32 %v3593, %v3595
      %v3597 = vrot.slane %v3569, %v3596
      %v3598 = vcombine.low %v3576, %v3583
      %v3599 = vcombine.low %v3590, %v3597
      %v3601 = vunpack.c.l.s4 1966171168
      %v3602 = vunpack.c.0.s8 %v3601
      %v3603 = vlaneseq
      %v3604 = vshrl.u32 %v3603, 7
      %v3605 = vsub.s32 %v3602, %v3604
      %v3606 = vrot.slane %v3598, %v3605
      %v3608 = vunpack.c.l.s4 1966171168
      %v3609 = vunpack.c.0.s8 %v3608
      %v3610 = vlaneseq
      %v3611 = vshrl.u32 %v3610, 7
      %v3612 = vsub.s32 %v3609, %v3611
      %v3613 = vrot.slane %v3599, %v3612
      %v3614 = vcombine.low %v3606, %v3613
      %v3615 = vcombine.low %v3200, %v3201
      %v3616 = vcombine.low %v3202, %v3203
      %v3617 = vcombine.low %v3204, %v3205
      %v3618 = vcombine.low %v3206, %v3207
      %v3620 = vunpack.c.l.s4 1966171168
      %v3621 = vunpack.c.0.s8 %v3620
      %v3622 = vlaneseq
      %v3623 = vshrl.u32 %v3622, 7
      %v3624 = vsub.s32 %v3621, %v3623
      %v3625 = vrot.slane %v3615, %v3624
      %v3627 = vunpack.c.l.s4 1966171168
      %v3628 = vunpack.c.0.s8 %v3627
      %v3629 = vlaneseq
      %v3630 = vshrl.u32 %v3629, 7
      %v3631 = vsub.s32 %v3628, %v3630
      %v3632 = vrot.slane %v3616, %v3631
      %v3634 = vunpack.c.l.s4 1966171168
      %v3635 = vunpack.c.0.s8 %v3634
      %v3636 = vlaneseq
      %v3637 = vshrl.u32 %v3636, 7
      %v3638 = vsub.s32 %v3635, %v3637
      %v3639 = vrot.slane %v3617, %v3638
      %v3641 = vunpack.c.l.s4 1966171168
      %v3642 = vunpack.c.0.s8 %v3641
      %v3643 = vlaneseq
      %v3644 = vshrl.u32 %v3643, 7
      %v3645 = vsub.s32 %v3642, %v3644
      %v3646 = vrot.slane %v3618, %v3645
      %v3647 = vcombine.low %v3625, %v3632
      %v3648 = vcombine.low %v3639, %v3646
      %v3650 = vunpack.c.l.s4 1966171168
      %v3651 = vunpack.c.0.s8 %v3650
      %v3652 = vlaneseq
      %v3653 = vshrl.u32 %v3652, 7
      %v3654 = vsub.s32 %v3651, %v3653
      %v3655 = vrot.slane %v3647, %v3654
      %v3657 = vunpack.c.l.s4 1966171168
      %v3658 = vunpack.c.0.s8 %v3657
      %v3659 = vlaneseq
      %v3660 = vshrl.u32 %v3659, 7
      %v3661 = vsub.s32 %v3658, %v3660
      %v3662 = vrot.slane %v3648, %v3661
      %v3663 = vcombine.low %v3655, %v3662
      %3672 = vst [vmem:[%s600] sm:$0xff] %v3320
      %3673 = vst [vmem:[%s600 + $0x8] sm:$0xff] %v3369
      %3674 = vst [vmem:[%s600 + $0x10] sm:$0xff] %v3418
      %3675 = vst [vmem:[%s600 + $0x18] sm:$0xff] %v3467
      %3676 = vst [vmem:[%s600 + $0x20] sm:$0xff] %v3516
      %3677 = vst [vmem:[%s600 + $0x28] sm:$0xff] %v3565
      %3678 = vst [vmem:[%s600 + $0x30] sm:$0xff] %v3614
      %3679 = vst [vmem:[%s600 + $0x38] sm:$0xff] %v3663
      %s3680 = smul.u32 8, %s27
      %p3681 = scmp.lt.s32.totalorder %s25, 1
      %s3682 = scalar_select %p3681, %s25, 1
      %p3683 = scmp.lt.s32.totalorder %s26, 3
      %s3684 = scalar_select %p3683, %s26, 3
      %p3685 = scmp.lt.s32.totalorder %s3680, 7
      %s3686 = scalar_select %p3685, %s3680, 7
      %p3687 = scmp.lt.s32.totalorder %s28, 0
      %s3688 = scalar_select %p3687, %s28, 0
      %s3689 = sadd.s32 %s3688, %s3686
      %s3690 = smul.addr %s3684, 8
      %s3691 = sadd.s32 %s3689, %s3690
      %s3692 = smul.addr %s3682, 32
      %s3693 = sadd.s32 %s3691, %s3692
      %s3694 = smul.addr %s3693, 8
      %s3695 = scalar_lea.vmem %s8, %s3694
      // Predicated region
      $region53: #{downsample_causal3d.1} parent=51 // pred_check
        %p3696 = pneg %p299
      $region54: #{downsample_causal3d.1} parent=51 // pred_check_branch
        %3698 = sbr.rel (%p3696) target = $region56
      $region55: #{downsample_causal3d.1} parent=51 // pred_region
        %s3699 = smul.u32 8, %s27
      $region56: #{downsample_causal3d.1} parent=51 // pred_fallthru
        _
    $region52: #{downsample_causal3d.1} parent=5 // pred_fallthru
      _
    %p3700 = scmp.le.s32.totalorder 2, %s14
    // Predicated region
    $region57: #{downsample_causal3d.1} parent=5 // pred_check
      %p3701 = pneg %p3700
    $region58: #{downsample_causal3d.1} parent=5 // pred_check_branch
      %3703 = sbr.rel (%p3701) target = $region60
    $region59: #{downsample_causal3d.1} parent=5 // pred_region
      %s3704 = ssub.s32 %s14, 2
      // Predicated region
      $region61: #{downsample_causal3d.1} parent=59 // pred_check
        %p3705 = pneg %p305
      $region62: #{downsample_causal3d.1} parent=59 // pred_check_branch
        %3707 = sbr.rel (%p3705) target = $region64
      $region63: #{downsample_causal3d.1} parent=59 // pred_region
        %s3708 = smul.u32 8, %s31
        %p3709 = scmp.lt.s32.totalorder %s29, 1
        %s3710 = scalar_select %p3709, %s29, 1
        %p3711 = scmp.lt.s32.totalorder %s30, 3
        %s3712 = scalar_select %p3711, %s30, 3
        %p3713 = scmp.lt.s32.totalorder %s3708, 7
        %s3714 = scalar_select %p3713, %s3708, 7
        %p3715 = scmp.lt.s32.totalorder %s32, 0
        %s3716 = scalar_select %p3715, %s32, 0
        %s3717 = sadd.s32 %s3716, %s3714
        %s3718 = smul.addr %s3712, 8
        %s3719 = sadd.s32 %s3717, %s3718
        %s3720 = smul.addr %s3710, 32
        %s3721 = sadd.s32 %s3719, %s3720
        %s3722 = smul.addr %s3721, 8
        %s3723 = scalar_lea.vmem %s8, %s3722
      $region64: #{downsample_causal3d.1} parent=59 // pred_fallthru
        _
    $region60: #{downsample_causal3d.1} parent=5 // pred_fallthru
      _
  $region6: #{downsample_causal3d.1} parent=0 // loop_footer
    %s18 = sadd.s32 1, %s14
  $region7: #{downsample_causal3d.1} parent=0 // loop_footer_branch
    %13 = sbr.rel target = $region3
  $region8: #{downsample_causal3d.1} parent=0 // loop_exit
    _

</llo_original>
